<compile_context>
chip_gen: v7x
topology: tpu7x:2x2x1
jax: 0.10.0
libtpu: 0.0.40
codegen_flags: <defaults>
</compile_context>

<pallas_src>
import math

import jax
import jax.numpy as jnp
from jax.experimental import pallas as pl
from jax.experimental.pallas import tpu as pltpu  # noqa: F401  (TPU backend)

# ---------------- configuration (small demo shapes) ----------------
B = 8                 # batch
DIM_X = 16            # INN dimension
DIM_Y = 32            # conditioning input dimension
COND_FEATURES = 16    # cond_net output features
HIDDEN = 64           # dense_neurons (module default 512; kept small for demo)
N_BLOCKS = 6          # N_coupling_blocks
SPLIT1 = DIM_X - DIM_X // 2
SPLIT2 = DIM_X // 2
CH_IN = SPLIT1 + COND_FEATURES   # subnet input channels
CH_OUT = 2 * SPLIT2              # subnet output channels
CLAMP = 2.0                      # affine_clamping default


# ---------------- fused cINN kernel (cond_net + 6 coupling blocks) ----------------
def _cinn_fused_kernel(x_ref, y_ref, wc_ref, bc_ref,
                       w1a_ref, w1b_ref, b1_ref,
                       w2_ref, b2_ref,
                       w3s_ref, b3s_ref, w3t_ref, b3t_ref,
                       paa_ref, pab_ref, pba_ref, pbb_ref, pb1_ref, pb2_ref,
                       ldc_ref,
                       z_ref, lj_ref):
    f32 = jnp.float32

    # conditioning network fused in: cond = relu(y @ Wc + bc)
    cond = jnp.maximum(
        jnp.dot(y_ref[...], wc_ref[...], preferred_element_type=f32) + bc_ref[...],
        0.0)

    x = x_ref[...]
    x1 = x[:, :SPLIT1]          # one-time lane split; (x1, x2) carried separately after this
    x2 = x[:, SPLIT1:]
    lj = jnp.zeros((x.shape[0], 1), f32)

    # static unroll over the 6 coupling blocks; all weights are VMEM-resident.
    for k in range(N_BLOCKS):
        # subnet layer 1: split matmul replaces concat([x1, cond], axis=1)
        h = jnp.maximum(
            jnp.dot(x1, w1a_ref[k], preferred_element_type=f32)
            + jnp.dot(cond, w1b_ref[k], preferred_element_type=f32)
            + b1_ref[k],
            0.0)
        # subnet layer 2
        h = jnp.maximum(
            jnp.dot(h, w2_ref[k], preferred_element_type=f32) + b2_ref[k], 0.0)
        # subnet layer 3 split into s/t halves (0.1 prefactor folded into W3/b3 on host)
        s = CLAMP * jnp.tanh(
            jnp.dot(h, w3s_ref[k], preferred_element_type=f32) + b3s_ref[k])
        t = jnp.dot(h, w3t_ref[k], preferred_element_type=f32) + b3t_ref[k]

        # affine coupling on x2
        x2 = x2 * jnp.exp(s) + t
        lj = lj + jnp.sum(s, axis=1, keepdims=True)

        # global affine folded into the permutation on the host; split 2x2 matmul
        # carries (x1, x2) directly into the next block without any concat.
        x1n = (jnp.dot(x1, paa_ref[k], preferred_element_type=f32)
               + jnp.dot(x2, pba_ref[k], preferred_element_type=f32)
               + pb1_ref[k])
        x2n = (jnp.dot(x1, pab_ref[k], preferred_element_type=f32)
               + jnp.dot(x2, pbb_ref[k], preferred_element_type=f32)
               + pb2_ref[k])
        x1, x2 = x1n, x2n

    # single assembly + store at the end (one-time relayout)
    z_ref[...] = jnp.concatenate([x1, x2], axis=1)
    # precomputed constant sum_k sum(log(scale_k)) broadcast-added once
    lj_ref[...] = lj + ldc_ref[...]


def cinn_forward(x, y, cond_params, folded):
    Wc, bc = cond_params
    z, lj = pl.pallas_call(
        _cinn_fused_kernel,
        out_shape=(jax.ShapeDtypeStruct((x.shape[0], DIM_X), jnp.float32),
                   jax.ShapeDtypeStruct((x.shape[0], 1), jnp.float32)),
        # no grid: every input/output is mapped whole into VMEM (tiny footprint)
    )(x, y, Wc, bc, *folded)
    return z, lj[:, 0]


# ---------------- CINN.forward ----------------
def forward(x, y, cond_params, folded):
    return dict(*(),
                **{k: v for k, v in zip(("z", "log_jac_det"),
                                        cinn_forward(x, y, cond_params, folded))})


# ---------------- deterministic parameter initialization ----------------
def _xavier(key, fan_in, fan_out):
    bound = math.sqrt(6.0 / (fan_in + fan_out))
    return jax.random.uniform(key, (fan_in, fan_out), jnp.float32, -bound, bound)


def init_block(key):
    k = jax.random.split(key, 7)
    W1 = _xavier(k[0], CH_IN, HIDDEN)
    b1 = 0.05 * jax.random.normal(k[1], (1, HIDDEN), jnp.float32)
    W2 = _xavier(k[2], HIDDEN, HIDDEN)
    b2 = 0.05 * jax.random.normal(k[3], (1, HIDDEN), jnp.float32)
    W3 = _xavier(k[4], HIDDEN, CH_OUT)
    b3 = 0.05 * jax.random.normal(k[5], (1, CH_OUT), jnp.float32)
    # SOFTPLUS global affine, global_affine_init = 1.0
    gs_init = 2.0 * math.log(math.exp(0.5 * 10.0 * 1.0) - 1.0)
    gs = jnp.full((1, DIM_X), gs_init, jnp.float32)
    go = jnp.zeros((1, DIM_X), jnp.float32)
    perm = jax.random.permutation(k[6], DIM_X)
    w_perm = jnp.eye(DIM_X, dtype=jnp.float32)[perm]   # w[i, perm[i]] = 1
    wpT = w_perm.T
    return (W1, b1, W2, b2, W3, b3, gs, go, wpT)


def init_params(key):
    # TODO(synk): cond_net is user-supplied via makeCondNet in the original
    # module; a Linear(DIM_Y, COND_FEATURES)+ReLU stand-in is used here.
    kc, kb = jax.random.split(key)
    kcs = jax.random.split(kc, 2)
    Wc = _xavier(kcs[0], DIM_Y, COND_FEATURES)
    bc = 0.05 * jax.random.normal(kcs[1], (1, COND_FEATURES), jnp.float32)
    blocks = [init_block(k) for k in jax.random.split(kb, N_BLOCKS)]
    stacked = tuple(jnp.stack([blk[i] for blk in blocks], axis=0) for i in range(9))
    return (Wc, bc), stacked


def fold_params(stacked):
    """Host-side parameter folding: split matmuls + global-affine folding."""
    W1, b1, W2, b2, W3, b3, gs, go, wpT = stacked   # leading dim = N_BLOCKS
    # scale = 0.1 * softplus_{beta=0.5}(gs)
    scale = 0.1 * 2.0 * jnp.log(1.0 + jnp.exp(0.5 * gs))          # (N, 1, DIM_X)
    # (x*scale + go) @ wpT  ==  x @ (diag(scale) @ wpT) + go @ wpT
    P = jnp.swapaxes(scale, 1, 2) * wpT                           # (N, DIM_X, DIM_X)
    pbias = jnp.matmul(go, wpT)                                   # (N, 1, DIM_X)

    W1a = W1[:, :SPLIT1, :]            # x1-side of the first subnet layer
    W1b = W1[:, SPLIT1:, :]            # cond-side of the first subnet layer
    W3s = 0.1 * W3[:, :, :SPLIT2]      # 0.1 prefactor folded in
    b3s = 0.1 * b3[:, :, :SPLIT2]
    W3t = 0.1 * W3[:, :, SPLIT2:]
    b3t = 0.1 * b3[:, :, SPLIT2:]

    Paa = P[:, :SPLIT1, :SPLIT1]
    Pab = P[:, :SPLIT1, SPLIT1:]
    Pba = P[:, SPLIT1:, :SPLIT1]
    Pbb = P[:, SPLIT1:, SPLIT1:]
    pb1 = pbias[:, :, :SPLIT1]
    pb2 = pbias[:, :, SPLIT1:]

    ldc = jnp.sum(jnp.log(scale)).reshape(1, 1)   # sum_k sum(log(scale_k)), constant
    return (W1a, W1b, b1, W2, b2, W3s, b3s, W3t, b3t,
            Paa, Pab, Pba, Pbb, pb1, pb2, ldc)


# ---------------- pure-JAX reference (original, unfolded math) ----------------
def forward_ref(x, y, cond_params, stacked):
    Wc, bc = cond_params
    cond = jnp.maximum(y @ Wc + bc, 0.0)
    W1, b1, W2, b2, W3, b3, gs, go, wpT = stacked
    lj = jnp.zeros((x.shape[0],), jnp.float32)
    for i in range(N_BLOCKS):
        x1, x2 = x[:, :SPLIT1], x[:, SPLIT1:]
        x1c = jnp.concatenate([x1, cond], axis=1)
        h = jnp.maximum(x1c @ W1[i] + b1[i], 0.0)
        h = jnp.maximum(h @ W2[i] + b2[i], 0.0)
        a = (h @ W3[i] + b3[i]) * 0.1
        s = CLAMP * jnp.tanh(a[:, :SPLIT2])
        t = a[:, SPLIT2:]
        x2n = x2 * jnp.exp(s) + t
        j2 = jnp.sum(s, axis=1)
        xo = jnp.concatenate([x1, x2n], axis=1)
        scale = 0.1 * 2.0 * jnp.log(1.0 + jnp.exp(0.5 * gs[i]))
        xa = xo * scale + go[i]
        x = xa @ wpT[i]
        lj = lj + j2 + jnp.sum(jnp.log(scale))
    return x, lj


if __name__ == "__main__":
    key = jax.random.PRNGKey(0)
    kx, ky, kp = jax.random.split(key, 3)
    x = jax.random.normal(kx, (B, DIM_X), jnp.float32)
    y = jax.random.normal(ky, (B, DIM_Y), jnp.float32)
    cond_params, stacked = init_params(kp)
    folded = fold_params(stacked)

    out = forward(x, y, cond_params, folded)
    jax.block_until_ready(out["z"])
    jax.block_until_ready(out["log_jac_det"])

    z_ref, lj_ref = forward_ref(x, y, cond_params, stacked)
    assert out["z"].shape == (B, DIM_X)
    assert out["log_jac_det"].shape == (B,)
    assert jnp.allclose(out["z"], z_ref, atol=1e-3, rtol=1e-3)
    assert jnp.allclose(out["log_jac_det"], lj_ref, atol=1e-3, rtol=1e-3)

    print("KERNEL_OK")
</pallas_src>

<mosaic_0001>
module attributes {stable_mosaic.version = 11 : i64} {
  func.func @_cinn_fused_kernel(%arg0: memref<8x16xf32, #tpu.memory_space<vmem>>, %arg1: memref<8x32xf32, #tpu.memory_space<vmem>>, %arg2: memref<32x16xf32, #tpu.memory_space<vmem>>, %arg3: memref<1x16xf32, #tpu.memory_space<vmem>>, %arg4: memref<6x8x64xf32, #tpu.memory_space<vmem>>, %arg5: memref<6x16x64xf32, #tpu.memory_space<vmem>>, %arg6: memref<6x1x64xf32, #tpu.memory_space<vmem>>, %arg7: memref<6x64x64xf32, #tpu.memory_space<vmem>>, %arg8: memref<6x1x64xf32, #tpu.memory_space<vmem>>, %arg9: memref<6x64x8xf32, #tpu.memory_space<vmem>>, %arg10: memref<6x1x8xf32, #tpu.memory_space<vmem>>, %arg11: memref<6x64x8xf32, #tpu.memory_space<vmem>>, %arg12: memref<6x1x8xf32, #tpu.memory_space<vmem>>, %arg13: memref<6x8x8xf32, #tpu.memory_space<vmem>>, %arg14: memref<6x8x8xf32, #tpu.memory_space<vmem>>, %arg15: memref<6x8x8xf32, #tpu.memory_space<vmem>>, %arg16: memref<6x8x8xf32, #tpu.memory_space<vmem>>, %arg17: memref<6x1x8xf32, #tpu.memory_space<vmem>>, %arg18: memref<6x1x8xf32, #tpu.memory_space<vmem>>, %arg19: memref<1x1xf32, #tpu.memory_space<vmem>>, %arg20: memref<8x16xf32, #tpu.memory_space<vmem>>, %arg21: memref<8x1xf32, #tpu.memory_space<vmem>>) attributes {dimension_semantics = [], scalar_prefetch = 0 : i64, scratch_operands = 0 : i64, tpu.core_type = #tpu.core_type<tc>} {
    %c0 = arith.constant 0 : index
    %c0_0 = arith.constant 0 : index
    %0 = vector.load %arg1[%c0, %c0_0] : memref<8x32xf32, #tpu.memory_space<vmem>>, vector<8x32xf32>
    %c0_1 = arith.constant 0 : index
    %c0_2 = arith.constant 0 : index
    %1 = vector.load %arg2[%c0_1, %c0_2] : memref<32x16xf32, #tpu.memory_space<vmem>>, vector<32x16xf32>
    %cst = arith.constant dense<0.000000e+00> : vector<8x16xf32>
    %2 = tpu.matmul %0, %1, %cst {dimension_numbers = #tpu.dot_dimension_numbers<[1], [0], [0], [1], [0, 0, 1, 1], [], []>} : vector<8x32xf32>, vector<32x16xf32>, vector<8x16xf32> -> vector<8x16xf32>
    %c0_3 = arith.constant 0 : index
    %c0_4 = arith.constant 0 : index
    %3 = vector.load %arg3[%c0_3, %c0_4] : memref<1x16xf32, #tpu.memory_space<vmem>>, vector<1x16xf32>
    %4 = vector.broadcast %3 : vector<1x16xf32> to vector<8x16xf32>
    %5 = arith.addf %2, %4 : vector<8x16xf32>
    %cst_5 = arith.constant 0.000000e+00 : f32
    %6 = vector.broadcast %cst_5 : f32 to vector<8x16xf32>
    %7 = arith.maximumf %5, %6 : vector<8x16xf32>
    %c0_6 = arith.constant 0 : index
    %c0_7 = arith.constant 0 : index
    %8 = vector.load %arg0[%c0_6, %c0_7] : memref<8x16xf32, #tpu.memory_space<vmem>>, vector<8x16xf32>
    %9 = vector.extract_strided_slice %8 {offsets = [0, 0], sizes = [8, 8], strides = [1, 1]} : vector<8x16xf32> to vector<8x8xf32>
    %10 = vector.extract_strided_slice %8 {offsets = [0, 8], sizes = [8, 8], strides = [1, 1]} : vector<8x16xf32> to vector<8x8xf32>
    %cst_8 = arith.constant 0.000000e+00 : f32
    %11 = vector.broadcast %cst_8 : f32 to vector<8x1xf32>
    %c0_9 = arith.constant 0 : index
    %c0_10 = arith.constant 0 : index
    %c0_11 = arith.constant 0 : index
    %12 = vector.load %arg4[%c0_9, %c0_10, %c0_11] : memref<6x8x64xf32, #tpu.memory_space<vmem>>, vector<1x8x64xf32>
    %13 = vector.shape_cast %12 : vector<1x8x64xf32> to vector<8x64xf32>
    %cst_12 = arith.constant dense<0.000000e+00> : vector<8x64xf32>
    %14 = tpu.matmul %9, %13, %cst_12 {dimension_numbers = #tpu.dot_dimension_numbers<[1], [0], [0], [1], [0, 0, 1, 1], [], []>} : vector<8x8xf32>, vector<8x64xf32>, vector<8x64xf32> -> vector<8x64xf32>
    %c0_13 = arith.constant 0 : index
    %c0_14 = arith.constant 0 : index
    %c0_15 = arith.constant 0 : index
    %15 = vector.load %arg5[%c0_13, %c0_14, %c0_15] : memref<6x16x64xf32, #tpu.memory_space<vmem>>, vector<1x16x64xf32>
    %16 = vector.shape_cast %15 : vector<1x16x64xf32> to vector<16x64xf32>
    %cst_16 = arith.constant dense<0.000000e+00> : vector<8x64xf32>
    %17 = tpu.matmul %7, %16, %cst_16 {dimension_numbers = #tpu.dot_dimension_numbers<[1], [0], [0], [1], [0, 0, 1, 1], [], []>} : vector<8x16xf32>, vector<16x64xf32>, vector<8x64xf32> -> vector<8x64xf32>
    %18 = arith.addf %14, %17 : vector<8x64xf32>
    %c0_17 = arith.constant 0 : index
    %c0_18 = arith.constant 0 : index
    %c0_19 = arith.constant 0 : index
    %19 = vector.load %arg6[%c0_17, %c0_18, %c0_19] : memref<6x1x64xf32, #tpu.memory_space<vmem>>, vector<1x1x64xf32>
    %20 = vector.shape_cast %19 : vector<1x1x64xf32> to vector<1x64xf32>
    %21 = vector.broadcast %20 : vector<1x64xf32> to vector<8x64xf32>
    %22 = arith.addf %18, %21 : vector<8x64xf32>
    %cst_20 = arith.constant 0.000000e+00 : f32
    %23 = vector.broadcast %cst_20 : f32 to vector<8x64xf32>
    %24 = arith.maximumf %22, %23 : vector<8x64xf32>
    %c0_21 = arith.constant 0 : index
    %c0_22 = arith.constant 0 : index
    %c0_23 = arith.constant 0 : index
    %25 = vector.load %arg7[%c0_21, %c0_22, %c0_23] : memref<6x64x64xf32, #tpu.memory_space<vmem>>, vector<1x64x64xf32>
    %26 = vector.shape_cast %25 : vector<1x64x64xf32> to vector<64x64xf32>
    %cst_24 = arith.constant dense<0.000000e+00> : vector<8x64xf32>
    %27 = tpu.matmul %24, %26, %cst_24 {dimension_numbers = #tpu.dot_dimension_numbers<[1], [0], [0], [1], [0, 0, 1, 1], [], []>} : vector<8x64xf32>, vector<64x64xf32>, vector<8x64xf32> -> vector<8x64xf32>
    %c0_25 = arith.constant 0 : index
    %c0_26 = arith.constant 0 : index
    %c0_27 = arith.constant 0 : index
    %28 = vector.load %arg8[%c0_25, %c0_26, %c0_27] : memref<6x1x64xf32, #tpu.memory_space<vmem>>, vector<1x1x64xf32>
    %29 = vector.shape_cast %28 : vector<1x1x64xf32> to vector<1x64xf32>
    %30 = vector.broadcast %29 : vector<1x64xf32> to vector<8x64xf32>
    %31 = arith.addf %27, %30 : vector<8x64xf32>
    %cst_28 = arith.constant 0.000000e+00 : f32
    %32 = vector.broadcast %cst_28 : f32 to vector<8x64xf32>
    %33 = arith.maximumf %31, %32 : vector<8x64xf32>
    %c0_29 = arith.constant 0 : index
    %c0_30 = arith.constant 0 : index
    %c0_31 = arith.constant 0 : index
    %34 = vector.load %arg9[%c0_29, %c0_30, %c0_31] : memref<6x64x8xf32, #tpu.memory_space<vmem>>, vector<1x64x8xf32>
    %35 = vector.shape_cast %34 : vector<1x64x8xf32> to vector<64x8xf32>
    %cst_32 = arith.constant dense<0.000000e+00> : vector<8x8xf32>
    %36 = tpu.matmul %33, %35, %cst_32 {dimension_numbers = #tpu.dot_dimension_numbers<[1], [0], [0], [1], [0, 0, 1, 1], [], []>} : vector<8x64xf32>, vector<64x8xf32>, vector<8x8xf32> -> vector<8x8xf32>
    %c0_33 = arith.constant 0 : index
    %c0_34 = arith.constant 0 : index
    %c0_35 = arith.constant 0 : index
    %37 = vector.load %arg10[%c0_33, %c0_34, %c0_35] : memref<6x1x8xf32, #tpu.memory_space<vmem>>, vector<1x1x8xf32>
    %38 = vector.shape_cast %37 : vector<1x1x8xf32> to vector<1x8xf32>
    %39 = vector.broadcast %38 : vector<1x8xf32> to vector<8x8xf32>
    %40 = arith.addf %36, %39 : vector<8x8xf32>
    %41 = math.tanh %40 : vector<8x8xf32>
    %cst_36 = arith.constant 2.000000e+00 : f32
    %42 = vector.broadcast %cst_36 : f32 to vector<8x8xf32>
    %43 = arith.mulf %42, %41 : vector<8x8xf32>
    %c0_37 = arith.constant 0 : index
    %c0_38 = arith.constant 0 : index
    %c0_39 = arith.constant 0 : index
    %44 = vector.load %arg11[%c0_37, %c0_38, %c0_39] : memref<6x64x8xf32, #tpu.memory_space<vmem>>, vector<1x64x8xf32>
    %45 = vector.shape_cast %44 : vector<1x64x8xf32> to vector<64x8xf32>
    %cst_40 = arith.constant dense<0.000000e+00> : vector<8x8xf32>
    %46 = tpu.matmul %33, %45, %cst_40 {dimension_numbers = #tpu.dot_dimension_numbers<[1], [0], [0], [1], [0, 0, 1, 1], [], []>} : vector<8x64xf32>, vector<64x8xf32>, vector<8x8xf32> -> vector<8x8xf32>
    %c0_41 = arith.constant 0 : index
    %c0_42 = arith.constant 0 : index
    %c0_43 = arith.constant 0 : index
    %47 = vector.load %arg12[%c0_41, %c0_42, %c0_43] : memref<6x1x8xf32, #tpu.memory_space<vmem>>, vector<1x1x8xf32>
    %48 = vector.shape_cast %47 : vector<1x1x8xf32> to vector<1x8xf32>
    %49 = vector.broadcast %48 : vector<1x8xf32> to vector<8x8xf32>
    %50 = arith.addf %46, %49 : vector<8x8xf32>
    %51 = math.exp %43 : vector<8x8xf32>
    %52 = arith.mulf %10, %51 : vector<8x8xf32>
    %53 = arith.addf %52, %50 : vector<8x8xf32>
    %cst_44 = arith.constant dense<0.000000e+00> : vector<8xf32>
    %54 = vector.multi_reduction <add>, %43, %cst_44 [1] : vector<8x8xf32> to vector<8xf32>
    %55 = vector.shape_cast %54 : vector<8xf32> to vector<8x1xf32>
    %56 = arith.addf %11, %55 : vector<8x1xf32>
    %c0_45 = arith.constant 0 : index
    %c0_46 = arith.constant 0 : index
    %c0_47 = arith.constant 0 : index
    %57 = vector.load %arg13[%c0_45, %c0_46, %c0_47] : memref<6x8x8xf32, #tpu.memory_space<vmem>>, vector<1x8x8xf32>
    %58 = vector.shape_cast %57 : vector<1x8x8xf32> to vector<8x8xf32>
    %cst_48 = arith.constant dense<0.000000e+00> : vector<8x8xf32>
    %59 = tpu.matmul %9, %58, %cst_48 {dimension_numbers = #tpu.dot_dimension_numbers<[1], [0], [0], [1], [0, 0, 1, 1], [], []>} : vector<8x8xf32>, vector<8x8xf32>, vector<8x8xf32> -> vector<8x8xf32>
    %c0_49 = arith.constant 0 : index
    %c0_50 = arith.constant 0 : index
    %c0_51 = arith.constant 0 : index
    %60 = vector.load %arg15[%c0_49, %c0_50, %c0_51] : memref<6x8x8xf32, #tpu.memory_space<vmem>>, vector<1x8x8xf32>
    %61 = vector.shape_cast %60 : vector<1x8x8xf32> to vector<8x8xf32>
    %cst_52 = arith.constant dense<0.000000e+00> : vector<8x8xf32>
    %62 = tpu.matmul %53, %61, %cst_52 {dimension_numbers = #tpu.dot_dimension_numbers<[1], [0], [0], [1], [0, 0, 1, 1], [], []>} : vector<8x8xf32>, vector<8x8xf32>, vector<8x8xf32> -> vector<8x8xf32>
    %63 = arith.addf %59, %62 : vector<8x8xf32>
    %c0_53 = arith.constant 0 : index
    %c0_54 = arith.constant 0 : index
    %c0_55 = arith.constant 0 : index
    %64 = vector.load %arg17[%c0_53, %c0_54, %c0_55] : memref<6x1x8xf32, #tpu.memory_space<vmem>>, vector<1x1x8xf32>
    %65 = vector.shape_cast %64 : vector<1x1x8xf32> to vector<1x8xf32>
    %66 = vector.broadcast %65 : vector<1x8xf32> to vector<8x8xf32>
    %67 = arith.addf %63, %66 : vector<8x8xf32>
    %c0_56 = arith.constant 0 : index
    %c0_57 = arith.constant 0 : index
    %c0_58 = arith.constant 0 : index
    %68 = vector.load %arg14[%c0_56, %c0_57, %c0_58] : memref<6x8x8xf32, #tpu.memory_space<vmem>>, vector<1x8x8xf32>
    %69 = vector.shape_cast %68 : vector<1x8x8xf32> to vector<8x8xf32>
    %cst_59 = arith.constant dense<0.000000e+00> : vector<8x8xf32>
    %70 = tpu.matmul %9, %69, %cst_59 {dimension_numbers = #tpu.dot_dimension_numbers<[1], [0], [0], [1], [0, 0, 1, 1], [], []>} : vector<8x8xf32>, vector<8x8xf32>, vector<8x8xf32> -> vector<8x8xf32>
    %c0_60 = arith.constant 0 : index
    %c0_61 = arith.constant 0 : index
    %c0_62 = arith.constant 0 : index
    %71 = vector.load %arg16[%c0_60, %c0_61, %c0_62] : memref<6x8x8xf32, #tpu.memory_space<vmem>>, vector<1x8x8xf32>
    %72 = vector.shape_cast %71 : vector<1x8x8xf32> to vector<8x8xf32>
    %cst_63 = arith.constant dense<0.000000e+00> : vector<8x8xf32>
    %73 = tpu.matmul %53, %72, %cst_63 {dimension_numbers = #tpu.dot_dimension_numbers<[1], [0], [0], [1], [0, 0, 1, 1], [], []>} : vector<8x8xf32>, vector<8x8xf32>, vector<8x8xf32> -> vector<8x8xf32>
    %74 = arith.addf %70, %73 : vector<8x8xf32>
    %c0_64 = arith.constant 0 : index
    %c0_65 = arith.constant 0 : index
    %c0_66 = arith.constant 0 : index
    %75 = vector.load %arg18[%c0_64, %c0_65, %c0_66] : memref<6x1x8xf32, #tpu.memory_space<vmem>>, vector<1x1x8xf32>
    %76 = vector.shape_cast %75 : vector<1x1x8xf32> to vector<1x8xf32>
    %77 = vector.broadcast %76 : vector<1x8xf32> to vector<8x8xf32>
    %78 = arith.addf %74, %77 : vector<8x8xf32>
    %c1 = arith.constant 1 : index
    %c0_67 = arith.constant 0 : index
    %c0_68 = arith.constant 0 : index
    %79 = vector.load %arg4[%c1, %c0_67, %c0_68] : memref<6x8x64xf32, #tpu.memory_space<vmem>>, vector<1x8x64xf32>
    %80 = vector.shape_cast %79 : vector<1x8x64xf32> to vector<8x64xf32>
    %cst_69 = arith.constant dense<0.000000e+00> : vector<8x64xf32>
    %81 = tpu.matmul %67, %80, %cst_69 {dimension_numbers = #tpu.dot_dimension_numbers<[1], [0], [0], [1], [0, 0, 1, 1], [], []>} : vector<8x8xf32>, vector<8x64xf32>, vector<8x64xf32> -> vector<8x64xf32>
    %c1_70 = arith.constant 1 : index
    %c0_71 = arith.constant 0 : index
    %c0_72 = arith.constant 0 : index
    %82 = vector.load %arg5[%c1_70, %c0_71, %c0_72] : memref<6x16x64xf32, #tpu.memory_space<vmem>>, vector<1x16x64xf32>
    %83 = vector.shape_cast %82 : vector<1x16x64xf32> to vector<16x64xf32>
    %cst_73 = arith.constant dense<0.000000e+00> : vector<8x64xf32>
    %84 = tpu.matmul %7, %83, %cst_73 {dimension_numbers = #tpu.dot_dimension_numbers<[1], [0], [0], [1], [0, 0, 1, 1], [], []>} : vector<8x16xf32>, vector<16x64xf32>, vector<8x64xf32> -> vector<8x64xf32>
    %85 = arith.addf %81, %84 : vector<8x64xf32>
    %c1_74 = arith.constant 1 : index
    %c0_75 = arith.constant 0 : index
    %c0_76 = arith.constant 0 : index
    %86 = vector.load %arg6[%c1_74, %c0_75, %c0_76] : memref<6x1x64xf32, #tpu.memory_space<vmem>>, vector<1x1x64xf32>
    %87 = vector.shape_cast %86 : vector<1x1x64xf32> to vector<1x64xf32>
    %88 = vector.broadcast %87 : vector<1x64xf32> to vector<8x64xf32>
    %89 = arith.addf %85, %88 : vector<8x64xf32>
    %cst_77 = arith.constant 0.000000e+00 : f32
    %90 = vector.broadcast %cst_77 : f32 to vector<8x64xf32>
    %91 = arith.maximumf %89, %90 : vector<8x64xf32>
    %c1_78 = arith.constant 1 : index
    %c0_79 = arith.constant 0 : index
    %c0_80 = arith.constant 0 : index
    %92 = vector.load %arg7[%c1_78, %c0_79, %c0_80] : memref<6x64x64xf32, #tpu.memory_space<vmem>>, vector<1x64x64xf32>
    %93 = vector.shape_cast %92 : vector<1x64x64xf32> to vector<64x64xf32>
    %cst_81 = arith.constant dense<0.000000e+00> : vector<8x64xf32>
    %94 = tpu.matmul %91, %93, %cst_81 {dimension_numbers = #tpu.dot_dimension_numbers<[1], [0], [0], [1], [0, 0, 1, 1], [], []>} : vector<8x64xf32>, vector<64x64xf32>, vector<8x64xf32> -> vector<8x64xf32>
    %c1_82 = arith.constant 1 : index
    %c0_83 = arith.constant 0 : index
    %c0_84 = arith.constant 0 : index
    %95 = vector.load %arg8[%c1_82, %c0_83, %c0_84] : memref<6x1x64xf32, #tpu.memory_space<vmem>>, vector<1x1x64xf32>
    %96 = vector.shape_cast %95 : vector<1x1x64xf32> to vector<1x64xf32>
    %97 = vector.broadcast %96 : vector<1x64xf32> to vector<8x64xf32>
    %98 = arith.addf %94, %97 : vector<8x64xf32>
    %cst_85 = arith.constant 0.000000e+00 : f32
    %99 = vector.broadcast %cst_85 : f32 to vector<8x64xf32>
    %100 = arith.maximumf %98, %99 : vector<8x64xf32>
    %c1_86 = arith.constant 1 : index
    %c0_87 = arith.constant 0 : index
    %c0_88 = arith.constant 0 : index
    %101 = vector.load %arg9[%c1_86, %c0_87, %c0_88] : memref<6x64x8xf32, #tpu.memory_space<vmem>>, vector<1x64x8xf32>
    %102 = vector.shape_cast %101 : vector<1x64x8xf32> to vector<64x8xf32>
    %cst_89 = arith.constant dense<0.000000e+00> : vector<8x8xf32>
    %103 = tpu.matmul %100, %102, %cst_89 {dimension_numbers = #tpu.dot_dimension_numbers<[1], [0], [0], [1], [0, 0, 1, 1], [], []>} : vector<8x64xf32>, vector<64x8xf32>, vector<8x8xf32> -> vector<8x8xf32>
    %c1_90 = arith.constant 1 : index
    %c0_91 = arith.constant 0 : index
    %c0_92 = arith.constant 0 : index
    %104 = vector.load %arg10[%c1_90, %c0_91, %c0_92] : memref<6x1x8xf32, #tpu.memory_space<vmem>>, vector<1x1x8xf32>
    %105 = vector.shape_cast %104 : vector<1x1x8xf32> to vector<1x8xf32>
    %106 = vector.broadcast %105 : vector<1x8xf32> to vector<8x8xf32>
    %107 = arith.addf %103, %106 : vector<8x8xf32>
    %108 = math.tanh %107 : vector<8x8xf32>
    %cst_93 = arith.constant 2.000000e+00 : f32
    %109 = vector.broadcast %cst_93 : f32 to vector<8x8xf32>
    %110 = arith.mulf %109, %108 : vector<8x8xf32>
    %c1_94 = arith.constant 1 : index
    %c0_95 = arith.constant 0 : index
    %c0_96 = arith.constant 0 : index
    %111 = vector.load %arg11[%c1_94, %c0_95, %c0_96] : memref<6x64x8xf32, #tpu.memory_space<vmem>>, vector<1x64x8xf32>
    %112 = vector.shape_cast %111 : vector<1x64x8xf32> to vector<64x8xf32>
    %cst_97 = arith.constant dense<0.000000e+00> : vector<8x8xf32>
    %113 = tpu.matmul %100, %112, %cst_97 {dimension_numbers = #tpu.dot_dimension_numbers<[1], [0], [0], [1], [0, 0, 1, 1], [], []>} : vector<8x64xf32>, vector<64x8xf32>, vector<8x8xf32> -> vector<8x8xf32>
    %c1_98 = arith.constant 1 : index
    %c0_99 = arith.constant 0 : index
    %c0_100 = arith.constant 0 : index
    %114 = vector.load %arg12[%c1_98, %c0_99, %c0_100] : memref<6x1x8xf32, #tpu.memory_space<vmem>>, vector<1x1x8xf32>
    %115 = vector.shape_cast %114 : vector<1x1x8xf32> to vector<1x8xf32>
    %116 = vector.broadcast %115 : vector<1x8xf32> to vector<8x8xf32>
    %117 = arith.addf %113, %116 : vector<8x8xf32>
    %118 = math.exp %110 : vector<8x8xf32>
    %119 = arith.mulf %78, %118 : vector<8x8xf32>
    %120 = arith.addf %119, %117 : vector<8x8xf32>
    %cst_101 = arith.constant dense<0.000000e+00> : vector<8xf32>
    %121 = vector.multi_reduction <add>, %110, %cst_101 [1] : vector<8x8xf32> to vector<8xf32>
    %122 = vector.shape_cast %121 : vector<8xf32> to vector<8x1xf32>
    %123 = arith.addf %56, %122 : vector<8x1xf32>
    %c1_102 = arith.constant 1 : index
    %c0_103 = arith.constant 0 : index
    %c0_104 = arith.constant 0 : index
    %124 = vector.load %arg13[%c1_102, %c0_103, %c0_104] : memref<6x8x8xf32, #tpu.memory_space<vmem>>, vector<1x8x8xf32>
    %125 = vector.shape_cast %124 : vector<1x8x8xf32> to vector<8x8xf32>
    %cst_105 = arith.constant dense<0.000000e+00> : vector<8x8xf32>
    %126 = tpu.matmul %67, %125, %cst_105 {dimension_numbers = #tpu.dot_dimension_numbers<[1], [0], [0], [1], [0, 0, 1, 1], [], []>} : vector<8x8xf32>, vector<8x8xf32>, vector<8x8xf32> -> vector<8x8xf32>
    %c1_106 = arith.constant 1 : index
    %c0_107 = arith.constant 0 : index
    %c0_108 = arith.constant 0 : index
    %127 = vector.load %arg15[%c1_106, %c0_107, %c0_108] : memref<6x8x8xf32, #tpu.memory_space<vmem>>, vector<1x8x8xf32>
    %128 = vector.shape_cast %127 : vector<1x8x8xf32> to vector<8x8xf32>
    %cst_109 = arith.constant dense<0.000000e+00> : vector<8x8xf32>
    %129 = tpu.matmul %120, %128, %cst_109 {dimension_numbers = #tpu.dot_dimension_numbers<[1], [0], [0], [1], [0, 0, 1, 1], [], []>} : vector<8x8xf32>, vector<8x8xf32>, vector<8x8xf32> -> vector<8x8xf32>
    %130 = arith.addf %126, %129 : vector<8x8xf32>
    %c1_110 = arith.constant 1 : index
    %c0_111 = arith.constant 0 : index
    %c0_112 = arith.constant 0 : index
    %131 = vector.load %arg17[%c1_110, %c0_111, %c0_112] : memref<6x1x8xf32, #tpu.memory_space<vmem>>, vector<1x1x8xf32>
    %132 = vector.shape_cast %131 : vector<1x1x8xf32> to vector<1x8xf32>
    %133 = vector.broadcast %132 : vector<1x8xf32> to vector<8x8xf32>
    %134 = arith.addf %130, %133 : vector<8x8xf32>
    %c1_113 = arith.constant 1 : index
    %c0_114 = arith.constant 0 : index
    %c0_115 = arith.constant 0 : index
    %135 = vector.load %arg14[%c1_113, %c0_114, %c0_115] : memref<6x8x8xf32, #tpu.memory_space<vmem>>, vector<1x8x8xf32>
    %136 = vector.shape_cast %135 : vector<1x8x8xf32> to vector<8x8xf32>
    %cst_116 = arith.constant dense<0.000000e+00> : vector<8x8xf32>
    %137 = tpu.matmul %67, %136, %cst_116 {dimension_numbers = #tpu.dot_dimension_numbers<[1], [0], [0], [1], [0, 0, 1, 1], [], []>} : vector<8x8xf32>, vector<8x8xf32>, vector<8x8xf32> -> vector<8x8xf32>
    %c1_117 = arith.constant 1 : index
    %c0_118 = arith.constant 0 : index
    %c0_119 = arith.constant 0 : index
    %138 = vector.load %arg16[%c1_117, %c0_118, %c0_119] : memref<6x8x8xf32, #tpu.memory_space<vmem>>, vector<1x8x8xf32>
    %139 = vector.shape_cast %138 : vector<1x8x8xf32> to vector<8x8xf32>
    %cst_120 = arith.constant dense<0.000000e+00> : vector<8x8xf32>
    %140 = tpu.matmul %120, %139, %cst_120 {dimension_numbers = #tpu.dot_dimension_numbers<[1], [0], [0], [1], [0, 0, 1, 1], [], []>} : vector<8x8xf32>, vector<8x8xf32>, vector<8x8xf32> -> vector<8x8xf32>
    %141 = arith.addf %137, %140 : vector<8x8xf32>
    %c1_121 = arith.constant 1 : index
    %c0_122 = arith.constant 0 : index
    %c0_123 = arith.constant 0 : index
    %142 = vector.load %arg18[%c1_121, %c0_122, %c0_123] : memref<6x1x8xf32, #tpu.memory_space<vmem>>, vector<1x1x8xf32>
    %143 = vector.shape_cast %142 : vector<1x1x8xf32> to vector<1x8xf32>
    %144 = vector.broadcast %143 : vector<1x8xf32> to vector<8x8xf32>
    %145 = arith.addf %141, %144 : vector<8x8xf32>
    %c2 = arith.constant 2 : index
    %c0_124 = arith.constant 0 : index
    %c0_125 = arith.constant 0 : index
    %146 = vector.load %arg4[%c2, %c0_124, %c0_125] : memref<6x8x64xf32, #tpu.memory_space<vmem>>, vector<1x8x64xf32>
    %147 = vector.shape_cast %146 : vector<1x8x64xf32> to vector<8x64xf32>
    %cst_126 = arith.constant dense<0.000000e+00> : vector<8x64xf32>
    %148 = tpu.matmul %134, %147, %cst_126 {dimension_numbers = #tpu.dot_dimension_numbers<[1], [0], [0], [1], [0, 0, 1, 1], [], []>} : vector<8x8xf32>, vector<8x64xf32>, vector<8x64xf32> -> vector<8x64xf32>
    %c2_127 = arith.constant 2 : index
    %c0_128 = arith.constant 0 : index
    %c0_129 = arith.constant 0 : index
    %149 = vector.load %arg5[%c2_127, %c0_128, %c0_129] : memref<6x16x64xf32, #tpu.memory_space<vmem>>, vector<1x16x64xf32>
    %150 = vector.shape_cast %149 : vector<1x16x64xf32> to vector<16x64xf32>
    %cst_130 = arith.constant dense<0.000000e+00> : vector<8x64xf32>
    %151 = tpu.matmul %7, %150, %cst_130 {dimension_numbers = #tpu.dot_dimension_numbers<[1], [0], [0], [1], [0, 0, 1, 1], [], []>} : vector<8x16xf32>, vector<16x64xf32>, vector<8x64xf32> -> vector<8x64xf32>
    %152 = arith.addf %148, %151 : vector<8x64xf32>
    %c2_131 = arith.constant 2 : index
    %c0_132 = arith.constant 0 : index
    %c0_133 = arith.constant 0 : index
    %153 = vector.load %arg6[%c2_131, %c0_132, %c0_133] : memref<6x1x64xf32, #tpu.memory_space<vmem>>, vector<1x1x64xf32>
    %154 = vector.shape_cast %153 : vector<1x1x64xf32> to vector<1x64xf32>
    %155 = vector.broadcast %154 : vector<1x64xf32> to vector<8x64xf32>
    %156 = arith.addf %152, %155 : vector<8x64xf32>
    %cst_134 = arith.constant 0.000000e+00 : f32
    %157 = vector.broadcast %cst_134 : f32 to vector<8x64xf32>
    %158 = arith.maximumf %156, %157 : vector<8x64xf32>
    %c2_135 = arith.constant 2 : index
    %c0_136 = arith.constant 0 : index
    %c0_137 = arith.constant 0 : index
    %159 = vector.load %arg7[%c2_135, %c0_136, %c0_137] : memref<6x64x64xf32, #tpu.memory_space<vmem>>, vector<1x64x64xf32>
    %160 = vector.shape_cast %159 : vector<1x64x64xf32> to vector<64x64xf32>
    %cst_138 = arith.constant dense<0.000000e+00> : vector<8x64xf32>
    %161 = tpu.matmul %158, %160, %cst_138 {dimension_numbers = #tpu.dot_dimension_numbers<[1], [0], [0], [1], [0, 0, 1, 1], [], []>} : vector<8x64xf32>, vector<64x64xf32>, vector<8x64xf32> -> vector<8x64xf32>
    %c2_139 = arith.constant 2 : index
    %c0_140 = arith.constant 0 : index
    %c0_141 = arith.constant 0 : index
    %162 = vector.load %arg8[%c2_139, %c0_140, %c0_141] : memref<6x1x64xf32, #tpu.memory_space<vmem>>, vector<1x1x64xf32>
    %163 = vector.shape_cast %162 : vector<1x1x64xf32> to vector<1x64xf32>
    %164 = vector.broadcast %163 : vector<1x64xf32> to vector<8x64xf32>
    %165 = arith.addf %161, %164 : vector<8x64xf32>
    %cst_142 = arith.constant 0.000000e+00 : f32
    %166 = vector.broadcast %cst_142 : f32 to vector<8x64xf32>
    %167 = arith.maximumf %165, %166 : vector<8x64xf32>
    %c2_143 = arith.constant 2 : index
    %c0_144 = arith.constant 0 : index
    %c0_145 = arith.constant 0 : index
    %168 = vector.load %arg9[%c2_143, %c0_144, %c0_145] : memref<6x64x8xf32, #tpu.memory_space<vmem>>, vector<1x64x8xf32>
    %169 = vector.shape_cast %168 : vector<1x64x8xf32> to vector<64x8xf32>
    %cst_146 = arith.constant dense<0.000000e+00> : vector<8x8xf32>
    %170 = tpu.matmul %167, %169, %cst_146 {dimension_numbers = #tpu.dot_dimension_numbers<[1], [0], [0], [1], [0, 0, 1, 1], [], []>} : vector<8x64xf32>, vector<64x8xf32>, vector<8x8xf32> -> vector<8x8xf32>
    %c2_147 = arith.constant 2 : index
    %c0_148 = arith.constant 0 : index
    %c0_149 = arith.constant 0 : index
    %171 = vector.load %arg10[%c2_147, %c0_148, %c0_149] : memref<6x1x8xf32, #tpu.memory_space<vmem>>, vector<1x1x8xf32>
    %172 = vector.shape_cast %171 : vector<1x1x8xf32> to vector<1x8xf32>
    %173 = vector.broadcast %172 : vector<1x8xf32> to vector<8x8xf32>
    %174 = arith.addf %170, %173 : vector<8x8xf32>
    %175 = math.tanh %174 : vector<8x8xf32>
    %cst_150 = arith.constant 2.000000e+00 : f32
    %176 = vector.broadcast %cst_150 : f32 to vector<8x8xf32>
    %177 = arith.mulf %176, %175 : vector<8x8xf32>
    %c2_151 = arith.constant 2 : index
    %c0_152 = arith.constant 0 : index
    %c0_153 = arith.constant 0 : index
    %178 = vector.load %arg11[%c2_151, %c0_152, %c0_153] : memref<6x64x8xf32, #tpu.memory_space<vmem>>, vector<1x64x8xf32>
    %179 = vector.shape_cast %178 : vector<1x64x8xf32> to vector<64x8xf32>
    %cst_154 = arith.constant dense<0.000000e+00> : vector<8x8xf32>
    %180 = tpu.matmul %167, %179, %cst_154 {dimension_numbers = #tpu.dot_dimension_numbers<[1], [0], [0], [1], [0, 0, 1, 1], [], []>} : vector<8x64xf32>, vector<64x8xf32>, vector<8x8xf32> -> vector<8x8xf32>
    %c2_155 = arith.constant 2 : index
    %c0_156 = arith.constant 0 : index
    %c0_157 = arith.constant 0 : index
    %181 = vector.load %arg12[%c2_155, %c0_156, %c0_157] : memref<6x1x8xf32, #tpu.memory_space<vmem>>, vector<1x1x8xf32>
    %182 = vector.shape_cast %181 : vector<1x1x8xf32> to vector<1x8xf32>
    %183 = vector.broadcast %182 : vector<1x8xf32> to vector<8x8xf32>
    %184 = arith.addf %180, %183 : vector<8x8xf32>
    %185 = math.exp %177 : vector<8x8xf32>
    %186 = arith.mulf %145, %185 : vector<8x8xf32>
    %187 = arith.addf %186, %184 : vector<8x8xf32>
    %cst_158 = arith.constant dense<0.000000e+00> : vector<8xf32>
    %188 = vector.multi_reduction <add>, %177, %cst_158 [1] : vector<8x8xf32> to vector<8xf32>
    %189 = vector.shape_cast %188 : vector<8xf32> to vector<8x1xf32>
    %190 = arith.addf %123, %189 : vector<8x1xf32>
    %c2_159 = arith.constant 2 : index
    %c0_160 = arith.constant 0 : index
    %c0_161 = arith.constant 0 : index
    %191 = vector.load %arg13[%c2_159, %c0_160, %c0_161] : memref<6x8x8xf32, #tpu.memory_space<vmem>>, vector<1x8x8xf32>
    %192 = vector.shape_cast %191 : vector<1x8x8xf32> to vector<8x8xf32>
    %cst_162 = arith.constant dense<0.000000e+00> : vector<8x8xf32>
    %193 = tpu.matmul %134, %192, %cst_162 {dimension_numbers = #tpu.dot_dimension_numbers<[1], [0], [0], [1], [0, 0, 1, 1], [], []>} : vector<8x8xf32>, vector<8x8xf32>, vector<8x8xf32> -> vector<8x8xf32>
    %c2_163 = arith.constant 2 : index
    %c0_164 = arith.constant 0 : index
    %c0_165 = arith.constant 0 : index
    %194 = vector.load %arg15[%c2_163, %c0_164, %c0_165] : memref<6x8x8xf32, #tpu.memory_space<vmem>>, vector<1x8x8xf32>
    %195 = vector.shape_cast %194 : vector<1x8x8xf32> to vector<8x8xf32>
    %cst_166 = arith.constant dense<0.000000e+00> : vector<8x8xf32>
    %196 = tpu.matmul %187, %195, %cst_166 {dimension_numbers = #tpu.dot_dimension_numbers<[1], [0], [0], [1], [0, 0, 1, 1], [], []>} : vector<8x8xf32>, vector<8x8xf32>, vector<8x8xf32> -> vector<8x8xf32>
    %197 = arith.addf %193, %196 : vector<8x8xf32>
    %c2_167 = arith.constant 2 : index
    %c0_168 = arith.constant 0 : index
    %c0_169 = arith.constant 0 : index
    %198 = vector.load %arg17[%c2_167, %c0_168, %c0_169] : memref<6x1x8xf32, #tpu.memory_space<vmem>>, vector<1x1x8xf32>
    %199 = vector.shape_cast %198 : vector<1x1x8xf32> to vector<1x8xf32>
    %200 = vector.broadcast %199 : vector<1x8xf32> to vector<8x8xf32>
    %201 = arith.addf %197, %200 : vector<8x8xf32>
    %c2_170 = arith.constant 2 : index
    %c0_171 = arith.constant 0 : index
    %c0_172 = arith.constant 0 : index
    %202 = vector.load %arg14[%c2_170, %c0_171, %c0_172] : memref<6x8x8xf32, #tpu.memory_space<vmem>>, vector<1x8x8xf32>
    %203 = vector.shape_cast %202 : vector<1x8x8xf32> to vector<8x8xf32>
    %cst_173 = arith.constant dense<0.000000e+00> : vector<8x8xf32>
    %204 = tpu.matmul %134, %203, %cst_173 {dimension_numbers = #tpu.dot_dimension_numbers<[1], [0], [0], [1], [0, 0, 1, 1], [], []>} : vector<8x8xf32>, vector<8x8xf32>, vector<8x8xf32> -> vector<8x8xf32>
    %c2_174 = arith.constant 2 : index
    %c0_175 = arith.constant 0 : index
    %c0_176 = arith.constant 0 : index
    %205 = vector.load %arg16[%c2_174, %c0_175, %c0_176] : memref<6x8x8xf32, #tpu.memory_space<vmem>>, vector<1x8x8xf32>
    %206 = vector.shape_cast %205 : vector<1x8x8xf32> to vector<8x8xf32>
    %cst_177 = arith.constant dense<0.000000e+00> : vector<8x8xf32>
    %207 = tpu.matmul %187, %206, %cst_177 {dimension_numbers = #tpu.dot_dimension_numbers<[1], [0], [0], [1], [0, 0, 1, 1], [], []>} : vector<8x8xf32>, vector<8x8xf32>, vector<8x8xf32> -> vector<8x8xf32>
    %208 = arith.addf %204, %207 : vector<8x8xf32>
    %c2_178 = arith.constant 2 : index
    %c0_179 = arith.constant 0 : index
    %c0_180 = arith.constant 0 : index
    %209 = vector.load %arg18[%c2_178, %c0_179, %c0_180] : memref<6x1x8xf32, #tpu.memory_space<vmem>>, vector<1x1x8xf32>
    %210 = vector.shape_cast %209 : vector<1x1x8xf32> to vector<1x8xf32>
    %211 = vector.broadcast %210 : vector<1x8xf32> to vector<8x8xf32>
    %212 = arith.addf %208, %211 : vector<8x8xf32>
    %c3 = arith.constant 3 : index
    %c0_181 = arith.constant 0 : index
    %c0_182 = arith.constant 0 : index
    %213 = vector.load %arg4[%c3, %c0_181, %c0_182] : memref<6x8x64xf32, #tpu.memory_space<vmem>>, vector<1x8x64xf32>
    %214 = vector.shape_cast %213 : vector<1x8x64xf32> to vector<8x64xf32>
    %cst_183 = arith.constant dense<0.000000e+00> : vector<8x64xf32>
    %215 = tpu.matmul %201, %214, %cst_183 {dimension_numbers = #tpu.dot_dimension_numbers<[1], [0], [0], [1], [0, 0, 1, 1], [], []>} : vector<8x8xf32>, vector<8x64xf32>, vector<8x64xf32> -> vector<8x64xf32>
    %c3_184 = arith.constant 3 : index
    %c0_185 = arith.constant 0 : index
    %c0_186 = arith.constant 0 : index
    %216 = vector.load %arg5[%c3_184, %c0_185, %c0_186] : memref<6x16x64xf32, #tpu.memory_space<vmem>>, vector<1x16x64xf32>
    %217 = vector.shape_cast %216 : vector<1x16x64xf32> to vector<16x64xf32>
    %cst_187 = arith.constant dense<0.000000e+00> : vector<8x64xf32>
    %218 = tpu.matmul %7, %217, %cst_187 {dimension_numbers = #tpu.dot_dimension_numbers<[1], [0], [0], [1], [0, 0, 1, 1], [], []>} : vector<8x16xf32>, vector<16x64xf32>, vector<8x64xf32> -> vector<8x64xf32>
    %219 = arith.addf %215, %218 : vector<8x64xf32>
    %c3_188 = arith.constant 3 : index
    %c0_189 = arith.constant 0 : index
    %c0_190 = arith.constant 0 : index
    %220 = vector.load %arg6[%c3_188, %c0_189, %c0_190] : memref<6x1x64xf32, #tpu.memory_space<vmem>>, vector<1x1x64xf32>
    %221 = vector.shape_cast %220 : vector<1x1x64xf32> to vector<1x64xf32>
    %222 = vector.broadcast %221 : vector<1x64xf32> to vector<8x64xf32>
    %223 = arith.addf %219, %222 : vector<8x64xf32>
    %cst_191 = arith.constant 0.000000e+00 : f32
    %224 = vector.broadcast %cst_191 : f32 to vector<8x64xf32>
    %225 = arith.maximumf %223, %224 : vector<8x64xf32>
    %c3_192 = arith.constant 3 : index
    %c0_193 = arith.constant 0 : index
    %c0_194 = arith.constant 0 : index
    %226 = vector.load %arg7[%c3_192, %c0_193, %c0_194] : memref<6x64x64xf32, #tpu.memory_space<vmem>>, vector<1x64x64xf32>
    %227 = vector.shape_cast %226 : vector<1x64x64xf32> to vector<64x64xf32>
    %cst_195 = arith.constant dense<0.000000e+00> : vector<8x64xf32>
    %228 = tpu.matmul %225, %227, %cst_195 {dimension_numbers = #tpu.dot_dimension_numbers<[1], [0], [0], [1], [0, 0, 1, 1], [], []>} : vector<8x64xf32>, vector<64x64xf32>, vector<8x64xf32> -> vector<8x64xf32>
    %c3_196 = arith.constant 3 : index
    %c0_197 = arith.constant 0 : index
    %c0_198 = arith.constant 0 : index
    %229 = vector.load %arg8[%c3_196, %c0_197, %c0_198] : memref<6x1x64xf32, #tpu.memory_space<vmem>>, vector<1x1x64xf32>
    %230 = vector.shape_cast %229 : vector<1x1x64xf32> to vector<1x64xf32>
    %231 = vector.broadcast %230 : vector<1x64xf32> to vector<8x64xf32>
    %232 = arith.addf %228, %231 : vector<8x64xf32>
    %cst_199 = arith.constant 0.000000e+00 : f32
    %233 = vector.broadcast %cst_199 : f32 to vector<8x64xf32>
    %234 = arith.maximumf %232, %233 : vector<8x64xf32>
    %c3_200 = arith.constant 3 : index
    %c0_201 = arith.constant 0 : index
    %c0_202 = arith.constant 0 : index
    %235 = vector.load %arg9[%c3_200, %c0_201, %c0_202] : memref<6x64x8xf32, #tpu.memory_space<vmem>>, vector<1x64x8xf32>
    %236 = vector.shape_cast %235 : vector<1x64x8xf32> to vector<64x8xf32>
    %cst_203 = arith.constant dense<0.000000e+00> : vector<8x8xf32>
    %237 = tpu.matmul %234, %236, %cst_203 {dimension_numbers = #tpu.dot_dimension_numbers<[1], [0], [0], [1], [0, 0, 1, 1], [], []>} : vector<8x64xf32>, vector<64x8xf32>, vector<8x8xf32> -> vector<8x8xf32>
    %c3_204 = arith.constant 3 : index
    %c0_205 = arith.constant 0 : index
    %c0_206 = arith.constant 0 : index
    %238 = vector.load %arg10[%c3_204, %c0_205, %c0_206] : memref<6x1x8xf32, #tpu.memory_space<vmem>>, vector<1x1x8xf32>
    %239 = vector.shape_cast %238 : vector<1x1x8xf32> to vector<1x8xf32>
    %240 = vector.broadcast %239 : vector<1x8xf32> to vector<8x8xf32>
    %241 = arith.addf %237, %240 : vector<8x8xf32>
    %242 = math.tanh %241 : vector<8x8xf32>
    %cst_207 = arith.constant 2.000000e+00 : f32
    %243 = vector.broadcast %cst_207 : f32 to vector<8x8xf32>
    %244 = arith.mulf %243, %242 : vector<8x8xf32>
    %c3_208 = arith.constant 3 : index
    %c0_209 = arith.constant 0 : index
    %c0_210 = arith.constant 0 : index
    %245 = vector.load %arg11[%c3_208, %c0_209, %c0_210] : memref<6x64x8xf32, #tpu.memory_space<vmem>>, vector<1x64x8xf32>
    %246 = vector.shape_cast %245 : vector<1x64x8xf32> to vector<64x8xf32>
    %cst_211 = arith.constant dense<0.000000e+00> : vector<8x8xf32>
    %247 = tpu.matmul %234, %246, %cst_211 {dimension_numbers = #tpu.dot_dimension_numbers<[1], [0], [0], [1], [0, 0, 1, 1], [], []>} : vector<8x64xf32>, vector<64x8xf32>, vector<8x8xf32> -> vector<8x8xf32>
    %c3_212 = arith.constant 3 : index
    %c0_213 = arith.constant 0 : index
    %c0_214 = arith.constant 0 : index
    %248 = vector.load %arg12[%c3_212, %c0_213, %c0_214] : memref<6x1x8xf32, #tpu.memory_space<vmem>>, vector<1x1x8xf32>
    %249 = vector.shape_cast %248 : vector<1x1x8xf32> to vector<1x8xf32>
    %250 = vector.broadcast %249 : vector<1x8xf32> to vector<8x8xf32>
    %251 = arith.addf %247, %250 : vector<8x8xf32>
    %252 = math.exp %244 : vector<8x8xf32>
    %253 = arith.mulf %212, %252 : vector<8x8xf32>
    %254 = arith.addf %253, %251 : vector<8x8xf32>
    %cst_215 = arith.constant dense<0.000000e+00> : vector<8xf32>
    %255 = vector.multi_reduction <add>, %244, %cst_215 [1] : vector<8x8xf32> to vector<8xf32>
    %256 = vector.shape_cast %255 : vector<8xf32> to vector<8x1xf32>
    %257 = arith.addf %190, %256 : vector<8x1xf32>
    %c3_216 = arith.constant 3 : index
    %c0_217 = arith.constant 0 : index
    %c0_218 = arith.constant 0 : index
    %258 = vector.load %arg13[%c3_216, %c0_217, %c0_218] : memref<6x8x8xf32, #tpu.memory_space<vmem>>, vector<1x8x8xf32>
    %259 = vector.shape_cast %258 : vector<1x8x8xf32> to vector<8x8xf32>
    %cst_219 = arith.constant dense<0.000000e+00> : vector<8x8xf32>
    %260 = tpu.matmul %201, %259, %cst_219 {dimension_numbers = #tpu.dot_dimension_numbers<[1], [0], [0], [1], [0, 0, 1, 1], [], []>} : vector<8x8xf32>, vector<8x8xf32>, vector<8x8xf32> -> vector<8x8xf32>
    %c3_220 = arith.constant 3 : index
    %c0_221 = arith.constant 0 : index
    %c0_222 = arith.constant 0 : index
    %261 = vector.load %arg15[%c3_220, %c0_221, %c0_222] : memref<6x8x8xf32, #tpu.memory_space<vmem>>, vector<1x8x8xf32>
    %262 = vector.shape_cast %261 : vector<1x8x8xf32> to vector<8x8xf32>
    %cst_223 = arith.constant dense<0.000000e+00> : vector<8x8xf32>
    %263 = tpu.matmul %254, %262, %cst_223 {dimension_numbers = #tpu.dot_dimension_numbers<[1], [0], [0], [1], [0, 0, 1, 1], [], []>} : vector<8x8xf32>, vector<8x8xf32>, vector<8x8xf32> -> vector<8x8xf32>
    %264 = arith.addf %260, %263 : vector<8x8xf32>
    %c3_224 = arith.constant 3 : index
    %c0_225 = arith.constant 0 : index
    %c0_226 = arith.constant 0 : index
    %265 = vector.load %arg17[%c3_224, %c0_225, %c0_226] : memref<6x1x8xf32, #tpu.memory_space<vmem>>, vector<1x1x8xf32>
    %266 = vector.shape_cast %265 : vector<1x1x8xf32> to vector<1x8xf32>
    %267 = vector.broadcast %266 : vector<1x8xf32> to vector<8x8xf32>
    %268 = arith.addf %264, %267 : vector<8x8xf32>
    %c3_227 = arith.constant 3 : index
    %c0_228 = arith.constant 0 : index
    %c0_229 = arith.constant 0 : index
    %269 = vector.load %arg14[%c3_227, %c0_228, %c0_229] : memref<6x8x8xf32, #tpu.memory_space<vmem>>, vector<1x8x8xf32>
    %270 = vector.shape_cast %269 : vector<1x8x8xf32> to vector<8x8xf32>
    %cst_230 = arith.constant dense<0.000000e+00> : vector<8x8xf32>
    %271 = tpu.matmul %201, %270, %cst_230 {dimension_numbers = #tpu.dot_dimension_numbers<[1], [0], [0], [1], [0, 0, 1, 1], [], []>} : vector<8x8xf32>, vector<8x8xf32>, vector<8x8xf32> -> vector<8x8xf32>
    %c3_231 = arith.constant 3 : index
    %c0_232 = arith.constant 0 : index
    %c0_233 = arith.constant 0 : index
    %272 = vector.load %arg16[%c3_231, %c0_232, %c0_233] : memref<6x8x8xf32, #tpu.memory_space<vmem>>, vector<1x8x8xf32>
    %273 = vector.shape_cast %272 : vector<1x8x8xf32> to vector<8x8xf32>
    %cst_234 = arith.constant dense<0.000000e+00> : vector<8x8xf32>
    %274 = tpu.matmul %254, %273, %cst_234 {dimension_numbers = #tpu.dot_dimension_numbers<[1], [0], [0], [1], [0, 0, 1, 1], [], []>} : vector<8x8xf32>, vector<8x8xf32>, vector<8x8xf32> -> vector<8x8xf32>
    %275 = arith.addf %271, %274 : vector<8x8xf32>
    %c3_235 = arith.constant 3 : index
    %c0_236 = arith.constant 0 : index
    %c0_237 = arith.constant 0 : index
    %276 = vector.load %arg18[%c3_235, %c0_236, %c0_237] : memref<6x1x8xf32, #tpu.memory_space<vmem>>, vector<1x1x8xf32>
    %277 = vector.shape_cast %276 : vector<1x1x8xf32> to vector<1x8xf32>
    %278 = vector.broadcast %277 : vector<1x8xf32> to vector<8x8xf32>
    %279 = arith.addf %275, %278 : vector<8x8xf32>
    %c4 = arith.constant 4 : index
    %c0_238 = arith.constant 0 : index
    %c0_239 = arith.constant 0 : index
    %280 = vector.load %arg4[%c4, %c0_238, %c0_239] : memref<6x8x64xf32, #tpu.memory_space<vmem>>, vector<1x8x64xf32>
    %281 = vector.shape_cast %280 : vector<1x8x64xf32> to vector<8x64xf32>
    %cst_240 = arith.constant dense<0.000000e+00> : vector<8x64xf32>
    %282 = tpu.matmul %268, %281, %cst_240 {dimension_numbers = #tpu.dot_dimension_numbers<[1], [0], [0], [1], [0, 0, 1, 1], [], []>} : vector<8x8xf32>, vector<8x64xf32>, vector<8x64xf32> -> vector<8x64xf32>
    %c4_241 = arith.constant 4 : index
    %c0_242 = arith.constant 0 : index
    %c0_243 = arith.constant 0 : index
    %283 = vector.load %arg5[%c4_241, %c0_242, %c0_243] : memref<6x16x64xf32, #tpu.memory_space<vmem>>, vector<1x16x64xf32>
    %284 = vector.shape_cast %283 : vector<1x16x64xf32> to vector<16x64xf32>
    %cst_244 = arith.constant dense<0.000000e+00> : vector<8x64xf32>
    %285 = tpu.matmul %7, %284, %cst_244 {dimension_numbers = #tpu.dot_dimension_numbers<[1], [0], [0], [1], [0, 0, 1, 1], [], []>} : vector<8x16xf32>, vector<16x64xf32>, vector<8x64xf32> -> vector<8x64xf32>
    %286 = arith.addf %282, %285 : vector<8x64xf32>
    %c4_245 = arith.constant 4 : index
    %c0_246 = arith.constant 0 : index
    %c0_247 = arith.constant 0 : index
    %287 = vector.load %arg6[%c4_245, %c0_246, %c0_247] : memref<6x1x64xf32, #tpu.memory_space<vmem>>, vector<1x1x64xf32>
    %288 = vector.shape_cast %287 : vector<1x1x64xf32> to vector<1x64xf32>
    %289 = vector.broadcast %288 : vector<1x64xf32> to vector<8x64xf32>
    %290 = arith.addf %286, %289 : vector<8x64xf32>
    %cst_248 = arith.constant 0.000000e+00 : f32
    %291 = vector.broadcast %cst_248 : f32 to vector<8x64xf32>
    %292 = arith.maximumf %290, %291 : vector<8x64xf32>
    %c4_249 = arith.constant 4 : index
    %c0_250 = arith.constant 0 : index
    %c0_251 = arith.constant 0 : index
    %293 = vector.load %arg7[%c4_249, %c0_250, %c0_251] : memref<6x64x64xf32, #tpu.memory_space<vmem>>, vector<1x64x64xf32>
    %294 = vector.shape_cast %293 : vector<1x64x64xf32> to vector<64x64xf32>
    %cst_252 = arith.constant dense<0.000000e+00> : vector<8x64xf32>
    %295 = tpu.matmul %292, %294, %cst_252 {dimension_numbers = #tpu.dot_dimension_numbers<[1], [0], [0], [1], [0, 0, 1, 1], [], []>} : vector<8x64xf32>, vector<64x64xf32>, vector<8x64xf32> -> vector<8x64xf32>
    %c4_253 = arith.constant 4 : index
    %c0_254 = arith.constant 0 : index
    %c0_255 = arith.constant 0 : index
    %296 = vector.load %arg8[%c4_253, %c0_254, %c0_255] : memref<6x1x64xf32, #tpu.memory_space<vmem>>, vector<1x1x64xf32>
    %297 = vector.shape_cast %296 : vector<1x1x64xf32> to vector<1x64xf32>
    %298 = vector.broadcast %297 : vector<1x64xf32> to vector<8x64xf32>
    %299 = arith.addf %295, %298 : vector<8x64xf32>
    %cst_256 = arith.constant 0.000000e+00 : f32
    %300 = vector.broadcast %cst_256 : f32 to vector<8x64xf32>
    %301 = arith.maximumf %299, %300 : vector<8x64xf32>
    %c4_257 = arith.constant 4 : index
    %c0_258 = arith.constant 0 : index
    %c0_259 = arith.constant 0 : index
    %302 = vector.load %arg9[%c4_257, %c0_258, %c0_259] : memref<6x64x8xf32, #tpu.memory_space<vmem>>, vector<1x64x8xf32>
    %303 = vector.shape_cast %302 : vector<1x64x8xf32> to vector<64x8xf32>
    %cst_260 = arith.constant dense<0.000000e+00> : vector<8x8xf32>
    %304 = tpu.matmul %301, %303, %cst_260 {dimension_numbers = #tpu.dot_dimension_numbers<[1], [0], [0], [1], [0, 0, 1, 1], [], []>} : vector<8x64xf32>, vector<64x8xf32>, vector<8x8xf32> -> vector<8x8xf32>
    %c4_261 = arith.constant 4 : index
    %c0_262 = arith.constant 0 : index
    %c0_263 = arith.constant 0 : index
    %305 = vector.load %arg10[%c4_261, %c0_262, %c0_263] : memref<6x1x8xf32, #tpu.memory_space<vmem>>, vector<1x1x8xf32>
    %306 = vector.shape_cast %305 : vector<1x1x8xf32> to vector<1x8xf32>
    %307 = vector.broadcast %306 : vector<1x8xf32> to vector<8x8xf32>
    %308 = arith.addf %304, %307 : vector<8x8xf32>
    %309 = math.tanh %308 : vector<8x8xf32>
    %cst_264 = arith.constant 2.000000e+00 : f32
    %310 = vector.broadcast %cst_264 : f32 to vector<8x8xf32>
    %311 = arith.mulf %310, %309 : vector<8x8xf32>
    %c4_265 = arith.constant 4 : index
    %c0_266 = arith.constant 0 : index
    %c0_267 = arith.constant 0 : index
    %312 = vector.load %arg11[%c4_265, %c0_266, %c0_267] : memref<6x64x8xf32, #tpu.memory_space<vmem>>, vector<1x64x8xf32>
    %313 = vector.shape_cast %312 : vector<1x64x8xf32> to vector<64x8xf32>
    %cst_268 = arith.constant dense<0.000000e+00> : vector<8x8xf32>
    %314 = tpu.matmul %301, %313, %cst_268 {dimension_numbers = #tpu.dot_dimension_numbers<[1], [0], [0], [1], [0, 0, 1, 1], [], []>} : vector<8x64xf32>, vector<64x8xf32>, vector<8x8xf32> -> vector<8x8xf32>
    %c4_269 = arith.constant 4 : index
    %c0_270 = arith.constant 0 : index
    %c0_271 = arith.constant 0 : index
    %315 = vector.load %arg12[%c4_269, %c0_270, %c0_271] : memref<6x1x8xf32, #tpu.memory_space<vmem>>, vector<1x1x8xf32>
    %316 = vector.shape_cast %315 : vector<1x1x8xf32> to vector<1x8xf32>
    %317 = vector.broadcast %316 : vector<1x8xf32> to vector<8x8xf32>
    %318 = arith.addf %314, %317 : vector<8x8xf32>
    %319 = math.exp %311 : vector<8x8xf32>
    %320 = arith.mulf %279, %319 : vector<8x8xf32>
    %321 = arith.addf %320, %318 : vector<8x8xf32>
    %cst_272 = arith.constant dense<0.000000e+00> : vector<8xf32>
    %322 = vector.multi_reduction <add>, %311, %cst_272 [1] : vector<8x8xf32> to vector<8xf32>
    %323 = vector.shape_cast %322 : vector<8xf32> to vector<8x1xf32>
    %324 = arith.addf %257, %323 : vector<8x1xf32>
    %c4_273 = arith.constant 4 : index
    %c0_274 = arith.constant 0 : index
    %c0_275 = arith.constant 0 : index
    %325 = vector.load %arg13[%c4_273, %c0_274, %c0_275] : memref<6x8x8xf32, #tpu.memory_space<vmem>>, vector<1x8x8xf32>
    %326 = vector.shape_cast %325 : vector<1x8x8xf32> to vector<8x8xf32>
    %cst_276 = arith.constant dense<0.000000e+00> : vector<8x8xf32>
    %327 = tpu.matmul %268, %326, %cst_276 {dimension_numbers = #tpu.dot_dimension_numbers<[1], [0], [0], [1], [0, 0, 1, 1], [], []>} : vector<8x8xf32>, vector<8x8xf32>, vector<8x8xf32> -> vector<8x8xf32>
    %c4_277 = arith.constant 4 : index
    %c0_278 = arith.constant 0 : index
    %c0_279 = arith.constant 0 : index
    %328 = vector.load %arg15[%c4_277, %c0_278, %c0_279] : memref<6x8x8xf32, #tpu.memory_space<vmem>>, vector<1x8x8xf32>
    %329 = vector.shape_cast %328 : vector<1x8x8xf32> to vector<8x8xf32>
    %cst_280 = arith.constant dense<0.000000e+00> : vector<8x8xf32>
    %330 = tpu.matmul %321, %329, %cst_280 {dimension_numbers = #tpu.dot_dimension_numbers<[1], [0], [0], [1], [0, 0, 1, 1], [], []>} : vector<8x8xf32>, vector<8x8xf32>, vector<8x8xf32> -> vector<8x8xf32>
    %331 = arith.addf %327, %330 : vector<8x8xf32>
    %c4_281 = arith.constant 4 : index
    %c0_282 = arith.constant 0 : index
    %c0_283 = arith.constant 0 : index
    %332 = vector.load %arg17[%c4_281, %c0_282, %c0_283] : memref<6x1x8xf32, #tpu.memory_space<vmem>>, vector<1x1x8xf32>
    %333 = vector.shape_cast %332 : vector<1x1x8xf32> to vector<1x8xf32>
    %334 = vector.broadcast %333 : vector<1x8xf32> to vector<8x8xf32>
    %335 = arith.addf %331, %334 : vector<8x8xf32>
    %c4_284 = arith.constant 4 : index
    %c0_285 = arith.constant 0 : index
    %c0_286 = arith.constant 0 : index
    %336 = vector.load %arg14[%c4_284, %c0_285, %c0_286] : memref<6x8x8xf32, #tpu.memory_space<vmem>>, vector<1x8x8xf32>
    %337 = vector.shape_cast %336 : vector<1x8x8xf32> to vector<8x8xf32>
    %cst_287 = arith.constant dense<0.000000e+00> : vector<8x8xf32>
    %338 = tpu.matmul %268, %337, %cst_287 {dimension_numbers = #tpu.dot_dimension_numbers<[1], [0], [0], [1], [0, 0, 1, 1], [], []>} : vector<8x8xf32>, vector<8x8xf32>, vector<8x8xf32> -> vector<8x8xf32>
    %c4_288 = arith.constant 4 : index
    %c0_289 = arith.constant 0 : index
    %c0_290 = arith.constant 0 : index
    %339 = vector.load %arg16[%c4_288, %c0_289, %c0_290] : memref<6x8x8xf32, #tpu.memory_space<vmem>>, vector<1x8x8xf32>
    %340 = vector.shape_cast %339 : vector<1x8x8xf32> to vector<8x8xf32>
    %cst_291 = arith.constant dense<0.000000e+00> : vector<8x8xf32>
    %341 = tpu.matmul %321, %340, %cst_291 {dimension_numbers = #tpu.dot_dimension_numbers<[1], [0], [0], [1], [0, 0, 1, 1], [], []>} : vector<8x8xf32>, vector<8x8xf32>, vector<8x8xf32> -> vector<8x8xf32>
    %342 = arith.addf %338, %341 : vector<8x8xf32>
    %c4_292 = arith.constant 4 : index
    %c0_293 = arith.constant 0 : index
    %c0_294 = arith.constant 0 : index
    %343 = vector.load %arg18[%c4_292, %c0_293, %c0_294] : memref<6x1x8xf32, #tpu.memory_space<vmem>>, vector<1x1x8xf32>
    %344 = vector.shape_cast %343 : vector<1x1x8xf32> to vector<1x8xf32>
    %345 = vector.broadcast %344 : vector<1x8xf32> to vector<8x8xf32>
    %346 = arith.addf %342, %345 : vector<8x8xf32>
    %c5 = arith.constant 5 : index
    %c0_295 = arith.constant 0 : index
    %c0_296 = arith.constant 0 : index
    %347 = vector.load %arg4[%c5, %c0_295, %c0_296] : memref<6x8x64xf32, #tpu.memory_space<vmem>>, vector<1x8x64xf32>
    %348 = vector.shape_cast %347 : vector<1x8x64xf32> to vector<8x64xf32>
    %cst_297 = arith.constant dense<0.000000e+00> : vector<8x64xf32>
    %349 = tpu.matmul %335, %348, %cst_297 {dimension_numbers = #tpu.dot_dimension_numbers<[1], [0], [0], [1], [0, 0, 1, 1], [], []>} : vector<8x8xf32>, vector<8x64xf32>, vector<8x64xf32> -> vector<8x64xf32>
    %c5_298 = arith.constant 5 : index
    %c0_299 = arith.constant 0 : index
    %c0_300 = arith.constant 0 : index
    %350 = vector.load %arg5[%c5_298, %c0_299, %c0_300] : memref<6x16x64xf32, #tpu.memory_space<vmem>>, vector<1x16x64xf32>
    %351 = vector.shape_cast %350 : vector<1x16x64xf32> to vector<16x64xf32>
    %cst_301 = arith.constant dense<0.000000e+00> : vector<8x64xf32>
    %352 = tpu.matmul %7, %351, %cst_301 {dimension_numbers = #tpu.dot_dimension_numbers<[1], [0], [0], [1], [0, 0, 1, 1], [], []>} : vector<8x16xf32>, vector<16x64xf32>, vector<8x64xf32> -> vector<8x64xf32>
    %353 = arith.addf %349, %352 : vector<8x64xf32>
    %c5_302 = arith.constant 5 : index
    %c0_303 = arith.constant 0 : index
    %c0_304 = arith.constant 0 : index
    %354 = vector.load %arg6[%c5_302, %c0_303, %c0_304] : memref<6x1x64xf32, #tpu.memory_space<vmem>>, vector<1x1x64xf32>
    %355 = vector.shape_cast %354 : vector<1x1x64xf32> to vector<1x64xf32>
    %356 = vector.broadcast %355 : vector<1x64xf32> to vector<8x64xf32>
    %357 = arith.addf %353, %356 : vector<8x64xf32>
    %cst_305 = arith.constant 0.000000e+00 : f32
    %358 = vector.broadcast %cst_305 : f32 to vector<8x64xf32>
    %359 = arith.maximumf %357, %358 : vector<8x64xf32>
    %c5_306 = arith.constant 5 : index
    %c0_307 = arith.constant 0 : index
    %c0_308 = arith.constant 0 : index
    %360 = vector.load %arg7[%c5_306, %c0_307, %c0_308] : memref<6x64x64xf32, #tpu.memory_space<vmem>>, vector<1x64x64xf32>
    %361 = vector.shape_cast %360 : vector<1x64x64xf32> to vector<64x64xf32>
    %cst_309 = arith.constant dense<0.000000e+00> : vector<8x64xf32>
    %362 = tpu.matmul %359, %361, %cst_309 {dimension_numbers = #tpu.dot_dimension_numbers<[1], [0], [0], [1], [0, 0, 1, 1], [], []>} : vector<8x64xf32>, vector<64x64xf32>, vector<8x64xf32> -> vector<8x64xf32>
    %c5_310 = arith.constant 5 : index
    %c0_311 = arith.constant 0 : index
    %c0_312 = arith.constant 0 : index
    %363 = vector.load %arg8[%c5_310, %c0_311, %c0_312] : memref<6x1x64xf32, #tpu.memory_space<vmem>>, vector<1x1x64xf32>
    %364 = vector.shape_cast %363 : vector<1x1x64xf32> to vector<1x64xf32>
    %365 = vector.broadcast %364 : vector<1x64xf32> to vector<8x64xf32>
    %366 = arith.addf %362, %365 : vector<8x64xf32>
    %cst_313 = arith.constant 0.000000e+00 : f32
    %367 = vector.broadcast %cst_313 : f32 to vector<8x64xf32>
    %368 = arith.maximumf %366, %367 : vector<8x64xf32>
    %c5_314 = arith.constant 5 : index
    %c0_315 = arith.constant 0 : index
    %c0_316 = arith.constant 0 : index
    %369 = vector.load %arg9[%c5_314, %c0_315, %c0_316] : memref<6x64x8xf32, #tpu.memory_space<vmem>>, vector<1x64x8xf32>
    %370 = vector.shape_cast %369 : vector<1x64x8xf32> to vector<64x8xf32>
    %cst_317 = arith.constant dense<0.000000e+00> : vector<8x8xf32>
    %371 = tpu.matmul %368, %370, %cst_317 {dimension_numbers = #tpu.dot_dimension_numbers<[1], [0], [0], [1], [0, 0, 1, 1], [], []>} : vector<8x64xf32>, vector<64x8xf32>, vector<8x8xf32> -> vector<8x8xf32>
    %c5_318 = arith.constant 5 : index
    %c0_319 = arith.constant 0 : index
    %c0_320 = arith.constant 0 : index
    %372 = vector.load %arg10[%c5_318, %c0_319, %c0_320] : memref<6x1x8xf32, #tpu.memory_space<vmem>>, vector<1x1x8xf32>
    %373 = vector.shape_cast %372 : vector<1x1x8xf32> to vector<1x8xf32>
    %374 = vector.broadcast %373 : vector<1x8xf32> to vector<8x8xf32>
    %375 = arith.addf %371, %374 : vector<8x8xf32>
    %376 = math.tanh %375 : vector<8x8xf32>
    %cst_321 = arith.constant 2.000000e+00 : f32
    %377 = vector.broadcast %cst_321 : f32 to vector<8x8xf32>
    %378 = arith.mulf %377, %376 : vector<8x8xf32>
    %c5_322 = arith.constant 5 : index
    %c0_323 = arith.constant 0 : index
    %c0_324 = arith.constant 0 : index
    %379 = vector.load %arg11[%c5_322, %c0_323, %c0_324] : memref<6x64x8xf32, #tpu.memory_space<vmem>>, vector<1x64x8xf32>
    %380 = vector.shape_cast %379 : vector<1x64x8xf32> to vector<64x8xf32>
    %cst_325 = arith.constant dense<0.000000e+00> : vector<8x8xf32>
    %381 = tpu.matmul %368, %380, %cst_325 {dimension_numbers = #tpu.dot_dimension_numbers<[1], [0], [0], [1], [0, 0, 1, 1], [], []>} : vector<8x64xf32>, vector<64x8xf32>, vector<8x8xf32> -> vector<8x8xf32>
    %c5_326 = arith.constant 5 : index
    %c0_327 = arith.constant 0 : index
    %c0_328 = arith.constant 0 : index
    %382 = vector.load %arg12[%c5_326, %c0_327, %c0_328] : memref<6x1x8xf32, #tpu.memory_space<vmem>>, vector<1x1x8xf32>
    %383 = vector.shape_cast %382 : vector<1x1x8xf32> to vector<1x8xf32>
    %384 = vector.broadcast %383 : vector<1x8xf32> to vector<8x8xf32>
    %385 = arith.addf %381, %384 : vector<8x8xf32>
    %386 = math.exp %378 : vector<8x8xf32>
    %387 = arith.mulf %346, %386 : vector<8x8xf32>
    %388 = arith.addf %387, %385 : vector<8x8xf32>
    %cst_329 = arith.constant dense<0.000000e+00> : vector<8xf32>
    %389 = vector.multi_reduction <add>, %378, %cst_329 [1] : vector<8x8xf32> to vector<8xf32>
    %390 = vector.shape_cast %389 : vector<8xf32> to vector<8x1xf32>
    %391 = arith.addf %324, %390 : vector<8x1xf32>
    %c5_330 = arith.constant 5 : index
    %c0_331 = arith.constant 0 : index
    %c0_332 = arith.constant 0 : index
    %392 = vector.load %arg13[%c5_330, %c0_331, %c0_332] : memref<6x8x8xf32, #tpu.memory_space<vmem>>, vector<1x8x8xf32>
    %393 = vector.shape_cast %392 : vector<1x8x8xf32> to vector<8x8xf32>
    %cst_333 = arith.constant dense<0.000000e+00> : vector<8x8xf32>
    %394 = tpu.matmul %335, %393, %cst_333 {dimension_numbers = #tpu.dot_dimension_numbers<[1], [0], [0], [1], [0, 0, 1, 1], [], []>} : vector<8x8xf32>, vector<8x8xf32>, vector<8x8xf32> -> vector<8x8xf32>
    %c5_334 = arith.constant 5 : index
    %c0_335 = arith.constant 0 : index
    %c0_336 = arith.constant 0 : index
    %395 = vector.load %arg15[%c5_334, %c0_335, %c0_336] : memref<6x8x8xf32, #tpu.memory_space<vmem>>, vector<1x8x8xf32>
    %396 = vector.shape_cast %395 : vector<1x8x8xf32> to vector<8x8xf32>
    %cst_337 = arith.constant dense<0.000000e+00> : vector<8x8xf32>
    %397 = tpu.matmul %388, %396, %cst_337 {dimension_numbers = #tpu.dot_dimension_numbers<[1], [0], [0], [1], [0, 0, 1, 1], [], []>} : vector<8x8xf32>, vector<8x8xf32>, vector<8x8xf32> -> vector<8x8xf32>
    %398 = arith.addf %394, %397 : vector<8x8xf32>
    %c5_338 = arith.constant 5 : index
    %c0_339 = arith.constant 0 : index
    %c0_340 = arith.constant 0 : index
    %399 = vector.load %arg17[%c5_338, %c0_339, %c0_340] : memref<6x1x8xf32, #tpu.memory_space<vmem>>, vector<1x1x8xf32>
    %400 = vector.shape_cast %399 : vector<1x1x8xf32> to vector<1x8xf32>
    %401 = vector.broadcast %400 : vector<1x8xf32> to vector<8x8xf32>
    %402 = arith.addf %398, %401 : vector<8x8xf32>
    %c5_341 = arith.constant 5 : index
    %c0_342 = arith.constant 0 : index
    %c0_343 = arith.constant 0 : index
    %403 = vector.load %arg14[%c5_341, %c0_342, %c0_343] : memref<6x8x8xf32, #tpu.memory_space<vmem>>, vector<1x8x8xf32>
    %404 = vector.shape_cast %403 : vector<1x8x8xf32> to vector<8x8xf32>
    %cst_344 = arith.constant dense<0.000000e+00> : vector<8x8xf32>
    %405 = tpu.matmul %335, %404, %cst_344 {dimension_numbers = #tpu.dot_dimension_numbers<[1], [0], [0], [1], [0, 0, 1, 1], [], []>} : vector<8x8xf32>, vector<8x8xf32>, vector<8x8xf32> -> vector<8x8xf32>
    %c5_345 = arith.constant 5 : index
    %c0_346 = arith.constant 0 : index
    %c0_347 = arith.constant 0 : index
    %406 = vector.load %arg16[%c5_345, %c0_346, %c0_347] : memref<6x8x8xf32, #tpu.memory_space<vmem>>, vector<1x8x8xf32>
    %407 = vector.shape_cast %406 : vector<1x8x8xf32> to vector<8x8xf32>
    %cst_348 = arith.constant dense<0.000000e+00> : vector<8x8xf32>
    %408 = tpu.matmul %388, %407, %cst_348 {dimension_numbers = #tpu.dot_dimension_numbers<[1], [0], [0], [1], [0, 0, 1, 1], [], []>} : vector<8x8xf32>, vector<8x8xf32>, vector<8x8xf32> -> vector<8x8xf32>
    %409 = arith.addf %405, %408 : vector<8x8xf32>
    %c5_349 = arith.constant 5 : index
    %c0_350 = arith.constant 0 : index
    %c0_351 = arith.constant 0 : index
    %410 = vector.load %arg18[%c5_349, %c0_350, %c0_351] : memref<6x1x8xf32, #tpu.memory_space<vmem>>, vector<1x1x8xf32>
    %411 = vector.shape_cast %410 : vector<1x1x8xf32> to vector<1x8xf32>
    %412 = vector.broadcast %411 : vector<1x8xf32> to vector<8x8xf32>
    %413 = arith.addf %409, %412 : vector<8x8xf32>
    %414 = tpu.concatenate %402, %413 in 1 : vector<8x8xf32>, vector<8x8xf32> -> vector<8x16xf32>
    %c0_352 = arith.constant 0 : index
    %c0_353 = arith.constant 0 : index
    %415 = vector.load %arg20[%c0_352, %c0_353] : memref<8x16xf32, #tpu.memory_space<vmem>>, vector<8x16xf32>
    tpu.vector_store %arg20[%c0_352, %c0_353], %414 {strides = array<i32>} : memref<8x16xf32, #tpu.memory_space<vmem>>, vector<8x16xf32>,
    %c0_354 = arith.constant 0 : index
    %c0_355 = arith.constant 0 : index
    %416 = vector.load %arg19[%c0_354, %c0_355] : memref<1x1xf32, #tpu.memory_space<vmem>>, vector<1x1xf32>
    %417 = vector.broadcast %416 : vector<1x1xf32> to vector<8x1xf32>
    %418 = arith.addf %391, %417 : vector<8x1xf32>
    %c0_356 = arith.constant 0 : index
    %c0_357 = arith.constant 0 : index
    %419 = vector.load %arg21[%c0_356, %c0_357] : memref<8x1xf32, #tpu.memory_space<vmem>>, vector<8x1xf32>
    tpu.vector_store %arg21[%c0_356, %c0_357], %418 {strides = array<i32>} : memref<8x1xf32, #tpu.memory_space<vmem>>, vector<8x1xf32>,
    return
  }
}

</mosaic_0001>

<llo_original>
// kernel: tpu_custom_call.1
$region0: #{tpu_custom_call.1}
  #allocation0 [shape = 'u32[]', space=smem, size = 0x4, offset = 0x4, fixed_abs, tag = 'smem constant byte address 0x4 - core index']
  #allocation1 [shape = 'u32[144,128]{1,0:T(1,128)}', space=vmem, size = 0x12000, scoped, tag = 'internal scratch']
  #allocation2 [shape = 'f32[1,1]{1,0:T(1,128)S(1)}', space=vmem, size = 0x200, scoped, tag = 'scoped memory for tpu_custom_call.1']
  %s0 = inlined_call_operand.vmem [shape: f32[8,16], index: 0, kind: input, shape index: {}]
  %s1 = inlined_call_operand.vmem [shape: f32[8,32], index: 1, kind: input, shape index: {}]
  %s2 = inlined_call_operand.vmem [shape: f32[32,16], index: 2, kind: input, shape index: {}]
  %s3 = inlined_call_operand.vmem [shape: f32[1,16], index: 3, kind: input, shape index: {}]
  %s4 = inlined_call_operand.vmem [shape: f32[6,8,64], index: 4, kind: input, shape index: {}]
  %s5 = inlined_call_operand.vmem [shape: f32[6,16,64], index: 5, kind: input, shape index: {}]
  %s6 = inlined_call_operand.vmem [shape: f32[6,1,64], index: 6, kind: input, shape index: {}]
  %s7 = inlined_call_operand.vmem [shape: f32[6,64,64], index: 7, kind: input, shape index: {}]
  %s8 = inlined_call_operand.vmem [shape: f32[6,1,64], index: 8, kind: input, shape index: {}]
  %s9 = inlined_call_operand.vmem [shape: f32[6,64,8], index: 9, kind: input, shape index: {}]
  %s10 = inlined_call_operand.vmem [shape: f32[6,1,8], index: 10, kind: input, shape index: {}]
  %s11 = inlined_call_operand.vmem [shape: f32[6,64,8], index: 11, kind: input, shape index: {}]
  %s12 = inlined_call_operand.vmem [shape: f32[6,1,8], index: 12, kind: input, shape index: {}]
  %s13 = inlined_call_operand.vmem [shape: f32[6,8,8], index: 13, kind: input, shape index: {}]
  %s14 = inlined_call_operand.vmem [shape: f32[6,8,8], index: 14, kind: input, shape index: {}]
  %s15 = inlined_call_operand.vmem [shape: f32[6,8,8], index: 15, kind: input, shape index: {}]
  %s16 = inlined_call_operand.vmem [shape: f32[6,8,8], index: 16, kind: input, shape index: {}]
  %s17 = inlined_call_operand.vmem [shape: f32[6,1,8], index: 17, kind: input, shape index: {}]
  %s18 = inlined_call_operand.vmem [shape: f32[6,1,8], index: 18, kind: input, shape index: {}]
  %s19 = inlined_call_operand.<no memory space> [shape: f32[1,1], index: 19, kind: input, shape index: {}]
  %s20 = inlined_call_operand.hbm [shape: f32[8,16], index: 20, kind: output, shape index: {0}]
  %s21 = inlined_call_operand.vmem [shape: f32[8,1], index: 21, kind: output, shape index: {1}]
  %22 = xla_tuple %s20, %s21
  %s23 = sld [smem:[#allocation0]]
  $region98: #{tpu_custom_call.1} parent=0
    _
  %s25 = ssub.s32 1, %s23
  %s26 = scalar_select 0, %s25, %s23
  %v27 = vstv %s19
  %28 = vst [vmem:[#allocation2] sm:$0x1] %v27
  $region1: #{tpu_custom_call.1} parent=0
    #allocation3 [shape = 'u8[4096]{0}', space=vmem, size = 0x1000, scoped, tag = 'output window, operand 0, single buffered']
    #allocation4 [shape = 's32[1]{0}', space=sflag, size = 0x4, scoped, tag = 'scoped memory for tpu_custom_call.1']
    %29 = vsyncpa [#allocation4], 0
    // Predicated region
    $region2: #{tpu_custom_call.1} parent=1 // pred_check
      _
    $region3: #{tpu_custom_call.1} parent=1 // pred_check_branch
      %31 = sbr.rel (0) target = $region5
    $region4: #{tpu_custom_call.1} parent=1 // pred_region
      _
    $region5: #{tpu_custom_call.1} parent=1 // pred_fallthru
      _
    // Predicated region
    $region6: #{tpu_custom_call.1} parent=1 // pred_check
      _
    $region7: #{tpu_custom_call.1} parent=1 // pred_check_branch
      %33 = sbr.rel (0) target = $region9
    $region8: #{tpu_custom_call.1} parent=1 // pred_region
      _
    $region9: #{tpu_custom_call.1} parent=1 // pred_fallthru
      _
    // Predicated region
    $region10: #{tpu_custom_call.1} parent=1 // pred_check
      _
    $region11: #{tpu_custom_call.1} parent=1 // pred_check_branch
      %35 = sbr.rel (0) target = $region13
    $region12: #{tpu_custom_call.1} parent=1 // pred_region
      _
    $region13: #{tpu_custom_call.1} parent=1 // pred_fallthru
      _
    // Predicated region
    $region14: #{tpu_custom_call.1} parent=1 // pred_check
      _
    $region15: #{tpu_custom_call.1} parent=1 // pred_check_branch
      %37 = sbr.rel (0) target = $region17
    $region16: #{tpu_custom_call.1} parent=1 // pred_region
      _
    $region17: #{tpu_custom_call.1} parent=1 // pred_fallthru
      _
    // Predicated region
    $region18: #{tpu_custom_call.1} parent=1 // pred_check
      _
    $region19: #{tpu_custom_call.1} parent=1 // pred_check_branch
      %39 = sbr.rel (0) target = $region21
    $region20: #{tpu_custom_call.1} parent=1 // pred_region
      _
    $region21: #{tpu_custom_call.1} parent=1 // pred_fallthru
      _
    // Predicated region
    $region22: #{tpu_custom_call.1} parent=1 // pred_check
      _
    $region23: #{tpu_custom_call.1} parent=1 // pred_check_branch
      %41 = sbr.rel (0) target = $region25
    $region24: #{tpu_custom_call.1} parent=1 // pred_region
      _
    $region25: #{tpu_custom_call.1} parent=1 // pred_fallthru
      _
    // Predicated region
    $region26: #{tpu_custom_call.1} parent=1 // pred_check
      _
    $region27: #{tpu_custom_call.1} parent=1 // pred_check_branch
      %43 = sbr.rel (0) target = $region29
    $region28: #{tpu_custom_call.1} parent=1 // pred_region
      _
    $region29: #{tpu_custom_call.1} parent=1 // pred_fallthru
      _
    // Predicated region
    $region30: #{tpu_custom_call.1} parent=1 // pred_check
      _
    $region31: #{tpu_custom_call.1} parent=1 // pred_check_branch
      %45 = sbr.rel (0) target = $region33
    $region32: #{tpu_custom_call.1} parent=1 // pred_region
      _
    $region33: #{tpu_custom_call.1} parent=1 // pred_fallthru
      _
    // Predicated region
    $region34: #{tpu_custom_call.1} parent=1 // pred_check
      _
    $region35: #{tpu_custom_call.1} parent=1 // pred_check_branch
      %47 = sbr.rel (0) target = $region37
    $region36: #{tpu_custom_call.1} parent=1 // pred_region
      _
    $region37: #{tpu_custom_call.1} parent=1 // pred_fallthru
      _
    // Predicated region
    $region38: #{tpu_custom_call.1} parent=1 // pred_check
      _
    $region39: #{tpu_custom_call.1} parent=1 // pred_check_branch
      %49 = sbr.rel (0) target = $region41
    $region40: #{tpu_custom_call.1} parent=1 // pred_region
      _
    $region41: #{tpu_custom_call.1} parent=1 // pred_fallthru
      _
    // Predicated region
    $region42: #{tpu_custom_call.1} parent=1 // pred_check
      _
    $region43: #{tpu_custom_call.1} parent=1 // pred_check_branch
      %51 = sbr.rel (0) target = $region45
    $region44: #{tpu_custom_call.1} parent=1 // pred_region
      _
    $region45: #{tpu_custom_call.1} parent=1 // pred_fallthru
      _
    // Predicated region
    $region46: #{tpu_custom_call.1} parent=1 // pred_check
      _
    $region47: #{tpu_custom_call.1} parent=1 // pred_check_branch
      %53 = sbr.rel (0) target = $region49
    $region48: #{tpu_custom_call.1} parent=1 // pred_region
      _
    $region49: #{tpu_custom_call.1} parent=1 // pred_fallthru
      _
    // Predicated region
    $region50: #{tpu_custom_call.1} parent=1 // pred_check
      _
    $region51: #{tpu_custom_call.1} parent=1 // pred_check_branch
      %55 = sbr.rel (0) target = $region53
    $region52: #{tpu_custom_call.1} parent=1 // pred_region
      _
    $region53: #{tpu_custom_call.1} parent=1 // pred_fallthru
      _
    // Predicated region
    $region54: #{tpu_custom_call.1} parent=1 // pred_check
      _
    $region55: #{tpu_custom_call.1} parent=1 // pred_check_branch
      %57 = sbr.rel (0) target = $region57
    $region56: #{tpu_custom_call.1} parent=1 // pred_region
      _
    $region57: #{tpu_custom_call.1} parent=1 // pred_fallthru
      _
    // Predicated region
    $region58: #{tpu_custom_call.1} parent=1 // pred_check
      _
    $region59: #{tpu_custom_call.1} parent=1 // pred_check_branch
      %59 = sbr.rel (0) target = $region61
    $region60: #{tpu_custom_call.1} parent=1 // pred_region
      _
    $region61: #{tpu_custom_call.1} parent=1 // pred_fallthru
      _
    // Predicated region
    $region62: #{tpu_custom_call.1} parent=1 // pred_check
      _
    $region63: #{tpu_custom_call.1} parent=1 // pred_check_branch
      %61 = sbr.rel (0) target = $region65
    $region64: #{tpu_custom_call.1} parent=1 // pred_region
      _
    $region65: #{tpu_custom_call.1} parent=1 // pred_fallthru
      _
    // Predicated region
    $region66: #{tpu_custom_call.1} parent=1 // pred_check
      _
    $region67: #{tpu_custom_call.1} parent=1 // pred_check_branch
      %63 = sbr.rel (0) target = $region69
    $region68: #{tpu_custom_call.1} parent=1 // pred_region
      _
    $region69: #{tpu_custom_call.1} parent=1 // pred_fallthru
      _
    // Predicated region
    $region70: #{tpu_custom_call.1} parent=1 // pred_check
      _
    $region71: #{tpu_custom_call.1} parent=1 // pred_check_branch
      %65 = sbr.rel (0) target = $region73
    $region72: #{tpu_custom_call.1} parent=1 // pred_region
      _
    $region73: #{tpu_custom_call.1} parent=1 // pred_fallthru
      _
    // Predicated region
    $region74: #{tpu_custom_call.1} parent=1 // pred_check
      _
    $region75: #{tpu_custom_call.1} parent=1 // pred_check_branch
      %67 = sbr.rel (0) target = $region77
    $region76: #{tpu_custom_call.1} parent=1 // pred_region
      _
    $region77: #{tpu_custom_call.1} parent=1 // pred_fallthru
      _
    // Predicated region
    $region78: #{tpu_custom_call.1} parent=1 // pred_check
      _
    $region79: #{tpu_custom_call.1} parent=1 // pred_check_branch
      %69 = sbr.rel (0) target = $region81
    $region80: #{tpu_custom_call.1} parent=1 // pred_region
      _
    $region81: #{tpu_custom_call.1} parent=1 // pred_fallthru
      _
    %v70 = vld [vmem:[%s1] sm:$0xff]
    %v71 = vld [vmem:[%s2] sm:$0xff]
    %v72 = vld [vmem:[%s2 + $0x8] sm:$0xff]
    %v73 = vld [vmem:[%s2 + $0x10] sm:$0xff]
    %v74 = vld [vmem:[%s2 + $0x18] sm:$0xff]
    %v75 = vld [vmem:[%s3] sm:$0x1]
    %v77 = vlaneseq
    %v78 = vshrl.u32 %v77, 7
    %v79 = vsub.s32 0, %v78
    %v80 = vrot.slane %v75, %v79
    %vm82 = vcmask 261120
    %v84 = vsel %vm82, %v70, 0
    %86 = vmatprep.subr.mxu0 0.0
    %87 = vmatpush1.msra.mxu0 %v71
    %88 = vmatprep.subr.mxu0 0.0
    %89 = vmatpush1.msra.mxu0 %v72
    %90 = vmatprep.subr.mxu0 0.0
    %91 = vmatpush1.msra.mxu0 %v73
    %92 = vmatprep.subr.mxu0 0.0
    %93 = vmatpush1.msra.mxu0 %v74
    %94 = vmatprep.subr.mxu0 0.0
    %95 = vmatpush1.msra.mxu0 0.0
    %96 = vmatprep.subr.mxu0 0.0
    %97 = vmatpush1.msra.mxu0 0.0
    %98 = vmatprep.subr.mxu0 0.0
    %99 = vmatpush1.msra.mxu0 0.0
    %100 = vmatprep.subr.mxu0 0.0
    %101 = vmatpush1.msra.mxu0 0.0
    %102 = vmatprep.subr.mxu0 0.0
    %103 = vmatpush1.msra.mxu0 0.0
    %104 = vmatprep.subr.mxu0 0.0
    %105 = vmatpush1.msra.mxu0 0.0
    %106 = vmatprep.subr.mxu0 0.0
    %107 = vmatpush1.msra.mxu0 0.0
    %108 = vmatprep.subr.mxu0 0.0
    %109 = vmatpush1.msra.mxu0 0.0
    %110 = vmatprep.subr.mxu0 0.0
    %111 = vmatpush1.msra.mxu0 0.0
    %112 = vmatprep.subr.mxu0 0.0
    %113 = vmatpush1.msra.mxu0 0.0
    %114 = vmatprep.subr.mxu0 0.0
    %115 = vmatpush1.msra.mxu0 0.0
    %116 = vmatprep.subr.mxu0 0.0
    %117 = vmatpush1.msra.mxu0 0.0
    %118 = vmatprep.subr.mxu0 0.0
    %119 = vmatpush1.msra.mxu0 0.0
    %120 = vmatprep.subr.mxu0 0.0
    %121 = vmatpush1.msra.mxu0 0.0
    %122 = vmatprep.subr.mxu0 0.0
    %123 = vmatpush1.msra.mxu0 0.0
    %124 = vmatprep.subr.mxu0 0.0
    %125 = vmatpush1.msra.mxu0 0.0
    %126 = vmatprep.subr.mxu0 0.0
    %127 = vmatpush1.msra.mxu0 0.0
    %128 = vmatprep.subr.mxu0 0.0
    %129 = vmatpush1.msra.mxu0 0.0
    %130 = vmatprep.subr.mxu0 0.0
    %131 = vmatpush1.msra.mxu0 0.0
    %132 = vmatprep.subr.mxu0 0.0
    %133 = vmatpush1.msra.mxu0 0.0
    %134 = vmatprep.subr.mxu0 0.0
    %135 = vmatpush1.msra.mxu0 0.0
    %136 = vmatprep.subr.mxu0 0.0
    %137 = vmatpush1.msra.mxu0 0.0
    %138 = vmatprep.subr.mxu0 0.0
    %139 = vmatpush1.msra.mxu0 0.0
    %140 = vmatprep.subr.mxu0 0.0
    %141 = vmatpush1.msra.mxu0 0.0
    %142 = vmatprep.subr.mxu0 0.0
    %143 = vmatpush1.msra.mxu0 0.0
    %144 = vmatprep.subr.mxu0 0.0
    %145 = vmatpush1.msra.mxu0 0.0
    %146 = vmatprep.subr.mxu0 0.0
    %147 = vmatpush1.msra.mxu0 0.0
    %148 = vmatprep.subr.mxu0 0.0
    %149 = vmatpush1.msra.mxu0 0.0
    %150 = vmatprep.mubr.f32.mxu0 0.0
    %151 = vmatmul.mubr.f32.gmra.mrb[0].mxu0 %v84
    %v152 = vpop.f32.mrb[0].mxu0
    %v153 = vadd.f32 %v80, %v152
    %v154 = vpop.f32.mrb[0].mxu0
    %155 = vdwg.mxu0
    %v156 = vmax.f32 %v153, 0.0
    %v157 = vld [vmem:[%s0] sm:$0xff]
    %v158 = vld [vmem:[%s4] sm:$0xff]
    %v159 = vld [vmem:[%s5] sm:$0xff]
    %v160 = vld [vmem:[%s5 + $0x8] sm:$0xff]
    %vm161 = vcmask 130048
    %v163 = vsel %vm161, %v156, 0
    %165 = vmatprep.subr.mxu0 0.0
    %166 = vmatpush1.msra.mxu0 %v159
    %167 = vmatprep.subr.mxu0 0.0
    %168 = vmatpush1.msra.mxu0 %v160
    %169 = vmatprep.subr.mxu0 0.0
    %170 = vmatpush1.msra.mxu0 0.0
    %171 = vmatprep.subr.mxu0 0.0
    %172 = vmatpush1.msra.mxu0 0.0
    %173 = vmatprep.subr.mxu0 0.0
    %174 = vmatpush1.msra.mxu0 0.0
    %175 = vmatprep.subr.mxu0 0.0
    %176 = vmatpush1.msra.mxu0 0.0
    %177 = vmatprep.subr.mxu0 0.0
    %178 = vmatpush1.msra.mxu0 0.0
    %179 = vmatprep.subr.mxu0 0.0
    %180 = vmatpush1.msra.mxu0 0.0
    %181 = vmatprep.subr.mxu0 0.0
    %182 = vmatpush1.msra.mxu0 0.0
    %183 = vmatprep.subr.mxu0 0.0
    %184 = vmatpush1.msra.mxu0 0.0
    %185 = vmatprep.subr.mxu0 0.0
    %186 = vmatpush1.msra.mxu0 0.0
    %187 = vmatprep.subr.mxu0 0.0
    %188 = vmatpush1.msra.mxu0 0.0
    %189 = vmatprep.subr.mxu0 0.0
    %190 = vmatpush1.msra.mxu0 0.0
    %191 = vmatprep.subr.mxu0 0.0
    %192 = vmatpush1.msra.mxu0 0.0
    %193 = vmatprep.subr.mxu0 0.0
    %194 = vmatpush1.msra.mxu0 0.0
    %195 = vmatprep.subr.mxu0 0.0
    %196 = vmatpush1.msra.mxu0 0.0
    %197 = vmatprep.subr.mxu0 0.0
    %198 = vmatpush1.msra.mxu0 0.0
    %199 = vmatprep.subr.mxu0 0.0
    %200 = vmatpush1.msra.mxu0 0.0
    %201 = vmatprep.subr.mxu0 0.0
    %202 = vmatpush1.msra.mxu0 0.0
    %203 = vmatprep.subr.mxu0 0.0
    %204 = vmatpush1.msra.mxu0 0.0
    %205 = vmatprep.subr.mxu0 0.0
    %206 = vmatpush1.msra.mxu0 0.0
    %207 = vmatprep.subr.mxu0 0.0
    %208 = vmatpush1.msra.mxu0 0.0
    %209 = vmatprep.subr.mxu0 0.0
    %210 = vmatpush1.msra.mxu0 0.0
    %211 = vmatprep.subr.mxu0 0.0
    %212 = vmatpush1.msra.mxu0 0.0
    %213 = vmatprep.subr.mxu0 0.0
    %214 = vmatpush1.msra.mxu0 0.0
    %215 = vmatprep.subr.mxu0 0.0
    %216 = vmatpush1.msra.mxu0 0.0
    %217 = vmatprep.subr.mxu0 0.0
    %218 = vmatpush1.msra.mxu0 0.0
    %219 = vmatprep.subr.mxu0 0.0
    %220 = vmatpush1.msra.mxu0 0.0
    %221 = vmatprep.subr.mxu0 0.0
    %222 = vmatpush1.msra.mxu0 0.0
    %223 = vmatprep.subr.mxu0 0.0
    %224 = vmatpush1.msra.mxu0 0.0
    %225 = vmatprep.subr.mxu0 0.0
    %226 = vmatpush1.msra.mxu0 0.0
    %227 = vmatprep.subr.mxu0 0.0
    %228 = vmatpush1.msra.mxu0 0.0
    %229 = vmatprep.mubr.f32.mxu0 0.0
    %230 = vmatmul.mubr.f32.gmra.mrb[0].mxu0 %v163
    %v231 = vpop.f32.mrb[0].mxu0
    %v232 = vadd.f32 0.0, %v231
    %v233 = vpop.f32.mrb[0].mxu0
    %234 = vdwg.mxu0
    %vm235 = vcmask 64512
    %v237 = vsel %vm235, %v157, 0
    %239 = vmatprep.subr.mxu0 0.0
    %240 = vmatpush1.msra.mxu0 %v158
    %241 = vmatprep.subr.mxu0 0.0
    %242 = vmatpush1.msra.mxu0 0.0
    %243 = vmatprep.subr.mxu0 0.0
    %244 = vmatpush1.msra.mxu0 0.0
    %245 = vmatprep.subr.mxu0 0.0
    %246 = vmatpush1.msra.mxu0 0.0
    %247 = vmatprep.subr.mxu0 0.0
    %248 = vmatpush1.msra.mxu0 0.0
    %249 = vmatprep.subr.mxu0 0.0
    %250 = vmatpush1.msra.mxu0 0.0
    %251 = vmatprep.subr.mxu0 0.0
    %252 = vmatpush1.msra.mxu0 0.0
    %253 = vmatprep.subr.mxu0 0.0
    %254 = vmatpush1.msra.mxu0 0.0
    %255 = vmatprep.subr.mxu0 0.0
    %256 = vmatpush1.msra.mxu0 0.0
    %257 = vmatprep.subr.mxu0 0.0
    %258 = vmatpush1.msra.mxu0 0.0
    %259 = vmatprep.subr.mxu0 0.0
    %260 = vmatpush1.msra.mxu0 0.0
    %261 = vmatprep.subr.mxu0 0.0
    %262 = vmatpush1.msra.mxu0 0.0
    %263 = vmatprep.subr.mxu0 0.0
    %264 = vmatpush1.msra.mxu0 0.0
    %265 = vmatprep.subr.mxu0 0.0
    %266 = vmatpush1.msra.mxu0 0.0
    %267 = vmatprep.subr.mxu0 0.0
    %268 = vmatpush1.msra.mxu0 0.0
    %269 = vmatprep.subr.mxu0 0.0
    %270 = vmatpush1.msra.mxu0 0.0
    %271 = vmatprep.subr.mxu0 0.0
    %272 = vmatpush1.msra.mxu0 0.0
    %273 = vmatprep.subr.mxu0 0.0
    %274 = vmatpush1.msra.mxu0 0.0
    %275 = vmatprep.subr.mxu0 0.0
    %276 = vmatpush1.msra.mxu0 0.0
    %277 = vmatprep.subr.mxu0 0.0
    %278 = vmatpush1.msra.mxu0 0.0
    %279 = vmatprep.subr.mxu0 0.0
    %280 = vmatpush1.msra.mxu0 0.0
    %281 = vmatprep.subr.mxu0 0.0
    %282 = vmatpush1.msra.mxu0 0.0
    %283 = vmatprep.subr.mxu0 0.0
    %284 = vmatpush1.msra.mxu0 0.0
    %285 = vmatprep.subr.mxu0 0.0
    %286 = vmatpush1.msra.mxu0 0.0
    %287 = vmatprep.subr.mxu0 0.0
    %288 = vmatpush1.msra.mxu0 0.0
    %289 = vmatprep.subr.mxu0 0.0
    %290 = vmatpush1.msra.mxu0 0.0
    %291 = vmatprep.subr.mxu0 0.0
    %292 = vmatpush1.msra.mxu0 0.0
    %293 = vmatprep.subr.mxu0 0.0
    %294 = vmatpush1.msra.mxu0 0.0
    %295 = vmatprep.subr.mxu0 0.0
    %296 = vmatpush1.msra.mxu0 0.0
    %297 = vmatprep.subr.mxu0 0.0
    %298 = vmatpush1.msra.mxu0 0.0
    %299 = vmatprep.subr.mxu0 0.0
    %300 = vmatpush1.msra.mxu0 0.0
    %301 = vmatprep.subr.mxu0 0.0
    %302 = vmatpush1.msra.mxu0 0.0
    %303 = vmatprep.mubr.f32.mxu0 0.0
    %304 = vmatmul.mubr.f32.gmra.mrb[0].mxu0 %v237
    %v305 = vpop.f32.mrb[0].mxu0
    %v306 = vadd.f32 %v232, %v305
    %v307 = vpop.f32.mrb[0].mxu0
    %308 = vdwg.mxu0
    %v309 = vld [vmem:[%s6] sm:$0x1]
    %v311 = vlaneseq
    %v312 = vshrl.u32 %v311, 7
    %v313 = vsub.s32 0, %v312
    %v314 = vrot.slane %v309, %v313
    %v316 = vadd.f32 %v306, %v314
    %v317 = vmax.f32 %v316, 0.0
    %v318 = vld [vmem:[%s7] sm:$0xff]
    %v319 = vld [vmem:[%s7 + $0x8] sm:$0xff]
    %v320 = vld [vmem:[%s7 + $0x10] sm:$0xff]
    %v321 = vld [vmem:[%s7 + $0x18] sm:$0xff]
    %v322 = vld [vmem:[%s7 + $0x20] sm:$0xff]
    %v323 = vld [vmem:[%s7 + $0x28] sm:$0xff]
    %v324 = vld [vmem:[%s7 + $0x30] sm:$0xff]
    %v325 = vld [vmem:[%s7 + $0x38] sm:$0xff]
    %v326 = vld [vmem:[%s8] sm:$0x1]
    %v328 = vlaneseq
    %v329 = vshrl.u32 %v328, 7
    %v330 = vsub.s32 0, %v329
    %v331 = vrot.slane %v326, %v330
    %vm333 = vcmask 523264
    %v335 = vsel %vm333, %v317, 0
    %337 = vmatprep.subr.mxu0 0.0
    %338 = vmatpush1.msra.mxu0 %v318
    %339 = vmatprep.subr.mxu0 0.0
    %340 = vmatpush1.msra.mxu0 %v319
    %341 = vmatprep.subr.mxu0 0.0
    %342 = vmatpush1.msra.mxu0 %v320
    %343 = vmatprep.subr.mxu0 0.0
    %344 = vmatpush1.msra.mxu0 %v321
    %345 = vmatprep.subr.mxu0 0.0
    %346 = vmatpush1.msra.mxu0 %v322
    %347 = vmatprep.subr.mxu0 0.0
    %348 = vmatpush1.msra.mxu0 %v323
    %349 = vmatprep.subr.mxu0 0.0
    %350 = vmatpush1.msra.mxu0 %v324
    %351 = vmatprep.subr.mxu0 0.0
    %352 = vmatpush1.msra.mxu0 %v325
    %353 = vmatprep.subr.mxu0 0.0
    %354 = vmatpush1.msra.mxu0 0.0
    %355 = vmatprep.subr.mxu0 0.0
    %356 = vmatpush1.msra.mxu0 0.0
    %357 = vmatprep.subr.mxu0 0.0
    %358 = vmatpush1.msra.mxu0 0.0
    %359 = vmatprep.subr.mxu0 0.0
    %360 = vmatpush1.msra.mxu0 0.0
    %361 = vmatprep.subr.mxu0 0.0
    %362 = vmatpush1.msra.mxu0 0.0
    %363 = vmatprep.subr.mxu0 0.0
    %364 = vmatpush1.msra.mxu0 0.0
    %365 = vmatprep.subr.mxu0 0.0
    %366 = vmatpush1.msra.mxu0 0.0
    %367 = vmatprep.subr.mxu0 0.0
    %368 = vmatpush1.msra.mxu0 0.0
    %369 = vmatprep.subr.mxu0 0.0
    %370 = vmatpush1.msra.mxu0 0.0
    %371 = vmatprep.subr.mxu0 0.0
    %372 = vmatpush1.msra.mxu0 0.0
    %373 = vmatprep.subr.mxu0 0.0
    %374 = vmatpush1.msra.mxu0 0.0
    %375 = vmatprep.subr.mxu0 0.0
    %376 = vmatpush1.msra.mxu0 0.0
    %377 = vmatprep.subr.mxu0 0.0
    %378 = vmatpush1.msra.mxu0 0.0
    %379 = vmatprep.subr.mxu0 0.0
    %380 = vmatpush1.msra.mxu0 0.0
    %381 = vmatprep.subr.mxu0 0.0
    %382 = vmatpush1.msra.mxu0 0.0
    %383 = vmatprep.subr.mxu0 0.0
    %384 = vmatpush1.msra.mxu0 0.0
    %385 = vmatprep.subr.mxu0 0.0
    %386 = vmatpush1.msra.mxu0 0.0
    %387 = vmatprep.subr.mxu0 0.0
    %388 = vmatpush1.msra.mxu0 0.0
    %389 = vmatprep.subr.mxu0 0.0
    %390 = vmatpush1.msra.mxu0 0.0
    %391 = vmatprep.subr.mxu0 0.0
    %392 = vmatpush1.msra.mxu0 0.0
    %393 = vmatprep.subr.mxu0 0.0
    %394 = vmatpush1.msra.mxu0 0.0
    %395 = vmatprep.subr.mxu0 0.0
    %396 = vmatpush1.msra.mxu0 0.0
    %397 = vmatprep.subr.mxu0 0.0
    %398 = vmatpush1.msra.mxu0 0.0
    %399 = vmatprep.subr.mxu0 0.0
    %400 = vmatpush1.msra.mxu0 0.0
    %401 = vmatprep.mubr.f32.mxu0 0.0
    %402 = vmatmul.mubr.f32.gmra.mrb[0].mxu0 %v335
    %v403 = vpop.f32.mrb[0].mxu0
    %v404 = vadd.f32 %v331, %v403
    %v405 = vpop.f32.mrb[0].mxu0
    %406 = vdwg.mxu0
    %v407 = vmax.f32 %v404, 0.0
    %v408 = vld [vmem:[%s9] sm:$0xff]
    %v409 = vld [vmem:[%s9 + $0x8] sm:$0xff]
    %v410 = vld [vmem:[%s9 + $0x10] sm:$0xff]
    %v411 = vld [vmem:[%s9 + $0x18] sm:$0xff]
    %v412 = vld [vmem:[%s9 + $0x20] sm:$0xff]
    %v413 = vld [vmem:[%s9 + $0x28] sm:$0xff]
    %v414 = vld [vmem:[%s9 + $0x30] sm:$0xff]
    %v415 = vld [vmem:[%s9 + $0x38] sm:$0xff]
    %v416 = vld [vmem:[%s10] sm:$0x1]
    %v418 = vlaneseq
    %v419 = vshrl.u32 %v418, 7
    %v420 = vsub.s32 0, %v419
    %v421 = vrot.slane %v416, %v420
    %v424 = vsel %vm333, %v407, 0
    %426 = vmatprep.subr.mxu0 0.0
    %427 = vmatpush1.msra.mxu0 %v408
    %428 = vmatprep.subr.mxu0 0.0
    %429 = vmatpush1.msra.mxu0 %v409
    %430 = vmatprep.subr.mxu0 0.0
    %431 = vmatpush1.msra.mxu0 %v410
    %432 = vmatprep.subr.mxu0 0.0
    %433 = vmatpush1.msra.mxu0 %v411
    %434 = vmatprep.subr.mxu0 0.0
    %435 = vmatpush1.msra.mxu0 %v412
    %436 = vmatprep.subr.mxu0 0.0
    %437 = vmatpush1.msra.mxu0 %v413
    %438 = vmatprep.subr.mxu0 0.0
    %439 = vmatpush1.msra.mxu0 %v414
    %440 = vmatprep.subr.mxu0 0.0
    %441 = vmatpush1.msra.mxu0 %v415
    %442 = vmatprep.subr.mxu0 0.0
    %443 = vmatpush1.msra.mxu0 0.0
    %444 = vmatprep.subr.mxu0 0.0
    %445 = vmatpush1.msra.mxu0 0.0
    %446 = vmatprep.subr.mxu0 0.0
    %447 = vmatpush1.msra.mxu0 0.0
    %448 = vmatprep.subr.mxu0 0.0
    %449 = vmatpush1.msra.mxu0 0.0
    %450 = vmatprep.subr.mxu0 0.0
    %451 = vmatpush1.msra.mxu0 0.0
    %452 = vmatprep.subr.mxu0 0.0
    %453 = vmatpush1.msra.mxu0 0.0
    %454 = vmatprep.subr.mxu0 0.0
    %455 = vmatpush1.msra.mxu0 0.0
    %456 = vmatprep.subr.mxu0 0.0
    %457 = vmatpush1.msra.mxu0 0.0
    %458 = vmatprep.subr.mxu0 0.0
    %459 = vmatpush1.msra.mxu0 0.0
    %460 = vmatprep.subr.mxu0 0.0
    %461 = vmatpush1.msra.mxu0 0.0
    %462 = vmatprep.subr.mxu0 0.0
    %463 = vmatpush1.msra.mxu0 0.0
    %464 = vmatprep.subr.mxu0 0.0
    %465 = vmatpush1.msra.mxu0 0.0
    %466 = vmatprep.subr.mxu0 0.0
    %467 = vmatpush1.msra.mxu0 0.0
    %468 = vmatprep.subr.mxu0 0.0
    %469 = vmatpush1.msra.mxu0 0.0
    %470 = vmatprep.subr.mxu0 0.0
    %471 = vmatpush1.msra.mxu0 0.0
    %472 = vmatprep.subr.mxu0 0.0
    %473 = vmatpush1.msra.mxu0 0.0
    %474 = vmatprep.subr.mxu0 0.0
    %475 = vmatpush1.msra.mxu0 0.0
    %476 = vmatprep.subr.mxu0 0.0
    %477 = vmatpush1.msra.mxu0 0.0
    %478 = vmatprep.subr.mxu0 0.0
    %479 = vmatpush1.msra.mxu0 0.0
    %480 = vmatprep.subr.mxu0 0.0
    %481 = vmatpush1.msra.mxu0 0.0
    %482 = vmatprep.subr.mxu0 0.0
    %483 = vmatpush1.msra.mxu0 0.0
    %484 = vmatprep.subr.mxu0 0.0
    %485 = vmatpush1.msra.mxu0 0.0
    %486 = vmatprep.subr.mxu0 0.0
    %487 = vmatpush1.msra.mxu0 0.0
    %488 = vmatprep.subr.mxu0 0.0
    %489 = vmatpush1.msra.mxu0 0.0
    %490 = vmatprep.mubr.f32.mxu0 0.0
    %491 = vmatmul.mubr.f32.gmra.mrb[0].mxu0 %v424
    %v492 = vpop.f32.mrb[0].mxu0
    %v493 = vadd.f32 %v421, %v492
    %v494 = vpop.f32.mrb[0].mxu0
    %495 = vdwg.mxu0
    %v496 = vtanh.pop %v493
    %v497 = vmul.f32 %v496, 2.0
    %v498 = vld [vmem:[%s11] sm:$0xff]
    %v499 = vld [vmem:[%s11 + $0x8] sm:$0xff]
    %v500 = vld [vmem:[%s11 + $0x10] sm:$0xff]
    %v501 = vld [vmem:[%s11 + $0x18] sm:$0xff]
    %v502 = vld [vmem:[%s11 + $0x20] sm:$0xff]
    %v503 = vld [vmem:[%s11 + $0x28] sm:$0xff]
    %v504 = vld [vmem:[%s11 + $0x30] sm:$0xff]
    %v505 = vld [vmem:[%s11 + $0x38] sm:$0xff]
    %v506 = vld [vmem:[%s12] sm:$0x1]
    %v508 = vlaneseq
    %v509 = vshrl.u32 %v508, 7
    %v510 = vsub.s32 0, %v509
    %v511 = vrot.slane %v506, %v510
    %513 = vmatprep.subr.mxu0 0.0
    %514 = vmatpush1.msra.mxu0 %v498
    %515 = vmatprep.subr.mxu0 0.0
    %516 = vmatpush1.msra.mxu0 %v499
    %517 = vmatprep.subr.mxu0 0.0
    %518 = vmatpush1.msra.mxu0 %v500
    %519 = vmatprep.subr.mxu0 0.0
    %520 = vmatpush1.msra.mxu0 %v501
    %521 = vmatprep.subr.mxu0 0.0
    %522 = vmatpush1.msra.mxu0 %v502
    %523 = vmatprep.subr.mxu0 0.0
    %524 = vmatpush1.msra.mxu0 %v503
    %525 = vmatprep.subr.mxu0 0.0
    %526 = vmatpush1.msra.mxu0 %v504
    %527 = vmatprep.subr.mxu0 0.0
    %528 = vmatpush1.msra.mxu0 %v505
    %529 = vmatprep.subr.mxu0 0.0
    %530 = vmatpush1.msra.mxu0 0.0
    %531 = vmatprep.subr.mxu0 0.0
    %532 = vmatpush1.msra.mxu0 0.0
    %533 = vmatprep.subr.mxu0 0.0
    %534 = vmatpush1.msra.mxu0 0.0
    %535 = vmatprep.subr.mxu0 0.0
    %536 = vmatpush1.msra.mxu0 0.0
    %537 = vmatprep.subr.mxu0 0.0
    %538 = vmatpush1.msra.mxu0 0.0
    %539 = vmatprep.subr.mxu0 0.0
    %540 = vmatpush1.msra.mxu0 0.0
    %541 = vmatprep.subr.mxu0 0.0
    %542 = vmatpush1.msra.mxu0 0.0
    %543 = vmatprep.subr.mxu0 0.0
    %544 = vmatpush1.msra.mxu0 0.0
    %545 = vmatprep.subr.mxu0 0.0
    %546 = vmatpush1.msra.mxu0 0.0
    %547 = vmatprep.subr.mxu0 0.0
    %548 = vmatpush1.msra.mxu0 0.0
    %549 = vmatprep.subr.mxu0 0.0
    %550 = vmatpush1.msra.mxu0 0.0
    %551 = vmatprep.subr.mxu0 0.0
    %552 = vmatpush1.msra.mxu0 0.0
    %553 = vmatprep.subr.mxu0 0.0
    %554 = vmatpush1.msra.mxu0 0.0
    %555 = vmatprep.subr.mxu0 0.0
    %556 = vmatpush1.msra.mxu0 0.0
    %557 = vmatprep.subr.mxu0 0.0
    %558 = vmatpush1.msra.mxu0 0.0
    %559 = vmatprep.subr.mxu0 0.0
    %560 = vmatpush1.msra.mxu0 0.0
    %561 = vmatprep.subr.mxu0 0.0
    %562 = vmatpush1.msra.mxu0 0.0
    %563 = vmatprep.subr.mxu0 0.0
    %564 = vmatpush1.msra.mxu0 0.0
    %565 = vmatprep.subr.mxu0 0.0
    %566 = vmatpush1.msra.mxu0 0.0
    %567 = vmatprep.subr.mxu0 0.0
    %568 = vmatpush1.msra.mxu0 0.0
    %569 = vmatprep.subr.mxu0 0.0
    %570 = vmatpush1.msra.mxu0 0.0
    %571 = vmatprep.subr.mxu0 0.0
    %572 = vmatpush1.msra.mxu0 0.0
    %573 = vmatprep.subr.mxu0 0.0
    %574 = vmatpush1.msra.mxu0 0.0
    %575 = vmatprep.subr.mxu0 0.0
    %576 = vmatpush1.msra.mxu0 0.0
    %577 = vmatprep.mubr.f32.mxu0 0.0
    %578 = vmatmul.mubr.f32.gmra.mrb[0].mxu0 %v424
    %v579 = vpop.f32.mrb[0].mxu0
    %v580 = vadd.f32 %v511, %v579
    %v581 = vpop.f32.mrb[0].mxu0
    %582 = vdwg.mxu0
    %v583 = vmul.f32 %v497, 1.442695
    %v584 = vpow.pop %v583
    %586 = vrot.lane.b32.xlu0 %v584, 8
    %v587 = vpop.permute.xlu0 %586
    %v589 = vmul.f32 %v157, %v587
    %591 = vrot.lane.b32.xlu0 %v580, 8
    %v592 = vpop.permute.xlu0 %591
    %v594 = vadd.f32 %v589, %v592
    %v595 = vsel %vm235, %v497, 0.0
    %596 = vadd.xlane.f32.xlu0 %v595
    %v597 = vpop.xlane.xlu0 %596
    %v598 = vadd.f32 %v597, 0.0
    %v599 = vld [vmem:[%s13] sm:$0xff]
    %v600 = vld [vmem:[%s15] sm:$0xff]
    %602 = vrot.lane.b32.xlu0 %v594, 120
    %v603 = vpop.permute.xlu0 %602
    %v604 = vsel %vm235, %v603, 0
    %606 = vmatprep.subr.mxu0 0.0
    %607 = vmatpush1.msra.mxu0 %v600
    %608 = vmatprep.subr.mxu0 0.0
    %609 = vmatpush1.msra.mxu0 0.0
    %610 = vmatprep.subr.mxu0 0.0
    %611 = vmatpush1.msra.mxu0 0.0
    %612 = vmatprep.subr.mxu0 0.0
    %613 = vmatpush1.msra.mxu0 0.0
    %614 = vmatprep.subr.mxu0 0.0
    %615 = vmatpush1.msra.mxu0 0.0
    %616 = vmatprep.subr.mxu0 0.0
    %617 = vmatpush1.msra.mxu0 0.0
    %618 = vmatprep.subr.mxu0 0.0
    %619 = vmatpush1.msra.mxu0 0.0
    %620 = vmatprep.subr.mxu0 0.0
    %621 = vmatpush1.msra.mxu0 0.0
    %622 = vmatprep.subr.mxu0 0.0
    %623 = vmatpush1.msra.mxu0 0.0
    %624 = vmatprep.subr.mxu0 0.0
    %625 = vmatpush1.msra.mxu0 0.0
    %626 = vmatprep.subr.mxu0 0.0
    %627 = vmatpush1.msra.mxu0 0.0
    %628 = vmatprep.subr.mxu0 0.0
    %629 = vmatpush1.msra.mxu0 0.0
    %630 = vmatprep.subr.mxu0 0.0
    %631 = vmatpush1.msra.mxu0 0.0
    %632 = vmatprep.subr.mxu0 0.0
    %633 = vmatpush1.msra.mxu0 0.0
    %634 = vmatprep.subr.mxu0 0.0
    %635 = vmatpush1.msra.mxu0 0.0
    %636 = vmatprep.subr.mxu0 0.0
    %637 = vmatpush1.msra.mxu0 0.0
    %638 = vmatprep.subr.mxu0 0.0
    %639 = vmatpush1.msra.mxu0 0.0
    %640 = vmatprep.subr.mxu0 0.0
    %641 = vmatpush1.msra.mxu0 0.0
    %642 = vmatprep.subr.mxu0 0.0
    %643 = vmatpush1.msra.mxu0 0.0
    %644 = vmatprep.subr.mxu0 0.0
    %645 = vmatpush1.msra.mxu0 0.0
    %646 = vmatprep.subr.mxu0 0.0
    %647 = vmatpush1.msra.mxu0 0.0
    %648 = vmatprep.subr.mxu0 0.0
    %649 = vmatpush1.msra.mxu0 0.0
    %650 = vmatprep.subr.mxu0 0.0
    %651 = vmatpush1.msra.mxu0 0.0
    %652 = vmatprep.subr.mxu0 0.0
    %653 = vmatpush1.msra.mxu0 0.0
    %654 = vmatprep.subr.mxu0 0.0
    %655 = vmatpush1.msra.mxu0 0.0
    %656 = vmatprep.subr.mxu0 0.0
    %657 = vmatpush1.msra.mxu0 0.0
    %658 = vmatprep.subr.mxu0 0.0
    %659 = vmatpush1.msra.mxu0 0.0
    %660 = vmatprep.subr.mxu0 0.0
    %661 = vmatpush1.msra.mxu0 0.0
    %662 = vmatprep.subr.mxu0 0.0
    %663 = vmatpush1.msra.mxu0 0.0
    %664 = vmatprep.subr.mxu0 0.0
    %665 = vmatpush1.msra.mxu0 0.0
    %666 = vmatprep.subr.mxu0 0.0
    %667 = vmatpush1.msra.mxu0 0.0
    %668 = vmatprep.subr.mxu0 0.0
    %669 = vmatpush1.msra.mxu0 0.0
    %670 = vmatprep.mubr.f32.mxu0 0.0
    %671 = vmatmul.mubr.f32.gmra.mrb[0].mxu0 %v604
    %v672 = vpop.f32.mrb[0].mxu0
    %v673 = vadd.f32 0.0, %v672
    %v674 = vpop.f32.mrb[0].mxu0
    %675 = vdwg.mxu0
    %676 = vmatprep.subr.mxu0 0.0
    %677 = vmatpush1.msra.mxu0 %v599
    %678 = vmatprep.subr.mxu0 0.0
    %679 = vmatpush1.msra.mxu0 0.0
    %680 = vmatprep.subr.mxu0 0.0
    %681 = vmatpush1.msra.mxu0 0.0
    %682 = vmatprep.subr.mxu0 0.0
    %683 = vmatpush1.msra.mxu0 0.0
    %684 = vmatprep.subr.mxu0 0.0
    %685 = vmatpush1.msra.mxu0 0.0
    %686 = vmatprep.subr.mxu0 0.0
    %687 = vmatpush1.msra.mxu0 0.0
    %688 = vmatprep.subr.mxu0 0.0
    %689 = vmatpush1.msra.mxu0 0.0
    %690 = vmatprep.subr.mxu0 0.0
    %691 = vmatpush1.msra.mxu0 0.0
    %692 = vmatprep.subr.mxu0 0.0
    %693 = vmatpush1.msra.mxu0 0.0
    %694 = vmatprep.subr.mxu0 0.0
    %695 = vmatpush1.msra.mxu0 0.0
    %696 = vmatprep.subr.mxu0 0.0
    %697 = vmatpush1.msra.mxu0 0.0
    %698 = vmatprep.subr.mxu0 0.0
    %699 = vmatpush1.msra.mxu0 0.0
    %700 = vmatprep.subr.mxu0 0.0
    %701 = vmatpush1.msra.mxu0 0.0
    %702 = vmatprep.subr.mxu0 0.0
    %703 = vmatpush1.msra.mxu0 0.0
    %704 = vmatprep.subr.mxu0 0.0
    %705 = vmatpush1.msra.mxu0 0.0
    %706 = vmatprep.subr.mxu0 0.0
    %707 = vmatpush1.msra.mxu0 0.0
    %708 = vmatprep.subr.mxu0 0.0
    %709 = vmatpush1.msra.mxu0 0.0
    %710 = vmatprep.subr.mxu0 0.0
    %711 = vmatpush1.msra.mxu0 0.0
    %712 = vmatprep.subr.mxu0 0.0
    %713 = vmatpush1.msra.mxu0 0.0
    %714 = vmatprep.subr.mxu0 0.0
    %715 = vmatpush1.msra.mxu0 0.0
    %716 = vmatprep.subr.mxu0 0.0
    %717 = vmatpush1.msra.mxu0 0.0
    %718 = vmatprep.subr.mxu0 0.0
    %719 = vmatpush1.msra.mxu0 0.0
    %720 = vmatprep.subr.mxu0 0.0
    %721 = vmatpush1.msra.mxu0 0.0
    %722 = vmatprep.subr.mxu0 0.0
    %723 = vmatpush1.msra.mxu0 0.0
    %724 = vmatprep.subr.mxu0 0.0
    %725 = vmatpush1.msra.mxu0 0.0
    %726 = vmatprep.subr.mxu0 0.0
    %727 = vmatpush1.msra.mxu0 0.0
    %728 = vmatprep.subr.mxu0 0.0
    %729 = vmatpush1.msra.mxu0 0.0
    %730 = vmatprep.subr.mxu0 0.0
    %731 = vmatpush1.msra.mxu0 0.0
    %732 = vmatprep.subr.mxu0 0.0
    %733 = vmatpush1.msra.mxu0 0.0
    %734 = vmatprep.subr.mxu0 0.0
    %735 = vmatpush1.msra.mxu0 0.0
    %736 = vmatprep.subr.mxu0 0.0
    %737 = vmatpush1.msra.mxu0 0.0
    %738 = vmatprep.subr.mxu0 0.0
    %739 = vmatpush1.msra.mxu0 0.0
    %740 = vmatprep.mubr.f32.mxu0 0.0
    %741 = vmatmul.mubr.f32.gmra.mrb[0].mxu0 %v237
    %v742 = vpop.f32.mrb[0].mxu0
    %v743 = vadd.f32 %v673, %v742
    %v744 = vpop.f32.mrb[0].mxu0
    %745 = vdwg.mxu0
    %v746 = vld [vmem:[%s17] sm:$0x1]
    %v748 = vlaneseq
    %v749 = vshrl.u32 %v748, 7
    %v750 = vsub.s32 0, %v749
    %v751 = vrot.slane %v746, %v750
    %v753 = vadd.f32 %v743, %v751
    %v754 = vld [vmem:[%s14] sm:$0xff]
    %v755 = vld [vmem:[%s16] sm:$0xff]
    %756 = vmatprep.subr.mxu0 0.0
    %757 = vmatpush1.msra.mxu0 %v755
    %758 = vmatprep.subr.mxu0 0.0
    %759 = vmatpush1.msra.mxu0 0.0
    %760 = vmatprep.subr.mxu0 0.0
    %761 = vmatpush1.msra.mxu0 0.0
    %762 = vmatprep.subr.mxu0 0.0
    %763 = vmatpush1.msra.mxu0 0.0
    %764 = vmatprep.subr.mxu0 0.0
    %765 = vmatpush1.msra.mxu0 0.0
    %766 = vmatprep.subr.mxu0 0.0
    %767 = vmatpush1.msra.mxu0 0.0
    %768 = vmatprep.subr.mxu0 0.0
    %769 = vmatpush1.msra.mxu0 0.0
    %770 = vmatprep.subr.mxu0 0.0
    %771 = vmatpush1.msra.mxu0 0.0
    %772 = vmatprep.subr.mxu0 0.0
    %773 = vmatpush1.msra.mxu0 0.0
    %774 = vmatprep.subr.mxu0 0.0
    %775 = vmatpush1.msra.mxu0 0.0
    %776 = vmatprep.subr.mxu0 0.0
    %777 = vmatpush1.msra.mxu0 0.0
    %778 = vmatprep.subr.mxu0 0.0
    %779 = vmatpush1.msra.mxu0 0.0
    %780 = vmatprep.subr.mxu0 0.0
    %781 = vmatpush1.msra.mxu0 0.0
    %782 = vmatprep.subr.mxu0 0.0
    %783 = vmatpush1.msra.mxu0 0.0
    %784 = vmatprep.subr.mxu0 0.0
    %785 = vmatpush1.msra.mxu0 0.0
    %786 = vmatprep.subr.mxu0 0.0
    %787 = vmatpush1.msra.mxu0 0.0
    %788 = vmatprep.subr.mxu0 0.0
    %789 = vmatpush1.msra.mxu0 0.0
    %790 = vmatprep.subr.mxu0 0.0
    %791 = vmatpush1.msra.mxu0 0.0
    %792 = vmatprep.subr.mxu0 0.0
    %793 = vmatpush1.msra.mxu0 0.0
    %794 = vmatprep.subr.mxu0 0.0
    %795 = vmatpush1.msra.mxu0 0.0
    %796 = vmatprep.subr.mxu0 0.0
    %797 = vmatpush1.msra.mxu0 0.0
    %798 = vmatprep.subr.mxu0 0.0
    %799 = vmatpush1.msra.mxu0 0.0
    %800 = vmatprep.subr.mxu0 0.0
    %801 = vmatpush1.msra.mxu0 0.0
    %802 = vmatprep.subr.mxu0 0.0
    %803 = vmatpush1.msra.mxu0 0.0
    %804 = vmatprep.subr.mxu0 0.0
    %805 = vmatpush1.msra.mxu0 0.0
    %806 = vmatprep.subr.mxu0 0.0
    %807 = vmatpush1.msra.mxu0 0.0
    %808 = vmatprep.subr.mxu0 0.0
    %809 = vmatpush1.msra.mxu0 0.0
    %810 = vmatprep.subr.mxu0 0.0
    %811 = vmatpush1.msra.mxu0 0.0
    %812 = vmatprep.subr.mxu0 0.0
    %813 = vmatpush1.msra.mxu0 0.0
    %814 = vmatprep.subr.mxu0 0.0
    %815 = vmatpush1.msra.mxu0 0.0
    %816 = vmatprep.subr.mxu0 0.0
    %817 = vmatpush1.msra.mxu0 0.0
    %818 = vmatprep.subr.mxu0 0.0
    %819 = vmatpush1.msra.mxu0 0.0
    %820 = vmatprep.mubr.f32.mxu0 0.0
    %821 = vmatmul.mubr.f32.gmra.mrb[0].mxu0 %v604
    %v822 = vpop.f32.mrb[0].mxu0
    %v823 = vadd.f32 0.0, %v822
    %v824 = vpop.f32.mrb[0].mxu0
    %825 = vdwg.mxu0
    %826 = vmatprep.subr.mxu0 0.0
    %827 = vmatpush1.msra.mxu0 %v754
    %828 = vmatprep.subr.mxu0 0.0
    %829 = vmatpush1.msra.mxu0 0.0
    %830 = vmatprep.subr.mxu0 0.0
    %831 = vmatpush1.msra.mxu0 0.0
    %832 = vmatprep.subr.mxu0 0.0
    %833 = vmatpush1.msra.mxu0 0.0
    %834 = vmatprep.subr.mxu0 0.0
    %835 = vmatpush1.msra.mxu0 0.0
    %836 = vmatprep.subr.mxu0 0.0
    %837 = vmatpush1.msra.mxu0 0.0
    %838 = vmatprep.subr.mxu0 0.0
    %839 = vmatpush1.msra.mxu0 0.0
    %840 = vmatprep.subr.mxu0 0.0
    %841 = vmatpush1.msra.mxu0 0.0
    %842 = vmatprep.subr.mxu0 0.0
    %843 = vmatpush1.msra.mxu0 0.0
    %844 = vmatprep.subr.mxu0 0.0
    %845 = vmatpush1.msra.mxu0 0.0
    %846 = vmatprep.subr.mxu0 0.0
    %847 = vmatpush1.msra.mxu0 0.0
    %848 = vmatprep.subr.mxu0 0.0
    %849 = vmatpush1.msra.mxu0 0.0
    %850 = vmatprep.subr.mxu0 0.0
    %851 = vmatpush1.msra.mxu0 0.0
    %852 = vmatprep.subr.mxu0 0.0
    %853 = vmatpush1.msra.mxu0 0.0
    %854 = vmatprep.subr.mxu0 0.0
    %855 = vmatpush1.msra.mxu0 0.0
    %856 = vmatprep.subr.mxu0 0.0
    %857 = vmatpush1.msra.mxu0 0.0
    %858 = vmatprep.subr.mxu0 0.0
    %859 = vmatpush1.msra.mxu0 0.0
    %860 = vmatprep.subr.mxu0 0.0
    %861 = vmatpush1.msra.mxu0 0.0
    %862 = vmatprep.subr.mxu0 0.0
    %863 = vmatpush1.msra.mxu0 0.0
    %864 = vmatprep.subr.mxu0 0.0
    %865 = vmatpush1.msra.mxu0 0.0
    %866 = vmatprep.subr.mxu0 0.0
    %867 = vmatpush1.msra.mxu0 0.0
    %868 = vmatprep.subr.mxu0 0.0
    %869 = vmatpush1.msra.mxu0 0.0
    %870 = vmatprep.subr.mxu0 0.0
    %871 = vmatpush1.msra.mxu0 0.0
    %872 = vmatprep.subr.mxu0 0.0
    %873 = vmatpush1.msra.mxu0 0.0
    %874 = vmatprep.subr.mxu0 0.0
    %875 = vmatpush1.msra.mxu0 0.0
    %876 = vmatprep.subr.mxu0 0.0
    %877 = vmatpush1.msra.mxu0 0.0
    %878 = vmatprep.subr.mxu0 0.0
    %879 = vmatpush1.msra.mxu0 0.0
    %880 = vmatprep.subr.mxu0 0.0
    %881 = vmatpush1.msra.mxu0 0.0
    %882 = vmatprep.subr.mxu0 0.0
    %883 = vmatpush1.msra.mxu0 0.0
    %884 = vmatprep.subr.mxu0 0.0
    %885 = vmatpush1.msra.mxu0 0.0
    %886 = vmatprep.subr.mxu0 0.0
    %887 = vmatpush1.msra.mxu0 0.0
    %888 = vmatprep.subr.mxu0 0.0
    %889 = vmatpush1.msra.mxu0 0.0
    %890 = vmatprep.mubr.f32.mxu0 0.0
    %891 = vmatmul.mubr.f32.gmra.mrb[0].mxu0 %v237
    %v892 = vpop.f32.mrb[0].mxu0
    %v893 = vadd.f32 %v823, %v892
    %v894 = vpop.f32.mrb[0].mxu0
    %895 = vdwg.mxu0
    %v896 = vld [vmem:[%s18] sm:$0x1]
    %v898 = vlaneseq
    %v899 = vshrl.u32 %v898, 7
    %v900 = vsub.s32 0, %v899
    %v901 = vrot.slane %v896, %v900
    %v903 = vadd.f32 %v893, %v901
    %s904 = scalar_lea.vmem %s4, 8
    %v905 = vld [vmem:[%s904] sm:$0xff]
    %s906 = scalar_lea.vmem %s5, 16
    %v907 = vld [vmem:[%s906] sm:$0xff]
    %v908 = vld [vmem:[%s906 + $0x8] sm:$0xff]
    %909 = vmatprep.subr.mxu0 0.0
    %910 = vmatpush1.msra.mxu0 %v907
    %911 = vmatprep.subr.mxu0 0.0
    %912 = vmatpush1.msra.mxu0 %v908
    %913 = vmatprep.subr.mxu0 0.0
    %914 = vmatpush1.msra.mxu0 0.0
    %915 = vmatprep.subr.mxu0 0.0
    %916 = vmatpush1.msra.mxu0 0.0
    %917 = vmatprep.subr.mxu0 0.0
    %918 = vmatpush1.msra.mxu0 0.0
    %919 = vmatprep.subr.mxu0 0.0
    %920 = vmatpush1.msra.mxu0 0.0
    %921 = vmatprep.subr.mxu0 0.0
    %922 = vmatpush1.msra.mxu0 0.0
    %923 = vmatprep.subr.mxu0 0.0
    %924 = vmatpush1.msra.mxu0 0.0
    %925 = vmatprep.subr.mxu0 0.0
    %926 = vmatpush1.msra.mxu0 0.0
    %927 = vmatprep.subr.mxu0 0.0
    %928 = vmatpush1.msra.mxu0 0.0
    %929 = vmatprep.subr.mxu0 0.0
    %930 = vmatpush1.msra.mxu0 0.0
    %931 = vmatprep.subr.mxu0 0.0
    %932 = vmatpush1.msra.mxu0 0.0
    %933 = vmatprep.subr.mxu0 0.0
    %934 = vmatpush1.msra.mxu0 0.0
    %935 = vmatprep.subr.mxu0 0.0
    %936 = vmatpush1.msra.mxu0 0.0
    %937 = vmatprep.subr.mxu0 0.0
    %938 = vmatpush1.msra.mxu0 0.0
    %939 = vmatprep.subr.mxu0 0.0
    %940 = vmatpush1.msra.mxu0 0.0
    %941 = vmatprep.subr.mxu0 0.0
    %942 = vmatpush1.msra.mxu0 0.0
    %943 = vmatprep.subr.mxu0 0.0
    %944 = vmatpush1.msra.mxu0 0.0
    %945 = vmatprep.subr.mxu0 0.0
    %946 = vmatpush1.msra.mxu0 0.0
    %947 = vmatprep.subr.mxu0 0.0
    %948 = vmatpush1.msra.mxu0 0.0
    %949 = vmatprep.subr.mxu0 0.0
    %950 = vmatpush1.msra.mxu0 0.0
    %951 = vmatprep.subr.mxu0 0.0
    %952 = vmatpush1.msra.mxu0 0.0
    %953 = vmatprep.subr.mxu0 0.0
    %954 = vmatpush1.msra.mxu0 0.0
    %955 = vmatprep.subr.mxu0 0.0
    %956 = vmatpush1.msra.mxu0 0.0
    %957 = vmatprep.subr.mxu0 0.0
    %958 = vmatpush1.msra.mxu0 0.0
    %959 = vmatprep.subr.mxu0 0.0
    %960 = vmatpush1.msra.mxu0 0.0
    %961 = vmatprep.subr.mxu0 0.0
    %962 = vmatpush1.msra.mxu0 0.0
    %963 = vmatprep.subr.mxu0 0.0
    %964 = vmatpush1.msra.mxu0 0.0
    %965 = vmatprep.subr.mxu0 0.0
    %966 = vmatpush1.msra.mxu0 0.0
    %967 = vmatprep.subr.mxu0 0.0
    %968 = vmatpush1.msra.mxu0 0.0
    %969 = vmatprep.subr.mxu0 0.0
    %970 = vmatpush1.msra.mxu0 0.0
    %971 = vmatprep.subr.mxu0 0.0
    %972 = vmatpush1.msra.mxu0 0.0
    %973 = vmatprep.mubr.f32.mxu0 0.0
    %974 = vmatmul.mubr.f32.gmra.mrb[0].mxu0 %v163
    %v975 = vpop.f32.mrb[0].mxu0
    %v976 = vadd.f32 0.0, %v975
    %v977 = vpop.f32.mrb[0].mxu0
    %978 = vdwg.mxu0
    %v980 = vsel %vm235, %v753, 0
    %982 = vmatprep.subr.mxu0 0.0
    %983 = vmatpush1.msra.mxu0 %v905
    %984 = vmatprep.subr.mxu0 0.0
    %985 = vmatpush1.msra.mxu0 0.0
    %986 = vmatprep.subr.mxu0 0.0
    %987 = vmatpush1.msra.mxu0 0.0
    %988 = vmatprep.subr.mxu0 0.0
    %989 = vmatpush1.msra.mxu0 0.0
    %990 = vmatprep.subr.mxu0 0.0
    %991 = vmatpush1.msra.mxu0 0.0
    %992 = vmatprep.subr.mxu0 0.0
    %993 = vmatpush1.msra.mxu0 0.0
    %994 = vmatprep.subr.mxu0 0.0
    %995 = vmatpush1.msra.mxu0 0.0
    %996 = vmatprep.subr.mxu0 0.0
    %997 = vmatpush1.msra.mxu0 0.0
    %998 = vmatprep.subr.mxu0 0.0
    %999 = vmatpush1.msra.mxu0 0.0
    %1000 = vmatprep.subr.mxu0 0.0
    %1001 = vmatpush1.msra.mxu0 0.0
    %1002 = vmatprep.subr.mxu0 0.0
    %1003 = vmatpush1.msra.mxu0 0.0
    %1004 = vmatprep.subr.mxu0 0.0
    %1005 = vmatpush1.msra.mxu0 0.0
    %1006 = vmatprep.subr.mxu0 0.0
    %1007 = vmatpush1.msra.mxu0 0.0
    %1008 = vmatprep.subr.mxu0 0.0
    %1009 = vmatpush1.msra.mxu0 0.0
    %1010 = vmatprep.subr.mxu0 0.0
    %1011 = vmatpush1.msra.mxu0 0.0
    %1012 = vmatprep.subr.mxu0 0.0
    %1013 = vmatpush1.msra.mxu0 0.0
    %1014 = vmatprep.subr.mxu0 0.0
    %1015 = vmatpush1.msra.mxu0 0.0
    %1016 = vmatprep.subr.mxu0 0.0
    %1017 = vmatpush1.msra.mxu0 0.0
    %1018 = vmatprep.subr.mxu0 0.0
    %1019 = vmatpush1.msra.mxu0 0.0
    %1020 = vmatprep.subr.mxu0 0.0
    %1021 = vmatpush1.msra.mxu0 0.0
    %1022 = vmatprep.subr.mxu0 0.0
    %1023 = vmatpush1.msra.mxu0 0.0
    %1024 = vmatprep.subr.mxu0 0.0
    %1025 = vmatpush1.msra.mxu0 0.0
    %1026 = vmatprep.subr.mxu0 0.0
    %1027 = vmatpush1.msra.mxu0 0.0
    %1028 = vmatprep.subr.mxu0 0.0
    %1029 = vmatpush1.msra.mxu0 0.0
    %1030 = vmatprep.subr.mxu0 0.0
    %1031 = vmatpush1.msra.mxu0 0.0
    %1032 = vmatprep.subr.mxu0 0.0
    %1033 = vmatpush1.msra.mxu0 0.0
    %1034 = vmatprep.subr.mxu0 0.0
    %1035 = vmatpush1.msra.mxu0 0.0
    %1036 = vmatprep.subr.mxu0 0.0
    %1037 = vmatpush1.msra.mxu0 0.0
    %1038 = vmatprep.subr.mxu0 0.0
    %1039 = vmatpush1.msra.mxu0 0.0
    %1040 = vmatprep.subr.mxu0 0.0
    %1041 = vmatpush1.msra.mxu0 0.0
    %1042 = vmatprep.subr.mxu0 0.0
    %1043 = vmatpush1.msra.mxu0 0.0
    %1044 = vmatprep.subr.mxu0 0.0
    %1045 = vmatpush1.msra.mxu0 0.0
    %1046 = vmatprep.mubr.f32.mxu0 0.0
    %1047 = vmatmul.mubr.f32.gmra.mrb[0].mxu0 %v980
    %v1048 = vpop.f32.mrb[0].mxu0
    %v1049 = vadd.f32 %v976, %v1048
    %v1050 = vpop.f32.mrb[0].mxu0
    %1051 = vdwg.mxu0
    %s1052 = scalar_lea.vmem %s6, 1
    %v1053 = vld [vmem:[%s1052] sm:$0x1]
    %v1055 = vlaneseq
    %v1056 = vshrl.u32 %v1055, 7
    %v1057 = vsub.s32 0, %v1056
    %v1058 = vrot.slane %v1053, %v1057
    %v1060 = vadd.f32 %v1049, %v1058
    %v1061 = vmax.f32 %v1060, 0.0
    %s1062 = scalar_lea.vmem %s7, 64
    %v1063 = vld [vmem:[%s1062] sm:$0xff]
    %v1064 = vld [vmem:[%s1062 + $0x8] sm:$0xff]
    %v1065 = vld [vmem:[%s1062 + $0x10] sm:$0xff]
    %v1066 = vld [vmem:[%s1062 + $0x18] sm:$0xff]
    %v1067 = vld [vmem:[%s1062 + $0x20] sm:$0xff]
    %v1068 = vld [vmem:[%s1062 + $0x28] sm:$0xff]
    %v1069 = vld [vmem:[%s1062 + $0x30] sm:$0xff]
    %v1070 = vld [vmem:[%s1062 + $0x38] sm:$0xff]
    %s1071 = scalar_lea.vmem %s8, 1
    %v1072 = vld [vmem:[%s1071] sm:$0x1]
    %v1074 = vlaneseq
    %v1075 = vshrl.u32 %v1074, 7
    %v1076 = vsub.s32 0, %v1075
    %v1077 = vrot.slane %v1072, %v1076
    %v1080 = vsel %vm333, %v1061, 0
    %1082 = vmatprep.subr.mxu0 0.0
    %1083 = vmatpush1.msra.mxu0 %v1063
    %1084 = vmatprep.subr.mxu0 0.0
    %1085 = vmatpush1.msra.mxu0 %v1064
    %1086 = vmatprep.subr.mxu0 0.0
    %1087 = vmatpush1.msra.mxu0 %v1065
    %1088 = vmatprep.subr.mxu0 0.0
    %1089 = vmatpush1.msra.mxu0 %v1066
    %1090 = vmatprep.subr.mxu0 0.0
    %1091 = vmatpush1.msra.mxu0 %v1067
    %1092 = vmatprep.subr.mxu0 0.0
    %1093 = vmatpush1.msra.mxu0 %v1068
    %1094 = vmatprep.subr.mxu0 0.0
    %1095 = vmatpush1.msra.mxu0 %v1069
    %1096 = vmatprep.subr.mxu0 0.0
    %1097 = vmatpush1.msra.mxu0 %v1070
    %1098 = vmatprep.subr.mxu0 0.0
    %1099 = vmatpush1.msra.mxu0 0.0
    %1100 = vmatprep.subr.mxu0 0.0
    %1101 = vmatpush1.msra.mxu0 0.0
    %1102 = vmatprep.subr.mxu0 0.0
    %1103 = vmatpush1.msra.mxu0 0.0
    %1104 = vmatprep.subr.mxu0 0.0
    %1105 = vmatpush1.msra.mxu0 0.0
    %1106 = vmatprep.subr.mxu0 0.0
    %1107 = vmatpush1.msra.mxu0 0.0
    %1108 = vmatprep.subr.mxu0 0.0
    %1109 = vmatpush1.msra.mxu0 0.0
    %1110 = vmatprep.subr.mxu0 0.0
    %1111 = vmatpush1.msra.mxu0 0.0
    %1112 = vmatprep.subr.mxu0 0.0
    %1113 = vmatpush1.msra.mxu0 0.0
    %1114 = vmatprep.subr.mxu0 0.0
    %1115 = vmatpush1.msra.mxu0 0.0
    %1116 = vmatprep.subr.mxu0 0.0
    %1117 = vmatpush1.msra.mxu0 0.0
    %1118 = vmatprep.subr.mxu0 0.0
    %1119 = vmatpush1.msra.mxu0 0.0
    %1120 = vmatprep.subr.mxu0 0.0
    %1121 = vmatpush1.msra.mxu0 0.0
    %1122 = vmatprep.subr.mxu0 0.0
    %1123 = vmatpush1.msra.mxu0 0.0
    %1124 = vmatprep.subr.mxu0 0.0
    %1125 = vmatpush1.msra.mxu0 0.0
    %1126 = vmatprep.subr.mxu0 0.0
    %1127 = vmatpush1.msra.mxu0 0.0
    %1128 = vmatprep.subr.mxu0 0.0
    %1129 = vmatpush1.msra.mxu0 0.0
    %1130 = vmatprep.subr.mxu0 0.0
    %1131 = vmatpush1.msra.mxu0 0.0
    %1132 = vmatprep.subr.mxu0 0.0
    %1133 = vmatpush1.msra.mxu0 0.0
    %1134 = vmatprep.subr.mxu0 0.0
    %1135 = vmatpush1.msra.mxu0 0.0
    %1136 = vmatprep.subr.mxu0 0.0
    %1137 = vmatpush1.msra.mxu0 0.0
    %1138 = vmatprep.subr.mxu0 0.0
    %1139 = vmatpush1.msra.mxu0 0.0
    %1140 = vmatprep.subr.mxu0 0.0
    %1141 = vmatpush1.msra.mxu0 0.0
    %1142 = vmatprep.subr.mxu0 0.0
    %1143 = vmatpush1.msra.mxu0 0.0
    %1144 = vmatprep.subr.mxu0 0.0
    %1145 = vmatpush1.msra.mxu0 0.0
    %1146 = vmatprep.mubr.f32.mxu0 0.0
    %1147 = vmatmul.mubr.f32.gmra.mrb[0].mxu0 %v1080
    %v1148 = vpop.f32.mrb[0].mxu0
    %v1149 = vadd.f32 %v1077, %v1148
    %v1150 = vpop.f32.mrb[0].mxu0
    %1151 = vdwg.mxu0
    %v1152 = vmax.f32 %v1149, 0.0
    %s1153 = scalar_lea.vmem %s9, 64
    %v1154 = vld [vmem:[%s1153] sm:$0xff]
    %v1155 = vld [vmem:[%s1153 + $0x8] sm:$0xff]
    %v1156 = vld [vmem:[%s1153 + $0x10] sm:$0xff]
    %v1157 = vld [vmem:[%s1153 + $0x18] sm:$0xff]
    %v1158 = vld [vmem:[%s1153 + $0x20] sm:$0xff]
    %v1159 = vld [vmem:[%s1153 + $0x28] sm:$0xff]
    %v1160 = vld [vmem:[%s1153 + $0x30] sm:$0xff]
    %v1161 = vld [vmem:[%s1153 + $0x38] sm:$0xff]
    %s1162 = scalar_lea.vmem %s10, 1
    %v1163 = vld [vmem:[%s1162] sm:$0x1]
    %v1165 = vlaneseq
    %v1166 = vshrl.u32 %v1165, 7
    %v1167 = vsub.s32 0, %v1166
    %v1168 = vrot.slane %v1163, %v1167
    %v1171 = vsel %vm333, %v1152, 0
    %1173 = vmatprep.subr.mxu0 0.0
    %1174 = vmatpush1.msra.mxu0 %v1154
    %1175 = vmatprep.subr.mxu0 0.0
    %1176 = vmatpush1.msra.mxu0 %v1155
    %1177 = vmatprep.subr.mxu0 0.0
    %1178 = vmatpush1.msra.mxu0 %v1156
    %1179 = vmatprep.subr.mxu0 0.0
    %1180 = vmatpush1.msra.mxu0 %v1157
    %1181 = vmatprep.subr.mxu0 0.0
    %1182 = vmatpush1.msra.mxu0 %v1158
    %1183 = vmatprep.subr.mxu0 0.0
    %1184 = vmatpush1.msra.mxu0 %v1159
    %1185 = vmatprep.subr.mxu0 0.0
    %1186 = vmatpush1.msra.mxu0 %v1160
    %1187 = vmatprep.subr.mxu0 0.0
    %1188 = vmatpush1.msra.mxu0 %v1161
    %1189 = vmatprep.subr.mxu0 0.0
    %1190 = vmatpush1.msra.mxu0 0.0
    %1191 = vmatprep.subr.mxu0 0.0
    %1192 = vmatpush1.msra.mxu0 0.0
    %1193 = vmatprep.subr.mxu0 0.0
    %1194 = vmatpush1.msra.mxu0 0.0
    %1195 = vmatprep.subr.mxu0 0.0
    %1196 = vmatpush1.msra.mxu0 0.0
    %1197 = vmatprep.subr.mxu0 0.0
    %1198 = vmatpush1.msra.mxu0 0.0
    %1199 = vmatprep.subr.mxu0 0.0
    %1200 = vmatpush1.msra.mxu0 0.0
    %1201 = vmatprep.subr.mxu0 0.0
    %1202 = vmatpush1.msra.mxu0 0.0
    %1203 = vmatprep.subr.mxu0 0.0
    %1204 = vmatpush1.msra.mxu0 0.0
    %1205 = vmatprep.subr.mxu0 0.0
    %1206 = vmatpush1.msra.mxu0 0.0
    %1207 = vmatprep.subr.mxu0 0.0
    %1208 = vmatpush1.msra.mxu0 0.0
    %1209 = vmatprep.subr.mxu0 0.0
    %1210 = vmatpush1.msra.mxu0 0.0
    %1211 = vmatprep.subr.mxu0 0.0
    %1212 = vmatpush1.msra.mxu0 0.0
    %1213 = vmatprep.subr.mxu0 0.0
    %1214 = vmatpush1.msra.mxu0 0.0
    %1215 = vmatprep.subr.mxu0 0.0
    %1216 = vmatpush1.msra.mxu0 0.0
    %1217 = vmatprep.subr.mxu0 0.0
    %1218 = vmatpush1.msra.mxu0 0.0
    %1219 = vmatprep.subr.mxu0 0.0
    %1220 = vmatpush1.msra.mxu0 0.0
    %1221 = vmatprep.subr.mxu0 0.0
    %1222 = vmatpush1.msra.mxu0 0.0
    %1223 = vmatprep.subr.mxu0 0.0
    %1224 = vmatpush1.msra.mxu0 0.0
    %1225 = vmatprep.subr.mxu0 0.0
    %1226 = vmatpush1.msra.mxu0 0.0
    %1227 = vmatprep.subr.mxu0 0.0
    %1228 = vmatpush1.msra.mxu0 0.0
    %1229 = vmatprep.subr.mxu0 0.0
    %1230 = vmatpush1.msra.mxu0 0.0
    %1231 = vmatprep.subr.mxu0 0.0
    %1232 = vmatpush1.msra.mxu0 0.0
    %1233 = vmatprep.subr.mxu0 0.0
    %1234 = vmatpush1.msra.mxu0 0.0
    %1235 = vmatprep.subr.mxu0 0.0
    %1236 = vmatpush1.msra.mxu0 0.0
    %1237 = vmatprep.mubr.f32.mxu0 0.0
    %1238 = vmatmul.mubr.f32.gmra.mrb[0].mxu0 %v1171
    %v1239 = vpop.f32.mrb[0].mxu0
    %v1240 = vadd.f32 %v1168, %v1239
    %v1241 = vpop.f32.mrb[0].mxu0
    %1242 = vdwg.mxu0
    %v1243 = vtanh.pop %v1240
    %v1244 = vmul.f32 %v1243, 2.0
    %s1245 = scalar_lea.vmem %s11, 64
    %v1246 = vld [vmem:[%s1245] sm:$0xff]
    %v1247 = vld [vmem:[%s1245 + $0x8] sm:$0xff]
    %v1248 = vld [vmem:[%s1245 + $0x10] sm:$0xff]
    %v1249 = vld [vmem:[%s1245 + $0x18] sm:$0xff]
    %v1250 = vld [vmem:[%s1245 + $0x20] sm:$0xff]
    %v1251 = vld [vmem:[%s1245 + $0x28] sm:$0xff]
    %v1252 = vld [vmem:[%s1245 + $0x30] sm:$0xff]
    %v1253 = vld [vmem:[%s1245 + $0x38] sm:$0xff]
    %s1254 = scalar_lea.vmem %s12, 1
    %v1255 = vld [vmem:[%s1254] sm:$0x1]
    %v1257 = vlaneseq
    %v1258 = vshrl.u32 %v1257, 7
    %v1259 = vsub.s32 0, %v1258
    %v1260 = vrot.slane %v1255, %v1259
    %1262 = vmatprep.subr.mxu0 0.0
    %1263 = vmatpush1.msra.mxu0 %v1246
    %1264 = vmatprep.subr.mxu0 0.0
    %1265 = vmatpush1.msra.mxu0 %v1247
    %1266 = vmatprep.subr.mxu0 0.0
    %1267 = vmatpush1.msra.mxu0 %v1248
    %1268 = vmatprep.subr.mxu0 0.0
    %1269 = vmatpush1.msra.mxu0 %v1249
    %1270 = vmatprep.subr.mxu0 0.0
    %1271 = vmatpush1.msra.mxu0 %v1250
    %1272 = vmatprep.subr.mxu0 0.0
    %1273 = vmatpush1.msra.mxu0 %v1251
    %1274 = vmatprep.subr.mxu0 0.0
    %1275 = vmatpush1.msra.mxu0 %v1252
    %1276 = vmatprep.subr.mxu0 0.0
    %1277 = vmatpush1.msra.mxu0 %v1253
    %1278 = vmatprep.subr.mxu0 0.0
    %1279 = vmatpush1.msra.mxu0 0.0
    %1280 = vmatprep.subr.mxu0 0.0
    %1281 = vmatpush1.msra.mxu0 0.0
    %1282 = vmatprep.subr.mxu0 0.0
    %1283 = vmatpush1.msra.mxu0 0.0
    %1284 = vmatprep.subr.mxu0 0.0
    %1285 = vmatpush1.msra.mxu0 0.0
    %1286 = vmatprep.subr.mxu0 0.0
    %1287 = vmatpush1.msra.mxu0 0.0
    %1288 = vmatprep.subr.mxu0 0.0
    %1289 = vmatpush1.msra.mxu0 0.0
    %1290 = vmatprep.subr.mxu0 0.0
    %1291 = vmatpush1.msra.mxu0 0.0
    %1292 = vmatprep.subr.mxu0 0.0
    %1293 = vmatpush1.msra.mxu0 0.0
    %1294 = vmatprep.subr.mxu0 0.0
    %1295 = vmatpush1.msra.mxu0 0.0
    %1296 = vmatprep.subr.mxu0 0.0
    %1297 = vmatpush1.msra.mxu0 0.0
    %1298 = vmatprep.subr.mxu0 0.0
    %1299 = vmatpush1.msra.mxu0 0.0
    %1300 = vmatprep.subr.mxu0 0.0
    %1301 = vmatpush1.msra.mxu0 0.0
    %1302 = vmatprep.subr.mxu0 0.0
    %1303 = vmatpush1.msra.mxu0 0.0
    %1304 = vmatprep.subr.mxu0 0.0
    %1305 = vmatpush1.msra.mxu0 0.0
    %1306 = vmatprep.subr.mxu0 0.0
    %1307 = vmatpush1.msra.mxu0 0.0
    %1308 = vmatprep.subr.mxu0 0.0
    %1309 = vmatpush1.msra.mxu0 0.0
    %1310 = vmatprep.subr.mxu0 0.0
    %1311 = vmatpush1.msra.mxu0 0.0
    %1312 = vmatprep.subr.mxu0 0.0
    %1313 = vmatpush1.msra.mxu0 0.0
    %1314 = vmatprep.subr.mxu0 0.0
    %1315 = vmatpush1.msra.mxu0 0.0
    %1316 = vmatprep.subr.mxu0 0.0
    %1317 = vmatpush1.msra.mxu0 0.0
    %1318 = vmatprep.subr.mxu0 0.0
    %1319 = vmatpush1.msra.mxu0 0.0
    %1320 = vmatprep.subr.mxu0 0.0
    %1321 = vmatpush1.msra.mxu0 0.0
    %1322 = vmatprep.subr.mxu0 0.0
    %1323 = vmatpush1.msra.mxu0 0.0
    %1324 = vmatprep.subr.mxu0 0.0
    %1325 = vmatpush1.msra.mxu0 0.0
    %1326 = vmatprep.mubr.f32.mxu0 0.0
    %1327 = vmatmul.mubr.f32.gmra.mrb[0].mxu0 %v1171
    %v1328 = vpop.f32.mrb[0].mxu0
    %v1329 = vadd.f32 %v1260, %v1328
    %v1330 = vpop.f32.mrb[0].mxu0
    %1331 = vdwg.mxu0
    %v1332 = vmul.f32 %v1244, 1.442695
    %v1333 = vpow.pop %v1332
    %v1334 = vmul.f32 %v903, %v1333
    %v1335 = vadd.f32 %v1334, %v1329
    %v1336 = vsel %vm235, %v1244, 0.0
    %1337 = vadd.xlane.f32.xlu0 %v1336
    %v1338 = vpop.xlane.xlu0 %1337
    %v1339 = vadd.f32 %v598, %v1338
    %s1340 = scalar_lea.vmem %s13, 8
    %v1341 = vld [vmem:[%s1340] sm:$0xff]
    %s1342 = scalar_lea.vmem %s15, 8
    %v1343 = vld [vmem:[%s1342] sm:$0xff]
    %v1345 = vsel %vm235, %v1335, 0
    %1347 = vmatprep.subr.mxu0 0.0
    %1348 = vmatpush1.msra.mxu0 %v1343
    %1349 = vmatprep.subr.mxu0 0.0
    %1350 = vmatpush1.msra.mxu0 0.0
    %1351 = vmatprep.subr.mxu0 0.0
    %1352 = vmatpush1.msra.mxu0 0.0
    %1353 = vmatprep.subr.mxu0 0.0
    %1354 = vmatpush1.msra.mxu0 0.0
    %1355 = vmatprep.subr.mxu0 0.0
    %1356 = vmatpush1.msra.mxu0 0.0
    %1357 = vmatprep.subr.mxu0 0.0
    %1358 = vmatpush1.msra.mxu0 0.0
    %1359 = vmatprep.subr.mxu0 0.0
    %1360 = vmatpush1.msra.mxu0 0.0
    %1361 = vmatprep.subr.mxu0 0.0
    %1362 = vmatpush1.msra.mxu0 0.0
    %1363 = vmatprep.subr.mxu0 0.0
    %1364 = vmatpush1.msra.mxu0 0.0
    %1365 = vmatprep.subr.mxu0 0.0
    %1366 = vmatpush1.msra.mxu0 0.0
    %1367 = vmatprep.subr.mxu0 0.0
    %1368 = vmatpush1.msra.mxu0 0.0
    %1369 = vmatprep.subr.mxu0 0.0
    %1370 = vmatpush1.msra.mxu0 0.0
    %1371 = vmatprep.subr.mxu0 0.0
    %1372 = vmatpush1.msra.mxu0 0.0
    %1373 = vmatprep.subr.mxu0 0.0
    %1374 = vmatpush1.msra.mxu0 0.0
    %1375 = vmatprep.subr.mxu0 0.0
    %1376 = vmatpush1.msra.mxu0 0.0
    %1377 = vmatprep.subr.mxu0 0.0
    %1378 = vmatpush1.msra.mxu0 0.0
    %1379 = vmatprep.subr.mxu0 0.0
    %1380 = vmatpush1.msra.mxu0 0.0
    %1381 = vmatprep.subr.mxu0 0.0
    %1382 = vmatpush1.msra.mxu0 0.0
    %1383 = vmatprep.subr.mxu0 0.0
    %1384 = vmatpush1.msra.mxu0 0.0
    %1385 = vmatprep.subr.mxu0 0.0
    %1386 = vmatpush1.msra.mxu0 0.0
    %1387 = vmatprep.subr.mxu0 0.0
    %1388 = vmatpush1.msra.mxu0 0.0
    %1389 = vmatprep.subr.mxu0 0.0
    %1390 = vmatpush1.msra.mxu0 0.0
    %1391 = vmatprep.subr.mxu0 0.0
    %1392 = vmatpush1.msra.mxu0 0.0
    %1393 = vmatprep.subr.mxu0 0.0
    %1394 = vmatpush1.msra.mxu0 0.0
    %1395 = vmatprep.subr.mxu0 0.0
    %1396 = vmatpush1.msra.mxu0 0.0
    %1397 = vmatprep.subr.mxu0 0.0
    %1398 = vmatpush1.msra.mxu0 0.0
    %1399 = vmatprep.subr.mxu0 0.0
    %1400 = vmatpush1.msra.mxu0 0.0
    %1401 = vmatprep.subr.mxu0 0.0
    %1402 = vmatpush1.msra.mxu0 0.0
    %1403 = vmatprep.subr.mxu0 0.0
    %1404 = vmatpush1.msra.mxu0 0.0
    %1405 = vmatprep.subr.mxu0 0.0
    %1406 = vmatpush1.msra.mxu0 0.0
    %1407 = vmatprep.subr.mxu0 0.0
    %1408 = vmatpush1.msra.mxu0 0.0
    %1409 = vmatprep.subr.mxu0 0.0
    %1410 = vmatpush1.msra.mxu0 0.0
    %1411 = vmatprep.mubr.f32.mxu0 0.0
    %1412 = vmatmul.mubr.f32.gmra.mrb[0].mxu0 %v1345
    %v1413 = vpop.f32.mrb[0].mxu0
    %v1414 = vadd.f32 0.0, %v1413
    %v1415 = vpop.f32.mrb[0].mxu0
    %1416 = vdwg.mxu0
    %1417 = vmatprep.subr.mxu0 0.0
    %1418 = vmatpush1.msra.mxu0 %v1341
    %1419 = vmatprep.subr.mxu0 0.0
    %1420 = vmatpush1.msra.mxu0 0.0
    %1421 = vmatprep.subr.mxu0 0.0
    %1422 = vmatpush1.msra.mxu0 0.0
    %1423 = vmatprep.subr.mxu0 0.0
    %1424 = vmatpush1.msra.mxu0 0.0
    %1425 = vmatprep.subr.mxu0 0.0
    %1426 = vmatpush1.msra.mxu0 0.0
    %1427 = vmatprep.subr.mxu0 0.0
    %1428 = vmatpush1.msra.mxu0 0.0
    %1429 = vmatprep.subr.mxu0 0.0
    %1430 = vmatpush1.msra.mxu0 0.0
    %1431 = vmatprep.subr.mxu0 0.0
    %1432 = vmatpush1.msra.mxu0 0.0
    %1433 = vmatprep.subr.mxu0 0.0
    %1434 = vmatpush1.msra.mxu0 0.0
    %1435 = vmatprep.subr.mxu0 0.0
    %1436 = vmatpush1.msra.mxu0 0.0
    %1437 = vmatprep.subr.mxu0 0.0
    %1438 = vmatpush1.msra.mxu0 0.0
    %1439 = vmatprep.subr.mxu0 0.0
    %1440 = vmatpush1.msra.mxu0 0.0
    %1441 = vmatprep.subr.mxu0 0.0
    %1442 = vmatpush1.msra.mxu0 0.0
    %1443 = vmatprep.subr.mxu0 0.0
    %1444 = vmatpush1.msra.mxu0 0.0
    %1445 = vmatprep.subr.mxu0 0.0
    %1446 = vmatpush1.msra.mxu0 0.0
    %1447 = vmatprep.subr.mxu0 0.0
    %1448 = vmatpush1.msra.mxu0 0.0
    %1449 = vmatprep.subr.mxu0 0.0
    %1450 = vmatpush1.msra.mxu0 0.0
    %1451 = vmatprep.subr.mxu0 0.0
    %1452 = vmatpush1.msra.mxu0 0.0
    %1453 = vmatprep.subr.mxu0 0.0
    %1454 = vmatpush1.msra.mxu0 0.0
    %1455 = vmatprep.subr.mxu0 0.0
    %1456 = vmatpush1.msra.mxu0 0.0
    %1457 = vmatprep.subr.mxu0 0.0
    %1458 = vmatpush1.msra.mxu0 0.0
    %1459 = vmatprep.subr.mxu0 0.0
    %1460 = vmatpush1.msra.mxu0 0.0
    %1461 = vmatprep.subr.mxu0 0.0
    %1462 = vmatpush1.msra.mxu0 0.0
    %1463 = vmatprep.subr.mxu0 0.0
    %1464 = vmatpush1.msra.mxu0 0.0
    %1465 = vmatprep.subr.mxu0 0.0
    %1466 = vmatpush1.msra.mxu0 0.0
    %1467 = vmatprep.subr.mxu0 0.0
    %1468 = vmatpush1.msra.mxu0 0.0
    %1469 = vmatprep.subr.mxu0 0.0
    %1470 = vmatpush1.msra.mxu0 0.0
    %1471 = vmatprep.subr.mxu0 0.0
    %1472 = vmatpush1.msra.mxu0 0.0
    %1473 = vmatprep.subr.mxu0 0.0
    %1474 = vmatpush1.msra.mxu0 0.0
    %1475 = vmatprep.subr.mxu0 0.0
    %1476 = vmatpush1.msra.mxu0 0.0
    %1477 = vmatprep.subr.mxu0 0.0
    %1478 = vmatpush1.msra.mxu0 0.0
    %1479 = vmatprep.subr.mxu0 0.0
    %1480 = vmatpush1.msra.mxu0 0.0
    %1481 = vmatprep.mubr.f32.mxu0 0.0
    %1482 = vmatmul.mubr.f32.gmra.mrb[0].mxu0 %v980
    %v1483 = vpop.f32.mrb[0].mxu0
    %v1484 = vadd.f32 %v1414, %v1483
    %v1485 = vpop.f32.mrb[0].mxu0
    %1486 = vdwg.mxu0
    %s1487 = scalar_lea.vmem %s17, 1
    %v1488 = vld [vmem:[%s1487] sm:$0x1]
    %v1490 = vlaneseq
    %v1491 = vshrl.u32 %v1490, 7
    %v1492 = vsub.s32 0, %v1491
    %v1493 = vrot.slane %v1488, %v1492
    %v1495 = vadd.f32 %v1484, %v1493
    %s1496 = scalar_lea.vmem %s14, 8
    %v1497 = vld [vmem:[%s1496] sm:$0xff]
    %s1498 = scalar_lea.vmem %s16, 8
    %v1499 = vld [vmem:[%s1498] sm:$0xff]
    %1500 = vmatprep.subr.mxu0 0.0
    %1501 = vmatpush1.msra.mxu0 %v1499
    %1502 = vmatprep.subr.mxu0 0.0
    %1503 = vmatpush1.msra.mxu0 0.0
    %1504 = vmatprep.subr.mxu0 0.0
    %1505 = vmatpush1.msra.mxu0 0.0
    %1506 = vmatprep.subr.mxu0 0.0
    %1507 = vmatpush1.msra.mxu0 0.0
    %1508 = vmatprep.subr.mxu0 0.0
    %1509 = vmatpush1.msra.mxu0 0.0
    %1510 = vmatprep.subr.mxu0 0.0
    %1511 = vmatpush1.msra.mxu0 0.0
    %1512 = vmatprep.subr.mxu0 0.0
    %1513 = vmatpush1.msra.mxu0 0.0
    %1514 = vmatprep.subr.mxu0 0.0
    %1515 = vmatpush1.msra.mxu0 0.0
    %1516 = vmatprep.subr.mxu0 0.0
    %1517 = vmatpush1.msra.mxu0 0.0
    %1518 = vmatprep.subr.mxu0 0.0
    %1519 = vmatpush1.msra.mxu0 0.0
    %1520 = vmatprep.subr.mxu0 0.0
    %1521 = vmatpush1.msra.mxu0 0.0
    %1522 = vmatprep.subr.mxu0 0.0
    %1523 = vmatpush1.msra.mxu0 0.0
    %1524 = vmatprep.subr.mxu0 0.0
    %1525 = vmatpush1.msra.mxu0 0.0
    %1526 = vmatprep.subr.mxu0 0.0
    %1527 = vmatpush1.msra.mxu0 0.0
    %1528 = vmatprep.subr.mxu0 0.0
    %1529 = vmatpush1.msra.mxu0 0.0
    %1530 = vmatprep.subr.mxu0 0.0
    %1531 = vmatpush1.msra.mxu0 0.0
    %1532 = vmatprep.subr.mxu0 0.0
    %1533 = vmatpush1.msra.mxu0 0.0
    %1534 = vmatprep.subr.mxu0 0.0
    %1535 = vmatpush1.msra.mxu0 0.0
    %1536 = vmatprep.subr.mxu0 0.0
    %1537 = vmatpush1.msra.mxu0 0.0
    %1538 = vmatprep.subr.mxu0 0.0
    %1539 = vmatpush1.msra.mxu0 0.0
    %1540 = vmatprep.subr.mxu0 0.0
    %1541 = vmatpush1.msra.mxu0 0.0
    %1542 = vmatprep.subr.mxu0 0.0
    %1543 = vmatpush1.msra.mxu0 0.0
    %1544 = vmatprep.subr.mxu0 0.0
    %1545 = vmatpush1.msra.mxu0 0.0
    %1546 = vmatprep.subr.mxu0 0.0
    %1547 = vmatpush1.msra.mxu0 0.0
    %1548 = vmatprep.subr.mxu0 0.0
    %1549 = vmatpush1.msra.mxu0 0.0
    %1550 = vmatprep.subr.mxu0 0.0
    %1551 = vmatpush1.msra.mxu0 0.0
    %1552 = vmatprep.subr.mxu0 0.0
    %1553 = vmatpush1.msra.mxu0 0.0
    %1554 = vmatprep.subr.mxu0 0.0
    %1555 = vmatpush1.msra.mxu0 0.0
    %1556 = vmatprep.subr.mxu0 0.0
    %1557 = vmatpush1.msra.mxu0 0.0
    %1558 = vmatprep.subr.mxu0 0.0
    %1559 = vmatpush1.msra.mxu0 0.0
    %1560 = vmatprep.subr.mxu0 0.0
    %1561 = vmatpush1.msra.mxu0 0.0
    %1562 = vmatprep.subr.mxu0 0.0
    %1563 = vmatpush1.msra.mxu0 0.0
    %1564 = vmatprep.mubr.f32.mxu0 0.0
    %1565 = vmatmul.mubr.f32.gmra.mrb[0].mxu0 %v1345
    %v1566 = vpop.f32.mrb[0].mxu0
    %v1567 = vadd.f32 0.0, %v1566
    %v1568 = vpop.f32.mrb[0].mxu0
    %1569 = vdwg.mxu0
    %1570 = vmatprep.subr.mxu0 0.0
    %1571 = vmatpush1.msra.mxu0 %v1497
    %1572 = vmatprep.subr.mxu0 0.0
    %1573 = vmatpush1.msra.mxu0 0.0
    %1574 = vmatprep.subr.mxu0 0.0
    %1575 = vmatpush1.msra.mxu0 0.0
    %1576 = vmatprep.subr.mxu0 0.0
    %1577 = vmatpush1.msra.mxu0 0.0
    %1578 = vmatprep.subr.mxu0 0.0
    %1579 = vmatpush1.msra.mxu0 0.0
    %1580 = vmatprep.subr.mxu0 0.0
    %1581 = vmatpush1.msra.mxu0 0.0
    %1582 = vmatprep.subr.mxu0 0.0
    %1583 = vmatpush1.msra.mxu0 0.0
    %1584 = vmatprep.subr.mxu0 0.0
    %1585 = vmatpush1.msra.mxu0 0.0
    %1586 = vmatprep.subr.mxu0 0.0
    %1587 = vmatpush1.msra.mxu0 0.0
    %1588 = vmatprep.subr.mxu0 0.0
    %1589 = vmatpush1.msra.mxu0 0.0
    %1590 = vmatprep.subr.mxu0 0.0
    %1591 = vmatpush1.msra.mxu0 0.0
    %1592 = vmatprep.subr.mxu0 0.0
    %1593 = vmatpush1.msra.mxu0 0.0
    %1594 = vmatprep.subr.mxu0 0.0
    %1595 = vmatpush1.msra.mxu0 0.0
    %1596 = vmatprep.subr.mxu0 0.0
    %1597 = vmatpush1.msra.mxu0 0.0
    %1598 = vmatprep.subr.mxu0 0.0
    %1599 = vmatpush1.msra.mxu0 0.0
    %1600 = vmatprep.subr.mxu0 0.0
    %1601 = vmatpush1.msra.mxu0 0.0
    %1602 = vmatprep.subr.mxu0 0.0
    %1603 = vmatpush1.msra.mxu0 0.0
    %1604 = vmatprep.subr.mxu0 0.0
    %1605 = vmatpush1.msra.mxu0 0.0
    %1606 = vmatprep.subr.mxu0 0.0
    %1607 = vmatpush1.msra.mxu0 0.0
    %1608 = vmatprep.subr.mxu0 0.0
    %1609 = vmatpush1.msra.mxu0 0.0
    %1610 = vmatprep.subr.mxu0 0.0
    %1611 = vmatpush1.msra.mxu0 0.0
    %1612 = vmatprep.subr.mxu0 0.0
    %1613 = vmatpush1.msra.mxu0 0.0
    %1614 = vmatprep.subr.mxu0 0.0
    %1615 = vmatpush1.msra.mxu0 0.0
    %1616 = vmatprep.subr.mxu0 0.0
    %1617 = vmatpush1.msra.mxu0 0.0
    %1618 = vmatprep.subr.mxu0 0.0
    %1619 = vmatpush1.msra.mxu0 0.0
    %1620 = vmatprep.subr.mxu0 0.0
    %1621 = vmatpush1.msra.mxu0 0.0
    %1622 = vmatprep.subr.mxu0 0.0
    %1623 = vmatpush1.msra.mxu0 0.0
    %1624 = vmatprep.subr.mxu0 0.0
    %1625 = vmatpush1.msra.mxu0 0.0
    %1626 = vmatprep.subr.mxu0 0.0
    %1627 = vmatpush1.msra.mxu0 0.0
    %1628 = vmatprep.subr.mxu0 0.0
    %1629 = vmatpush1.msra.mxu0 0.0
    %1630 = vmatprep.subr.mxu0 0.0
    %1631 = vmatpush1.msra.mxu0 0.0
    %1632 = vmatprep.subr.mxu0 0.0
    %1633 = vmatpush1.msra.mxu0 0.0
    %1634 = vmatprep.mubr.f32.mxu0 0.0
    %1635 = vmatmul.mubr.f32.gmra.mrb[0].mxu0 %v980
    %v1636 = vpop.f32.mrb[0].mxu0
    %v1637 = vadd.f32 %v1567, %v1636
    %v1638 = vpop.f32.mrb[0].mxu0
    %1639 = vdwg.mxu0
    %s1640 = scalar_lea.vmem %s18, 1
    %v1641 = vld [vmem:[%s1640] sm:$0x1]
    %v1643 = vlaneseq
    %v1644 = vshrl.u32 %v1643, 7
    %v1645 = vsub.s32 0, %v1644
    %v1646 = vrot.slane %v1641, %v1645
    %v1648 = vadd.f32 %v1637, %v1646
    %s1649 = scalar_lea.vmem %s4, 16
    %v1650 = vld [vmem:[%s1649] sm:$0xff]
    %s1651 = scalar_lea.vmem %s5, 32
    %v1652 = vld [vmem:[%s1651] sm:$0xff]
    %v1653 = vld [vmem:[%s1651 + $0x8] sm:$0xff]
    %1654 = vmatprep.subr.mxu0 0.0
    %1655 = vmatpush1.msra.mxu0 %v1652
    %1656 = vmatprep.subr.mxu0 0.0
    %1657 = vmatpush1.msra.mxu0 %v1653
    %1658 = vmatprep.subr.mxu0 0.0
    %1659 = vmatpush1.msra.mxu0 0.0
    %1660 = vmatprep.subr.mxu0 0.0
    %1661 = vmatpush1.msra.mxu0 0.0
    %1662 = vmatprep.subr.mxu0 0.0
    %1663 = vmatpush1.msra.mxu0 0.0
    %1664 = vmatprep.subr.mxu0 0.0
    %1665 = vmatpush1.msra.mxu0 0.0
    %1666 = vmatprep.subr.mxu0 0.0
    %1667 = vmatpush1.msra.mxu0 0.0
    %1668 = vmatprep.subr.mxu0 0.0
    %1669 = vmatpush1.msra.mxu0 0.0
    %1670 = vmatprep.subr.mxu0 0.0
    %1671 = vmatpush1.msra.mxu0 0.0
    %1672 = vmatprep.subr.mxu0 0.0
    %1673 = vmatpush1.msra.mxu0 0.0
    %1674 = vmatprep.subr.mxu0 0.0
    %1675 = vmatpush1.msra.mxu0 0.0
    %1676 = vmatprep.subr.mxu0 0.0
    %1677 = vmatpush1.msra.mxu0 0.0
    %1678 = vmatprep.subr.mxu0 0.0
    %1679 = vmatpush1.msra.mxu0 0.0
    %1680 = vmatprep.subr.mxu0 0.0
    %1681 = vmatpush1.msra.mxu0 0.0
    %1682 = vmatprep.subr.mxu0 0.0
    %1683 = vmatpush1.msra.mxu0 0.0
    %1684 = vmatprep.subr.mxu0 0.0
    %1685 = vmatpush1.msra.mxu0 0.0
    %1686 = vmatprep.subr.mxu0 0.0
    %1687 = vmatpush1.msra.mxu0 0.0
    %1688 = vmatprep.subr.mxu0 0.0
    %1689 = vmatpush1.msra.mxu0 0.0
    %1690 = vmatprep.subr.mxu0 0.0
    %1691 = vmatpush1.msra.mxu0 0.0
    %1692 = vmatprep.subr.mxu0 0.0
    %1693 = vmatpush1.msra.mxu0 0.0
    %1694 = vmatprep.subr.mxu0 0.0
    %1695 = vmatpush1.msra.mxu0 0.0
    %1696 = vmatprep.subr.mxu0 0.0
    %1697 = vmatpush1.msra.mxu0 0.0
    %1698 = vmatprep.subr.mxu0 0.0
    %1699 = vmatpush1.msra.mxu0 0.0
    %1700 = vmatprep.subr.mxu0 0.0
    %1701 = vmatpush1.msra.mxu0 0.0
    %1702 = vmatprep.subr.mxu0 0.0
    %1703 = vmatpush1.msra.mxu0 0.0
    %1704 = vmatprep.subr.mxu0 0.0
    %1705 = vmatpush1.msra.mxu0 0.0
    %1706 = vmatprep.subr.mxu0 0.0
    %1707 = vmatpush1.msra.mxu0 0.0
    %1708 = vmatprep.subr.mxu0 0.0
    %1709 = vmatpush1.msra.mxu0 0.0
    %1710 = vmatprep.subr.mxu0 0.0
    %1711 = vmatpush1.msra.mxu0 0.0
    %1712 = vmatprep.subr.mxu0 0.0
    %1713 = vmatpush1.msra.mxu0 0.0
    %1714 = vmatprep.subr.mxu0 0.0
    %1715 = vmatpush1.msra.mxu0 0.0
    %1716 = vmatprep.subr.mxu0 0.0
    %1717 = vmatpush1.msra.mxu0 0.0
    %1718 = vmatprep.mubr.f32.mxu0 0.0
    %1719 = vmatmul.mubr.f32.gmra.mrb[0].mxu0 %v163
    %v1720 = vpop.f32.mrb[0].mxu0
    %v1721 = vadd.f32 0.0, %v1720
    %v1722 = vpop.f32.mrb[0].mxu0
    %1723 = vdwg.mxu0
    %v1725 = vsel %vm235, %v1495, 0
    %1727 = vmatprep.subr.mxu0 0.0
    %1728 = vmatpush1.msra.mxu0 %v1650
    %1729 = vmatprep.subr.mxu0 0.0
    %1730 = vmatpush1.msra.mxu0 0.0
    %1731 = vmatprep.subr.mxu0 0.0
    %1732 = vmatpush1.msra.mxu0 0.0
    %1733 = vmatprep.subr.mxu0 0.0
    %1734 = vmatpush1.msra.mxu0 0.0
    %1735 = vmatprep.subr.mxu0 0.0
    %1736 = vmatpush1.msra.mxu0 0.0
    %1737 = vmatprep.subr.mxu0 0.0
    %1738 = vmatpush1.msra.mxu0 0.0
    %1739 = vmatprep.subr.mxu0 0.0
    %1740 = vmatpush1.msra.mxu0 0.0
    %1741 = vmatprep.subr.mxu0 0.0
    %1742 = vmatpush1.msra.mxu0 0.0
    %1743 = vmatprep.subr.mxu0 0.0
    %1744 = vmatpush1.msra.mxu0 0.0
    %1745 = vmatprep.subr.mxu0 0.0
    %1746 = vmatpush1.msra.mxu0 0.0
    %1747 = vmatprep.subr.mxu0 0.0
    %1748 = vmatpush1.msra.mxu0 0.0
    %1749 = vmatprep.subr.mxu0 0.0
    %1750 = vmatpush1.msra.mxu0 0.0
    %1751 = vmatprep.subr.mxu0 0.0
    %1752 = vmatpush1.msra.mxu0 0.0
    %1753 = vmatprep.subr.mxu0 0.0
    %1754 = vmatpush1.msra.mxu0 0.0
    %1755 = vmatprep.subr.mxu0 0.0
    %1756 = vmatpush1.msra.mxu0 0.0
    %1757 = vmatprep.subr.mxu0 0.0
    %1758 = vmatpush1.msra.mxu0 0.0
    %1759 = vmatprep.subr.mxu0 0.0
    %1760 = vmatpush1.msra.mxu0 0.0
    %1761 = vmatprep.subr.mxu0 0.0
    %1762 = vmatpush1.msra.mxu0 0.0
    %1763 = vmatprep.subr.mxu0 0.0
    %1764 = vmatpush1.msra.mxu0 0.0
    %1765 = vmatprep.subr.mxu0 0.0
    %1766 = vmatpush1.msra.mxu0 0.0
    %1767 = vmatprep.subr.mxu0 0.0
    %1768 = vmatpush1.msra.mxu0 0.0
    %1769 = vmatprep.subr.mxu0 0.0
    %1770 = vmatpush1.msra.mxu0 0.0
    %1771 = vmatprep.subr.mxu0 0.0
    %1772 = vmatpush1.msra.mxu0 0.0
    %1773 = vmatprep.subr.mxu0 0.0
    %1774 = vmatpush1.msra.mxu0 0.0
    %1775 = vmatprep.subr.mxu0 0.0
    %1776 = vmatpush1.msra.mxu0 0.0
    %1777 = vmatprep.subr.mxu0 0.0
    %1778 = vmatpush1.msra.mxu0 0.0
    %1779 = vmatprep.subr.mxu0 0.0
    %1780 = vmatpush1.msra.mxu0 0.0
    %1781 = vmatprep.subr.mxu0 0.0
    %1782 = vmatpush1.msra.mxu0 0.0
    %1783 = vmatprep.subr.mxu0 0.0
    %1784 = vmatpush1.msra.mxu0 0.0
    %1785 = vmatprep.subr.mxu0 0.0
    %1786 = vmatpush1.msra.mxu0 0.0
    %1787 = vmatprep.subr.mxu0 0.0
    %1788 = vmatpush1.msra.mxu0 0.0
    %1789 = vmatprep.subr.mxu0 0.0
    %1790 = vmatpush1.msra.mxu0 0.0
    %1791 = vmatprep.mubr.f32.mxu0 0.0
    %1792 = vmatmul.mubr.f32.gmra.mrb[0].mxu0 %v1725
    %v1793 = vpop.f32.mrb[0].mxu0
    %v1794 = vadd.f32 %v1721, %v1793
    %v1795 = vpop.f32.mrb[0].mxu0
    %1796 = vdwg.mxu0
    %s1797 = scalar_lea.vmem %s6, 2
    %v1798 = vld [vmem:[%s1797] sm:$0x1]
    %v1800 = vlaneseq
    %v1801 = vshrl.u32 %v1800, 7
    %v1802 = vsub.s32 0, %v1801
    %v1803 = vrot.slane %v1798, %v1802
    %v1805 = vadd.f32 %v1794, %v1803
    %v1806 = vmax.f32 %v1805, 0.0
    %s1807 = scalar_lea.vmem %s7, 128
    %v1808 = vld [vmem:[%s1807] sm:$0xff]
    %v1809 = vld [vmem:[%s1807 + $0x8] sm:$0xff]
    %v1810 = vld [vmem:[%s1807 + $0x10] sm:$0xff]
    %v1811 = vld [vmem:[%s1807 + $0x18] sm:$0xff]
    %v1812 = vld [vmem:[%s1807 + $0x20] sm:$0xff]
    %v1813 = vld [vmem:[%s1807 + $0x28] sm:$0xff]
    %v1814 = vld [vmem:[%s1807 + $0x30] sm:$0xff]
    %v1815 = vld [vmem:[%s1807 + $0x38] sm:$0xff]
    %s1816 = scalar_lea.vmem %s8, 2
    %v1817 = vld [vmem:[%s1816] sm:$0x1]
    %v1819 = vlaneseq
    %v1820 = vshrl.u32 %v1819, 7
    %v1821 = vsub.s32 0, %v1820
    %v1822 = vrot.slane %v1817, %v1821
    %v1825 = vsel %vm333, %v1806, 0
    %1827 = vmatprep.subr.mxu0 0.0
    %1828 = vmatpush1.msra.mxu0 %v1808
    %1829 = vmatprep.subr.mxu0 0.0
    %1830 = vmatpush1.msra.mxu0 %v1809
    %1831 = vmatprep.subr.mxu0 0.0
    %1832 = vmatpush1.msra.mxu0 %v1810
    %1833 = vmatprep.subr.mxu0 0.0
    %1834 = vmatpush1.msra.mxu0 %v1811
    %1835 = vmatprep.subr.mxu0 0.0
    %1836 = vmatpush1.msra.mxu0 %v1812
    %1837 = vmatprep.subr.mxu0 0.0
    %1838 = vmatpush1.msra.mxu0 %v1813
    %1839 = vmatprep.subr.mxu0 0.0
    %1840 = vmatpush1.msra.mxu0 %v1814
    %1841 = vmatprep.subr.mxu0 0.0
    %1842 = vmatpush1.msra.mxu0 %v1815
    %1843 = vmatprep.subr.mxu0 0.0
    %1844 = vmatpush1.msra.mxu0 0.0
    %1845 = vmatprep.subr.mxu0 0.0
    %1846 = vmatpush1.msra.mxu0 0.0
    %1847 = vmatprep.subr.mxu0 0.0
    %1848 = vmatpush1.msra.mxu0 0.0
    %1849 = vmatprep.subr.mxu0 0.0
    %1850 = vmatpush1.msra.mxu0 0.0
    %1851 = vmatprep.subr.mxu0 0.0
    %1852 = vmatpush1.msra.mxu0 0.0
    %1853 = vmatprep.subr.mxu0 0.0
    %1854 = vmatpush1.msra.mxu0 0.0
    %1855 = vmatprep.subr.mxu0 0.0
    %1856 = vmatpush1.msra.mxu0 0.0
    %1857 = vmatprep.subr.mxu0 0.0
    %1858 = vmatpush1.msra.mxu0 0.0
    %1859 = vmatprep.subr.mxu0 0.0
    %1860 = vmatpush1.msra.mxu0 0.0
    %1861 = vmatprep.subr.mxu0 0.0
    %1862 = vmatpush1.msra.mxu0 0.0
    %1863 = vmatprep.subr.mxu0 0.0
    %1864 = vmatpush1.msra.mxu0 0.0
    %1865 = vmatprep.subr.mxu0 0.0
    %1866 = vmatpush1.msra.mxu0 0.0
    %1867 = vmatprep.subr.mxu0 0.0
    %1868 = vmatpush1.msra.mxu0 0.0
    %1869 = vmatprep.subr.mxu0 0.0
    %1870 = vmatpush1.msra.mxu0 0.0
    %1871 = vmatprep.subr.mxu0 0.0
    %1872 = vmatpush1.msra.mxu0 0.0
    %1873 = vmatprep.subr.mxu0 0.0
    %1874 = vmatpush1.msra.mxu0 0.0
    %1875 = vmatprep.subr.mxu0 0.0
    %1876 = vmatpush1.msra.mxu0 0.0
    %1877 = vmatprep.subr.mxu0 0.0
    %1878 = vmatpush1.msra.mxu0 0.0
    %1879 = vmatprep.subr.mxu0 0.0
    %1880 = vmatpush1.msra.mxu0 0.0
    %1881 = vmatprep.subr.mxu0 0.0
    %1882 = vmatpush1.msra.mxu0 0.0
    %1883 = vmatprep.subr.mxu0 0.0
    %1884 = vmatpush1.msra.mxu0 0.0
    %1885 = vmatprep.subr.mxu0 0.0
    %1886 = vmatpush1.msra.mxu0 0.0
    %1887 = vmatprep.subr.mxu0 0.0
    %1888 = vmatpush1.msra.mxu0 0.0
    %1889 = vmatprep.subr.mxu0 0.0
    %1890 = vmatpush1.msra.mxu0 0.0
    %1891 = vmatprep.mubr.f32.mxu0 0.0
    %1892 = vmatmul.mubr.f32.gmra.mrb[0].mxu0 %v1825
    %v1893 = vpop.f32.mrb[0].mxu0
    %v1894 = vadd.f32 %v1822, %v1893
    %v1895 = vpop.f32.mrb[0].mxu0
    %1896 = vdwg.mxu0
    %v1897 = vmax.f32 %v1894, 0.0
    %s1898 = scalar_lea.vmem %s9, 128
    %v1899 = vld [vmem:[%s1898] sm:$0xff]
    %v1900 = vld [vmem:[%s1898 + $0x8] sm:$0xff]
    %v1901 = vld [vmem:[%s1898 + $0x10] sm:$0xff]
    %v1902 = vld [vmem:[%s1898 + $0x18] sm:$0xff]
    %v1903 = vld [vmem:[%s1898 + $0x20] sm:$0xff]
    %v1904 = vld [vmem:[%s1898 + $0x28] sm:$0xff]
    %v1905 = vld [vmem:[%s1898 + $0x30] sm:$0xff]
    %v1906 = vld [vmem:[%s1898 + $0x38] sm:$0xff]
    %s1907 = scalar_lea.vmem %s10, 2
    %v1908 = vld [vmem:[%s1907] sm:$0x1]
    %v1910 = vlaneseq
    %v1911 = vshrl.u32 %v1910, 7
    %v1912 = vsub.s32 0, %v1911
    %v1913 = vrot.slane %v1908, %v1912
    %v1916 = vsel %vm333, %v1897, 0
    %1918 = vmatprep.subr.mxu0 0.0
    %1919 = vmatpush1.msra.mxu0 %v1899
    %1920 = vmatprep.subr.mxu0 0.0
    %1921 = vmatpush1.msra.mxu0 %v1900
    %1922 = vmatprep.subr.mxu0 0.0
    %1923 = vmatpush1.msra.mxu0 %v1901
    %1924 = vmatprep.subr.mxu0 0.0
    %1925 = vmatpush1.msra.mxu0 %v1902
    %1926 = vmatprep.subr.mxu0 0.0
    %1927 = vmatpush1.msra.mxu0 %v1903
    %1928 = vmatprep.subr.mxu0 0.0
    %1929 = vmatpush1.msra.mxu0 %v1904
    %1930 = vmatprep.subr.mxu0 0.0
    %1931 = vmatpush1.msra.mxu0 %v1905
    %1932 = vmatprep.subr.mxu0 0.0
    %1933 = vmatpush1.msra.mxu0 %v1906
    %1934 = vmatprep.subr.mxu0 0.0
    %1935 = vmatpush1.msra.mxu0 0.0
    %1936 = vmatprep.subr.mxu0 0.0
    %1937 = vmatpush1.msra.mxu0 0.0
    %1938 = vmatprep.subr.mxu0 0.0
    %1939 = vmatpush1.msra.mxu0 0.0
    %1940 = vmatprep.subr.mxu0 0.0
    %1941 = vmatpush1.msra.mxu0 0.0
    %1942 = vmatprep.subr.mxu0 0.0
    %1943 = vmatpush1.msra.mxu0 0.0
    %1944 = vmatprep.subr.mxu0 0.0
    %1945 = vmatpush1.msra.mxu0 0.0
    %1946 = vmatprep.subr.mxu0 0.0
    %1947 = vmatpush1.msra.mxu0 0.0
    %1948 = vmatprep.subr.mxu0 0.0
    %1949 = vmatpush1.msra.mxu0 0.0
    %1950 = vmatprep.subr.mxu0 0.0
    %1951 = vmatpush1.msra.mxu0 0.0
    %1952 = vmatprep.subr.mxu0 0.0
    %1953 = vmatpush1.msra.mxu0 0.0
    %1954 = vmatprep.subr.mxu0 0.0
    %1955 = vmatpush1.msra.mxu0 0.0
    %1956 = vmatprep.subr.mxu0 0.0
    %1957 = vmatpush1.msra.mxu0 0.0
    %1958 = vmatprep.subr.mxu0 0.0
    %1959 = vmatpush1.msra.mxu0 0.0
    %1960 = vmatprep.subr.mxu0 0.0
    %1961 = vmatpush1.msra.mxu0 0.0
    %1962 = vmatprep.subr.mxu0 0.0
    %1963 = vmatpush1.msra.mxu0 0.0
    %1964 = vmatprep.subr.mxu0 0.0
    %1965 = vmatpush1.msra.mxu0 0.0
    %1966 = vmatprep.subr.mxu0 0.0
    %1967 = vmatpush1.msra.mxu0 0.0
    %1968 = vmatprep.subr.mxu0 0.0
    %1969 = vmatpush1.msra.mxu0 0.0
    %1970 = vmatprep.subr.mxu0 0.0
    %1971 = vmatpush1.msra.mxu0 0.0
    %1972 = vmatprep.subr.mxu0 0.0
    %1973 = vmatpush1.msra.mxu0 0.0
    %1974 = vmatprep.subr.mxu0 0.0
    %1975 = vmatpush1.msra.mxu0 0.0
    %1976 = vmatprep.subr.mxu0 0.0
    %1977 = vmatpush1.msra.mxu0 0.0
    %1978 = vmatprep.subr.mxu0 0.0
    %1979 = vmatpush1.msra.mxu0 0.0
    %1980 = vmatprep.subr.mxu0 0.0
    %1981 = vmatpush1.msra.mxu0 0.0
    %1982 = vmatprep.mubr.f32.mxu0 0.0
    %1983 = vmatmul.mubr.f32.gmra.mrb[0].mxu0 %v1916
    %v1984 = vpop.f32.mrb[0].mxu0
    %v1985 = vadd.f32 %v1913, %v1984
    %v1986 = vpop.f32.mrb[0].mxu0
    %1987 = vdwg.mxu0
    %v1988 = vtanh.pop %v1985
    %v1989 = vmul.f32 %v1988, 2.0
    %s1990 = scalar_lea.vmem %s11, 128
    %v1991 = vld [vmem:[%s1990] sm:$0xff]
    %v1992 = vld [vmem:[%s1990 + $0x8] sm:$0xff]
    %v1993 = vld [vmem:[%s1990 + $0x10] sm:$0xff]
    %v1994 = vld [vmem:[%s1990 + $0x18] sm:$0xff]
    %v1995 = vld [vmem:[%s1990 + $0x20] sm:$0xff]
    %v1996 = vld [vmem:[%s1990 + $0x28] sm:$0xff]
    %v1997 = vld [vmem:[%s1990 + $0x30] sm:$0xff]
    %v1998 = vld [vmem:[%s1990 + $0x38] sm:$0xff]
    %s1999 = scalar_lea.vmem %s12, 2
    %v2000 = vld [vmem:[%s1999] sm:$0x1]
    %v2002 = vlaneseq
    %v2003 = vshrl.u32 %v2002, 7
    %v2004 = vsub.s32 0, %v2003
    %v2005 = vrot.slane %v2000, %v2004
    %2007 = vmatprep.subr.mxu0 0.0
    %2008 = vmatpush1.msra.mxu0 %v1991
    %2009 = vmatprep.subr.mxu0 0.0
    %2010 = vmatpush1.msra.mxu0 %v1992
    %2011 = vmatprep.subr.mxu0 0.0
    %2012 = vmatpush1.msra.mxu0 %v1993
    %2013 = vmatprep.subr.mxu0 0.0
    %2014 = vmatpush1.msra.mxu0 %v1994
    %2015 = vmatprep.subr.mxu0 0.0
    %2016 = vmatpush1.msra.mxu0 %v1995
    %2017 = vmatprep.subr.mxu0 0.0
    %2018 = vmatpush1.msra.mxu0 %v1996
    %2019 = vmatprep.subr.mxu0 0.0
    %2020 = vmatpush1.msra.mxu0 %v1997
    %2021 = vmatprep.subr.mxu0 0.0
    %2022 = vmatpush1.msra.mxu0 %v1998
    %2023 = vmatprep.subr.mxu0 0.0
    %2024 = vmatpush1.msra.mxu0 0.0
    %2025 = vmatprep.subr.mxu0 0.0
    %2026 = vmatpush1.msra.mxu0 0.0
    %2027 = vmatprep.subr.mxu0 0.0
    %2028 = vmatpush1.msra.mxu0 0.0
    %2029 = vmatprep.subr.mxu0 0.0
    %2030 = vmatpush1.msra.mxu0 0.0
    %2031 = vmatprep.subr.mxu0 0.0
    %2032 = vmatpush1.msra.mxu0 0.0
    %2033 = vmatprep.subr.mxu0 0.0
    %2034 = vmatpush1.msra.mxu0 0.0
    %2035 = vmatprep.subr.mxu0 0.0
    %2036 = vmatpush1.msra.mxu0 0.0
    %2037 = vmatprep.subr.mxu0 0.0
    %2038 = vmatpush1.msra.mxu0 0.0
    %2039 = vmatprep.subr.mxu0 0.0
    %2040 = vmatpush1.msra.mxu0 0.0
    %2041 = vmatprep.subr.mxu0 0.0
    %2042 = vmatpush1.msra.mxu0 0.0
    %2043 = vmatprep.subr.mxu0 0.0
    %2044 = vmatpush1.msra.mxu0 0.0
    %2045 = vmatprep.subr.mxu0 0.0
    %2046 = vmatpush1.msra.mxu0 0.0
    %2047 = vmatprep.subr.mxu0 0.0
    %2048 = vmatpush1.msra.mxu0 0.0
    %2049 = vmatprep.subr.mxu0 0.0
    %2050 = vmatpush1.msra.mxu0 0.0
    %2051 = vmatprep.subr.mxu0 0.0
    %2052 = vmatpush1.msra.mxu0 0.0
    %2053 = vmatprep.subr.mxu0 0.0
    %2054 = vmatpush1.msra.mxu0 0.0
    %2055 = vmatprep.subr.mxu0 0.0
    %2056 = vmatpush1.msra.mxu0 0.0
    %2057 = vmatprep.subr.mxu0 0.0
    %2058 = vmatpush1.msra.mxu0 0.0
    %2059 = vmatprep.subr.mxu0 0.0
    %2060 = vmatpush1.msra.mxu0 0.0
    %2061 = vmatprep.subr.mxu0 0.0
    %2062 = vmatpush1.msra.mxu0 0.0
    %2063 = vmatprep.subr.mxu0 0.0
    %2064 = vmatpush1.msra.mxu0 0.0
    %2065 = vmatprep.subr.mxu0 0.0
    %2066 = vmatpush1.msra.mxu0 0.0
    %2067 = vmatprep.subr.mxu0 0.0
    %2068 = vmatpush1.msra.mxu0 0.0
    %2069 = vmatprep.subr.mxu0 0.0
    %2070 = vmatpush1.msra.mxu0 0.0
    %2071 = vmatprep.mubr.f32.mxu0 0.0
    %2072 = vmatmul.mubr.f32.gmra.mrb[0].mxu0 %v1916
    %v2073 = vpop.f32.mrb[0].mxu0
    %v2074 = vadd.f32 %v2005, %v2073
    %v2075 = vpop.f32.mrb[0].mxu0
    %2076 = vdwg.mxu0
    %v2077 = vmul.f32 %v1989, 1.442695
    %v2078 = vpow.pop %v2077
    %v2079 = vmul.f32 %v1648, %v2078
    %v2080 = vadd.f32 %v2079, %v2074
    %v2081 = vsel %vm235, %v1989, 0.0
    %2082 = vadd.xlane.f32.xlu0 %v2081
    %v2083 = vpop.xlane.xlu0 %2082
    %v2084 = vadd.f32 %v1339, %v2083
    %s2085 = scalar_lea.vmem %s13, 16
    %v2086 = vld [vmem:[%s2085] sm:$0xff]
    %s2087 = scalar_lea.vmem %s15, 16
    %v2088 = vld [vmem:[%s2087] sm:$0xff]
    %v2090 = vsel %vm235, %v2080, 0
    %2092 = vmatprep.subr.mxu0 0.0
    %2093 = vmatpush1.msra.mxu0 %v2088
    %2094 = vmatprep.subr.mxu0 0.0
    %2095 = vmatpush1.msra.mxu0 0.0
    %2096 = vmatprep.subr.mxu0 0.0
    %2097 = vmatpush1.msra.mxu0 0.0
    %2098 = vmatprep.subr.mxu0 0.0
    %2099 = vmatpush1.msra.mxu0 0.0
    %2100 = vmatprep.subr.mxu0 0.0
    %2101 = vmatpush1.msra.mxu0 0.0
    %2102 = vmatprep.subr.mxu0 0.0
    %2103 = vmatpush1.msra.mxu0 0.0
    %2104 = vmatprep.subr.mxu0 0.0
    %2105 = vmatpush1.msra.mxu0 0.0
    %2106 = vmatprep.subr.mxu0 0.0
    %2107 = vmatpush1.msra.mxu0 0.0
    %2108 = vmatprep.subr.mxu0 0.0
    %2109 = vmatpush1.msra.mxu0 0.0
    %2110 = vmatprep.subr.mxu0 0.0
    %2111 = vmatpush1.msra.mxu0 0.0
    %2112 = vmatprep.subr.mxu0 0.0
    %2113 = vmatpush1.msra.mxu0 0.0
    %2114 = vmatprep.subr.mxu0 0.0
    %2115 = vmatpush1.msra.mxu0 0.0
    %2116 = vmatprep.subr.mxu0 0.0
    %2117 = vmatpush1.msra.mxu0 0.0
    %2118 = vmatprep.subr.mxu0 0.0
    %2119 = vmatpush1.msra.mxu0 0.0
    %2120 = vmatprep.subr.mxu0 0.0
    %2121 = vmatpush1.msra.mxu0 0.0
    %2122 = vmatprep.subr.mxu0 0.0
    %2123 = vmatpush1.msra.mxu0 0.0
    %2124 = vmatprep.subr.mxu0 0.0
    %2125 = vmatpush1.msra.mxu0 0.0
    %2126 = vmatprep.subr.mxu0 0.0
    %2127 = vmatpush1.msra.mxu0 0.0
    %2128 = vmatprep.subr.mxu0 0.0
    %2129 = vmatpush1.msra.mxu0 0.0
    %2130 = vmatprep.subr.mxu0 0.0
    %2131 = vmatpush1.msra.mxu0 0.0
    %2132 = vmatprep.subr.mxu0 0.0
    %2133 = vmatpush1.msra.mxu0 0.0
    %2134 = vmatprep.subr.mxu0 0.0
    %2135 = vmatpush1.msra.mxu0 0.0
    %2136 = vmatprep.subr.mxu0 0.0
    %2137 = vmatpush1.msra.mxu0 0.0
    %2138 = vmatprep.subr.mxu0 0.0
    %2139 = vmatpush1.msra.mxu0 0.0
    %2140 = vmatprep.subr.mxu0 0.0
    %2141 = vmatpush1.msra.mxu0 0.0
    %2142 = vmatprep.subr.mxu0 0.0
    %2143 = vmatpush1.msra.mxu0 0.0
    %2144 = vmatprep.subr.mxu0 0.0
    %2145 = vmatpush1.msra.mxu0 0.0
    %2146 = vmatprep.subr.mxu0 0.0
    %2147 = vmatpush1.msra.mxu0 0.0
    %2148 = vmatprep.subr.mxu0 0.0
    %2149 = vmatpush1.msra.mxu0 0.0
    %2150 = vmatprep.subr.mxu0 0.0
    %2151 = vmatpush1.msra.mxu0 0.0
    %2152 = vmatprep.subr.mxu0 0.0
    %2153 = vmatpush1.msra.mxu0 0.0
    %2154 = vmatprep.subr.mxu0 0.0
    %2155 = vmatpush1.msra.mxu0 0.0
    %2156 = vmatprep.mubr.f32.mxu0 0.0
    %2157 = vmatmul.mubr.f32.gmra.mrb[0].mxu0 %v2090
    %v2158 = vpop.f32.mrb[0].mxu0
    %v2159 = vadd.f32 0.0, %v2158
    %v2160 = vpop.f32.mrb[0].mxu0
    %2161 = vdwg.mxu0
    %2162 = vmatprep.subr.mxu0 0.0
    %2163 = vmatpush1.msra.mxu0 %v2086
    %2164 = vmatprep.subr.mxu0 0.0
    %2165 = vmatpush1.msra.mxu0 0.0
    %2166 = vmatprep.subr.mxu0 0.0
    %2167 = vmatpush1.msra.mxu0 0.0
    %2168 = vmatprep.subr.mxu0 0.0
    %2169 = vmatpush1.msra.mxu0 0.0
    %2170 = vmatprep.subr.mxu0 0.0
    %2171 = vmatpush1.msra.mxu0 0.0
    %2172 = vmatprep.subr.mxu0 0.0
    %2173 = vmatpush1.msra.mxu0 0.0
    %2174 = vmatprep.subr.mxu0 0.0
    %2175 = vmatpush1.msra.mxu0 0.0
    %2176 = vmatprep.subr.mxu0 0.0
    %2177 = vmatpush1.msra.mxu0 0.0
    %2178 = vmatprep.subr.mxu0 0.0
    %2179 = vmatpush1.msra.mxu0 0.0
    %2180 = vmatprep.subr.mxu0 0.0
    %2181 = vmatpush1.msra.mxu0 0.0
    %2182 = vmatprep.subr.mxu0 0.0
    %2183 = vmatpush1.msra.mxu0 0.0
    %2184 = vmatprep.subr.mxu0 0.0
    %2185 = vmatpush1.msra.mxu0 0.0
    %2186 = vmatprep.subr.mxu0 0.0
    %2187 = vmatpush1.msra.mxu0 0.0
    %2188 = vmatprep.subr.mxu0 0.0
    %2189 = vmatpush1.msra.mxu0 0.0
    %2190 = vmatprep.subr.mxu0 0.0
    %2191 = vmatpush1.msra.mxu0 0.0
    %2192 = vmatprep.subr.mxu0 0.0
    %2193 = vmatpush1.msra.mxu0 0.0
    %2194 = vmatprep.subr.mxu0 0.0
    %2195 = vmatpush1.msra.mxu0 0.0
    %2196 = vmatprep.subr.mxu0 0.0
    %2197 = vmatpush1.msra.mxu0 0.0
    %2198 = vmatprep.subr.mxu0 0.0
    %2199 = vmatpush1.msra.mxu0 0.0
    %2200 = vmatprep.subr.mxu0 0.0
    %2201 = vmatpush1.msra.mxu0 0.0
    %2202 = vmatprep.subr.mxu0 0.0
    %2203 = vmatpush1.msra.mxu0 0.0
    %2204 = vmatprep.subr.mxu0 0.0
    %2205 = vmatpush1.msra.mxu0 0.0
    %2206 = vmatprep.subr.mxu0 0.0
    %2207 = vmatpush1.msra.mxu0 0.0
    %2208 = vmatprep.subr.mxu0 0.0
    %2209 = vmatpush1.msra.mxu0 0.0
    %2210 = vmatprep.subr.mxu0 0.0
    %2211 = vmatpush1.msra.mxu0 0.0
    %2212 = vmatprep.subr.mxu0 0.0
    %2213 = vmatpush1.msra.mxu0 0.0
    %2214 = vmatprep.subr.mxu0 0.0
    %2215 = vmatpush1.msra.mxu0 0.0
    %2216 = vmatprep.subr.mxu0 0.0
    %2217 = vmatpush1.msra.mxu0 0.0
    %2218 = vmatprep.subr.mxu0 0.0
    %2219 = vmatpush1.msra.mxu0 0.0
    %2220 = vmatprep.subr.mxu0 0.0
    %2221 = vmatpush1.msra.mxu0 0.0
    %2222 = vmatprep.subr.mxu0 0.0
    %2223 = vmatpush1.msra.mxu0 0.0
    %2224 = vmatprep.subr.mxu0 0.0
    %2225 = vmatpush1.msra.mxu0 0.0
    %2226 = vmatprep.mubr.f32.mxu0 0.0
    %2227 = vmatmul.mubr.f32.gmra.mrb[0].mxu0 %v1725
    %v2228 = vpop.f32.mrb[0].mxu0
    %v2229 = vadd.f32 %v2159, %v2228
    %v2230 = vpop.f32.mrb[0].mxu0
    %2231 = vdwg.mxu0
    %s2232 = scalar_lea.vmem %s17, 2
    %v2233 = vld [vmem:[%s2232] sm:$0x1]
    %v2235 = vlaneseq
    %v2236 = vshrl.u32 %v2235, 7
    %v2237 = vsub.s32 0, %v2236
    %v2238 = vrot.slane %v2233, %v2237
    %v2240 = vadd.f32 %v2229, %v2238
    %s2241 = scalar_lea.vmem %s14, 16
    %v2242 = vld [vmem:[%s2241] sm:$0xff]
    %s2243 = scalar_lea.vmem %s16, 16
    %v2244 = vld [vmem:[%s2243] sm:$0xff]
    %2245 = vmatprep.subr.mxu0 0.0
    %2246 = vmatpush1.msra.mxu0 %v2244
    %2247 = vmatprep.subr.mxu0 0.0
    %2248 = vmatpush1.msra.mxu0 0.0
    %2249 = vmatprep.subr.mxu0 0.0
    %2250 = vmatpush1.msra.mxu0 0.0
    %2251 = vmatprep.subr.mxu0 0.0
    %2252 = vmatpush1.msra.mxu0 0.0
    %2253 = vmatprep.subr.mxu0 0.0
    %2254 = vmatpush1.msra.mxu0 0.0
    %2255 = vmatprep.subr.mxu0 0.0
    %2256 = vmatpush1.msra.mxu0 0.0
    %2257 = vmatprep.subr.mxu0 0.0
    %2258 = vmatpush1.msra.mxu0 0.0
    %2259 = vmatprep.subr.mxu0 0.0
    %2260 = vmatpush1.msra.mxu0 0.0
    %2261 = vmatprep.subr.mxu0 0.0
    %2262 = vmatpush1.msra.mxu0 0.0
    %2263 = vmatprep.subr.mxu0 0.0
    %2264 = vmatpush1.msra.mxu0 0.0
    %2265 = vmatprep.subr.mxu0 0.0
    %2266 = vmatpush1.msra.mxu0 0.0
    %2267 = vmatprep.subr.mxu0 0.0
    %2268 = vmatpush1.msra.mxu0 0.0
    %2269 = vmatprep.subr.mxu0 0.0
    %2270 = vmatpush1.msra.mxu0 0.0
    %2271 = vmatprep.subr.mxu0 0.0
    %2272 = vmatpush1.msra.mxu0 0.0
    %2273 = vmatprep.subr.mxu0 0.0
    %2274 = vmatpush1.msra.mxu0 0.0
    %2275 = vmatprep.subr.mxu0 0.0
    %2276 = vmatpush1.msra.mxu0 0.0
    %2277 = vmatprep.subr.mxu0 0.0
    %2278 = vmatpush1.msra.mxu0 0.0
    %2279 = vmatprep.subr.mxu0 0.0
    %2280 = vmatpush1.msra.mxu0 0.0
    %2281 = vmatprep.subr.mxu0 0.0
    %2282 = vmatpush1.msra.mxu0 0.0
    %2283 = vmatprep.subr.mxu0 0.0
    %2284 = vmatpush1.msra.mxu0 0.0
    %2285 = vmatprep.subr.mxu0 0.0
    %2286 = vmatpush1.msra.mxu0 0.0
    %2287 = vmatprep.subr.mxu0 0.0
    %2288 = vmatpush1.msra.mxu0 0.0
    %2289 = vmatprep.subr.mxu0 0.0
    %2290 = vmatpush1.msra.mxu0 0.0
    %2291 = vmatprep.subr.mxu0 0.0
    %2292 = vmatpush1.msra.mxu0 0.0
    %2293 = vmatprep.subr.mxu0 0.0
    %2294 = vmatpush1.msra.mxu0 0.0
    %2295 = vmatprep.subr.mxu0 0.0
    %2296 = vmatpush1.msra.mxu0 0.0
    %2297 = vmatprep.subr.mxu0 0.0
    %2298 = vmatpush1.msra.mxu0 0.0
    %2299 = vmatprep.subr.mxu0 0.0
    %2300 = vmatpush1.msra.mxu0 0.0
    %2301 = vmatprep.subr.mxu0 0.0
    %2302 = vmatpush1.msra.mxu0 0.0
    %2303 = vmatprep.subr.mxu0 0.0
    %2304 = vmatpush1.msra.mxu0 0.0
    %2305 = vmatprep.subr.mxu0 0.0
    %2306 = vmatpush1.msra.mxu0 0.0
    %2307 = vmatprep.subr.mxu0 0.0
    %2308 = vmatpush1.msra.mxu0 0.0
    %2309 = vmatprep.mubr.f32.mxu0 0.0
    %2310 = vmatmul.mubr.f32.gmra.mrb[0].mxu0 %v2090
    %v2311 = vpop.f32.mrb[0].mxu0
    %v2312 = vadd.f32 0.0, %v2311
    %v2313 = vpop.f32.mrb[0].mxu0
    %2314 = vdwg.mxu0
    %2315 = vmatprep.subr.mxu0 0.0
    %2316 = vmatpush1.msra.mxu0 %v2242
    %2317 = vmatprep.subr.mxu0 0.0
    %2318 = vmatpush1.msra.mxu0 0.0
    %2319 = vmatprep.subr.mxu0 0.0
    %2320 = vmatpush1.msra.mxu0 0.0
    %2321 = vmatprep.subr.mxu0 0.0
    %2322 = vmatpush1.msra.mxu0 0.0
    %2323 = vmatprep.subr.mxu0 0.0
    %2324 = vmatpush1.msra.mxu0 0.0
    %2325 = vmatprep.subr.mxu0 0.0
    %2326 = vmatpush1.msra.mxu0 0.0
    %2327 = vmatprep.subr.mxu0 0.0
    %2328 = vmatpush1.msra.mxu0 0.0
    %2329 = vmatprep.subr.mxu0 0.0
    %2330 = vmatpush1.msra.mxu0 0.0
    %2331 = vmatprep.subr.mxu0 0.0
    %2332 = vmatpush1.msra.mxu0 0.0
    %2333 = vmatprep.subr.mxu0 0.0
    %2334 = vmatpush1.msra.mxu0 0.0
    %2335 = vmatprep.subr.mxu0 0.0
    %2336 = vmatpush1.msra.mxu0 0.0
    %2337 = vmatprep.subr.mxu0 0.0
    %2338 = vmatpush1.msra.mxu0 0.0
    %2339 = vmatprep.subr.mxu0 0.0
    %2340 = vmatpush1.msra.mxu0 0.0
    %2341 = vmatprep.subr.mxu0 0.0
    %2342 = vmatpush1.msra.mxu0 0.0
    %2343 = vmatprep.subr.mxu0 0.0
    %2344 = vmatpush1.msra.mxu0 0.0
    %2345 = vmatprep.subr.mxu0 0.0
    %2346 = vmatpush1.msra.mxu0 0.0
    %2347 = vmatprep.subr.mxu0 0.0
    %2348 = vmatpush1.msra.mxu0 0.0
    %2349 = vmatprep.subr.mxu0 0.0
    %2350 = vmatpush1.msra.mxu0 0.0
    %2351 = vmatprep.subr.mxu0 0.0
    %2352 = vmatpush1.msra.mxu0 0.0
    %2353 = vmatprep.subr.mxu0 0.0
    %2354 = vmatpush1.msra.mxu0 0.0
    %2355 = vmatprep.subr.mxu0 0.0
    %2356 = vmatpush1.msra.mxu0 0.0
    %2357 = vmatprep.subr.mxu0 0.0
    %2358 = vmatpush1.msra.mxu0 0.0
    %2359 = vmatprep.subr.mxu0 0.0
    %2360 = vmatpush1.msra.mxu0 0.0
    %2361 = vmatprep.subr.mxu0 0.0
    %2362 = vmatpush1.msra.mxu0 0.0
    %2363 = vmatprep.subr.mxu0 0.0
    %2364 = vmatpush1.msra.mxu0 0.0
    %2365 = vmatprep.subr.mxu0 0.0
    %2366 = vmatpush1.msra.mxu0 0.0
    %2367 = vmatprep.subr.mxu0 0.0
    %2368 = vmatpush1.msra.mxu0 0.0
    %2369 = vmatprep.subr.mxu0 0.0
    %2370 = vmatpush1.msra.mxu0 0.0
    %2371 = vmatprep.subr.mxu0 0.0
    %2372 = vmatpush1.msra.mxu0 0.0
    %2373 = vmatprep.subr.mxu0 0.0
    %2374 = vmatpush1.msra.mxu0 0.0
    %2375 = vmatprep.subr.mxu0 0.0
    %2376 = vmatpush1.msra.mxu0 0.0
    %2377 = vmatprep.subr.mxu0 0.0
    %2378 = vmatpush1.msra.mxu0 0.0
    %2379 = vmatprep.mubr.f32.mxu0 0.0
    %2380 = vmatmul.mubr.f32.gmra.mrb[0].mxu0 %v1725
    %v2381 = vpop.f32.mrb[0].mxu0
    %v2382 = vadd.f32 %v2312, %v2381
    %v2383 = vpop.f32.mrb[0].mxu0
    %2384 = vdwg.mxu0
    %s2385 = scalar_lea.vmem %s18, 2
    %v2386 = vld [vmem:[%s2385] sm:$0x1]
    %v2388 = vlaneseq
    %v2389 = vshrl.u32 %v2388, 7
    %v2390 = vsub.s32 0, %v2389
    %v2391 = vrot.slane %v2386, %v2390
    %v2393 = vadd.f32 %v2382, %v2391
    %s2394 = scalar_lea.vmem %s4, 24
    %v2395 = vld [vmem:[%s2394] sm:$0xff]
    %s2396 = scalar_lea.vmem %s5, 48
    %v2397 = vld [vmem:[%s2396] sm:$0xff]
    %v2398 = vld [vmem:[%s2396 + $0x8] sm:$0xff]
    %2399 = vmatprep.subr.mxu0 0.0
    %2400 = vmatpush1.msra.mxu0 %v2397
    %2401 = vmatprep.subr.mxu0 0.0
    %2402 = vmatpush1.msra.mxu0 %v2398
    %2403 = vmatprep.subr.mxu0 0.0
    %2404 = vmatpush1.msra.mxu0 0.0
    %2405 = vmatprep.subr.mxu0 0.0
    %2406 = vmatpush1.msra.mxu0 0.0
    %2407 = vmatprep.subr.mxu0 0.0
    %2408 = vmatpush1.msra.mxu0 0.0
    %2409 = vmatprep.subr.mxu0 0.0
    %2410 = vmatpush1.msra.mxu0 0.0
    %2411 = vmatprep.subr.mxu0 0.0
    %2412 = vmatpush1.msra.mxu0 0.0
    %2413 = vmatprep.subr.mxu0 0.0
    %2414 = vmatpush1.msra.mxu0 0.0
    %2415 = vmatprep.subr.mxu0 0.0
    %2416 = vmatpush1.msra.mxu0 0.0
    %2417 = vmatprep.subr.mxu0 0.0
    %2418 = vmatpush1.msra.mxu0 0.0
    %2419 = vmatprep.subr.mxu0 0.0
    %2420 = vmatpush1.msra.mxu0 0.0
    %2421 = vmatprep.subr.mxu0 0.0
    %2422 = vmatpush1.msra.mxu0 0.0
    %2423 = vmatprep.subr.mxu0 0.0
    %2424 = vmatpush1.msra.mxu0 0.0
    %2425 = vmatprep.subr.mxu0 0.0
    %2426 = vmatpush1.msra.mxu0 0.0
    %2427 = vmatprep.subr.mxu0 0.0
    %2428 = vmatpush1.msra.mxu0 0.0
    %2429 = vmatprep.subr.mxu0 0.0
    %2430 = vmatpush1.msra.mxu0 0.0
    %2431 = vmatprep.subr.mxu0 0.0
    %2432 = vmatpush1.msra.mxu0 0.0
    %2433 = vmatprep.subr.mxu0 0.0
    %2434 = vmatpush1.msra.mxu0 0.0
    %2435 = vmatprep.subr.mxu0 0.0
    %2436 = vmatpush1.msra.mxu0 0.0
    %2437 = vmatprep.subr.mxu0 0.0
    %2438 = vmatpush1.msra.mxu0 0.0
    %2439 = vmatprep.subr.mxu0 0.0
    %2440 = vmatpush1.msra.mxu0 0.0
    %2441 = vmatprep.subr.mxu0 0.0
    %2442 = vmatpush1.msra.mxu0 0.0
    %2443 = vmatprep.subr.mxu0 0.0
    %2444 = vmatpush1.msra.mxu0 0.0
    %2445 = vmatprep.subr.mxu0 0.0
    %2446 = vmatpush1.msra.mxu0 0.0
    %2447 = vmatprep.subr.mxu0 0.0
    %2448 = vmatpush1.msra.mxu0 0.0
    %2449 = vmatprep.subr.mxu0 0.0
    %2450 = vmatpush1.msra.mxu0 0.0
    %2451 = vmatprep.subr.mxu0 0.0
    %2452 = vmatpush1.msra.mxu0 0.0
    %2453 = vmatprep.subr.mxu0 0.0
    %2454 = vmatpush1.msra.mxu0 0.0
    %2455 = vmatprep.subr.mxu0 0.0
    %2456 = vmatpush1.msra.mxu0 0.0
    %2457 = vmatprep.subr.mxu0 0.0
    %2458 = vmatpush1.msra.mxu0 0.0
    %2459 = vmatprep.subr.mxu0 0.0
    %2460 = vmatpush1.msra.mxu0 0.0
    %2461 = vmatprep.subr.mxu0 0.0
    %2462 = vmatpush1.msra.mxu0 0.0
    %2463 = vmatprep.mubr.f32.mxu0 0.0
    %2464 = vmatmul.mubr.f32.gmra.mrb[0].mxu0 %v163
    %v2465 = vpop.f32.mrb[0].mxu0
    %v2466 = vadd.f32 0.0, %v2465
    %v2467 = vpop.f32.mrb[0].mxu0
    %2468 = vdwg.mxu0
    %v2470 = vsel %vm235, %v2240, 0
    %2472 = vmatprep.subr.mxu0 0.0
    %2473 = vmatpush1.msra.mxu0 %v2395
    %2474 = vmatprep.subr.mxu0 0.0
    %2475 = vmatpush1.msra.mxu0 0.0
    %2476 = vmatprep.subr.mxu0 0.0
    %2477 = vmatpush1.msra.mxu0 0.0
    %2478 = vmatprep.subr.mxu0 0.0
    %2479 = vmatpush1.msra.mxu0 0.0
    %2480 = vmatprep.subr.mxu0 0.0
    %2481 = vmatpush1.msra.mxu0 0.0
    %2482 = vmatprep.subr.mxu0 0.0
    %2483 = vmatpush1.msra.mxu0 0.0
    %2484 = vmatprep.subr.mxu0 0.0
    %2485 = vmatpush1.msra.mxu0 0.0
    %2486 = vmatprep.subr.mxu0 0.0
    %2487 = vmatpush1.msra.mxu0 0.0
    %2488 = vmatprep.subr.mxu0 0.0
    %2489 = vmatpush1.msra.mxu0 0.0
    %2490 = vmatprep.subr.mxu0 0.0
    %2491 = vmatpush1.msra.mxu0 0.0
    %2492 = vmatprep.subr.mxu0 0.0
    %2493 = vmatpush1.msra.mxu0 0.0
    %2494 = vmatprep.subr.mxu0 0.0
    %2495 = vmatpush1.msra.mxu0 0.0
    %2496 = vmatprep.subr.mxu0 0.0
    %2497 = vmatpush1.msra.mxu0 0.0
    %2498 = vmatprep.subr.mxu0 0.0
    %2499 = vmatpush1.msra.mxu0 0.0
    %2500 = vmatprep.subr.mxu0 0.0
    %2501 = vmatpush1.msra.mxu0 0.0
    %2502 = vmatprep.subr.mxu0 0.0
    %2503 = vmatpush1.msra.mxu0 0.0
    %2504 = vmatprep.subr.mxu0 0.0
    %2505 = vmatpush1.msra.mxu0 0.0
    %2506 = vmatprep.subr.mxu0 0.0
    %2507 = vmatpush1.msra.mxu0 0.0
    %2508 = vmatprep.subr.mxu0 0.0
    %2509 = vmatpush1.msra.mxu0 0.0
    %2510 = vmatprep.subr.mxu0 0.0
    %2511 = vmatpush1.msra.mxu0 0.0
    %2512 = vmatprep.subr.mxu0 0.0
    %2513 = vmatpush1.msra.mxu0 0.0
    %2514 = vmatprep.subr.mxu0 0.0
    %2515 = vmatpush1.msra.mxu0 0.0
    %2516 = vmatprep.subr.mxu0 0.0
    %2517 = vmatpush1.msra.mxu0 0.0
    %2518 = vmatprep.subr.mxu0 0.0
    %2519 = vmatpush1.msra.mxu0 0.0
    %2520 = vmatprep.subr.mxu0 0.0
    %2521 = vmatpush1.msra.mxu0 0.0
    %2522 = vmatprep.subr.mxu0 0.0
    %2523 = vmatpush1.msra.mxu0 0.0
    %2524 = vmatprep.subr.mxu0 0.0
    %2525 = vmatpush1.msra.mxu0 0.0
    %2526 = vmatprep.subr.mxu0 0.0
    %2527 = vmatpush1.msra.mxu0 0.0
    %2528 = vmatprep.subr.mxu0 0.0
    %2529 = vmatpush1.msra.mxu0 0.0
    %2530 = vmatprep.subr.mxu0 0.0
    %2531 = vmatpush1.msra.mxu0 0.0
    %2532 = vmatprep.subr.mxu0 0.0
    %2533 = vmatpush1.msra.mxu0 0.0
    %2534 = vmatprep.subr.mxu0 0.0
    %2535 = vmatpush1.msra.mxu0 0.0
    %2536 = vmatprep.mubr.f32.mxu0 0.0
    %2537 = vmatmul.mubr.f32.gmra.mrb[0].mxu0 %v2470
    %v2538 = vpop.f32.mrb[0].mxu0
    %v2539 = vadd.f32 %v2466, %v2538
    %v2540 = vpop.f32.mrb[0].mxu0
    %2541 = vdwg.mxu0
    %s2542 = scalar_lea.vmem %s6, 3
    %v2543 = vld [vmem:[%s2542] sm:$0x1]
    %v2545 = vlaneseq
    %v2546 = vshrl.u32 %v2545, 7
    %v2547 = vsub.s32 0, %v2546
    %v2548 = vrot.slane %v2543, %v2547
    %v2550 = vadd.f32 %v2539, %v2548
    %v2551 = vmax.f32 %v2550, 0.0
    %s2552 = scalar_lea.vmem %s7, 192
    %v2553 = vld [vmem:[%s2552] sm:$0xff]
    %v2554 = vld [vmem:[%s2552 + $0x8] sm:$0xff]
    %v2555 = vld [vmem:[%s2552 + $0x10] sm:$0xff]
    %v2556 = vld [vmem:[%s2552 + $0x18] sm:$0xff]
    %v2557 = vld [vmem:[%s2552 + $0x20] sm:$0xff]
    %v2558 = vld [vmem:[%s2552 + $0x28] sm:$0xff]
    %v2559 = vld [vmem:[%s2552 + $0x30] sm:$0xff]
    %v2560 = vld [vmem:[%s2552 + $0x38] sm:$0xff]
    %s2561 = scalar_lea.vmem %s8, 3
    %v2562 = vld [vmem:[%s2561] sm:$0x1]
    %v2564 = vlaneseq
    %v2565 = vshrl.u32 %v2564, 7
    %v2566 = vsub.s32 0, %v2565
    %v2567 = vrot.slane %v2562, %v2566
    %v2570 = vsel %vm333, %v2551, 0
    %2572 = vmatprep.subr.mxu0 0.0
    %2573 = vmatpush1.msra.mxu0 %v2553
    %2574 = vmatprep.subr.mxu0 0.0
    %2575 = vmatpush1.msra.mxu0 %v2554
    %2576 = vmatprep.subr.mxu0 0.0
    %2577 = vmatpush1.msra.mxu0 %v2555
    %2578 = vmatprep.subr.mxu0 0.0
    %2579 = vmatpush1.msra.mxu0 %v2556
    %2580 = vmatprep.subr.mxu0 0.0
    %2581 = vmatpush1.msra.mxu0 %v2557
    %2582 = vmatprep.subr.mxu0 0.0
    %2583 = vmatpush1.msra.mxu0 %v2558
    %2584 = vmatprep.subr.mxu0 0.0
    %2585 = vmatpush1.msra.mxu0 %v2559
    %2586 = vmatprep.subr.mxu0 0.0
    %2587 = vmatpush1.msra.mxu0 %v2560
    %2588 = vmatprep.subr.mxu0 0.0
    %2589 = vmatpush1.msra.mxu0 0.0
    %2590 = vmatprep.subr.mxu0 0.0
    %2591 = vmatpush1.msra.mxu0 0.0
    %2592 = vmatprep.subr.mxu0 0.0
    %2593 = vmatpush1.msra.mxu0 0.0
    %2594 = vmatprep.subr.mxu0 0.0
    %2595 = vmatpush1.msra.mxu0 0.0
    %2596 = vmatprep.subr.mxu0 0.0
    %2597 = vmatpush1.msra.mxu0 0.0
    %2598 = vmatprep.subr.mxu0 0.0
    %2599 = vmatpush1.msra.mxu0 0.0
    %2600 = vmatprep.subr.mxu0 0.0
    %2601 = vmatpush1.msra.mxu0 0.0
    %2602 = vmatprep.subr.mxu0 0.0
    %2603 = vmatpush1.msra.mxu0 0.0
    %2604 = vmatprep.subr.mxu0 0.0
    %2605 = vmatpush1.msra.mxu0 0.0
    %2606 = vmatprep.subr.mxu0 0.0
    %2607 = vmatpush1.msra.mxu0 0.0
    %2608 = vmatprep.subr.mxu0 0.0
    %2609 = vmatpush1.msra.mxu0 0.0
    %2610 = vmatprep.subr.mxu0 0.0
    %2611 = vmatpush1.msra.mxu0 0.0
    %2612 = vmatprep.subr.mxu0 0.0
    %2613 = vmatpush1.msra.mxu0 0.0
    %2614 = vmatprep.subr.mxu0 0.0
    %2615 = vmatpush1.msra.mxu0 0.0
    %2616 = vmatprep.subr.mxu0 0.0
    %2617 = vmatpush1.msra.mxu0 0.0
    %2618 = vmatprep.subr.mxu0 0.0
    %2619 = vmatpush1.msra.mxu0 0.0
    %2620 = vmatprep.subr.mxu0 0.0
    %2621 = vmatpush1.msra.mxu0 0.0
    %2622 = vmatprep.subr.mxu0 0.0
    %2623 = vmatpush1.msra.mxu0 0.0
    %2624 = vmatprep.subr.mxu0 0.0
    %2625 = vmatpush1.msra.mxu0 0.0
    %2626 = vmatprep.subr.mxu0 0.0
    %2627 = vmatpush1.msra.mxu0 0.0
    %2628 = vmatprep.subr.mxu0 0.0
    %2629 = vmatpush1.msra.mxu0 0.0
    %2630 = vmatprep.subr.mxu0 0.0
    %2631 = vmatpush1.msra.mxu0 0.0
    %2632 = vmatprep.subr.mxu0 0.0
    %2633 = vmatpush1.msra.mxu0 0.0
    %2634 = vmatprep.subr.mxu0 0.0
    %2635 = vmatpush1.msra.mxu0 0.0
    %2636 = vmatprep.mubr.f32.mxu0 0.0
    %2637 = vmatmul.mubr.f32.gmra.mrb[0].mxu0 %v2570
    %v2638 = vpop.f32.mrb[0].mxu0
    %v2639 = vadd.f32 %v2567, %v2638
    %v2640 = vpop.f32.mrb[0].mxu0
    %2641 = vdwg.mxu0
    %v2642 = vmax.f32 %v2639, 0.0
    %s2643 = scalar_lea.vmem %s9, 192
    %v2644 = vld [vmem:[%s2643] sm:$0xff]
    %v2645 = vld [vmem:[%s2643 + $0x8] sm:$0xff]
    %v2646 = vld [vmem:[%s2643 + $0x10] sm:$0xff]
    %v2647 = vld [vmem:[%s2643 + $0x18] sm:$0xff]
    %v2648 = vld [vmem:[%s2643 + $0x20] sm:$0xff]
    %v2649 = vld [vmem:[%s2643 + $0x28] sm:$0xff]
    %v2650 = vld [vmem:[%s2643 + $0x30] sm:$0xff]
    %v2651 = vld [vmem:[%s2643 + $0x38] sm:$0xff]
    %s2652 = scalar_lea.vmem %s10, 3
    %v2653 = vld [vmem:[%s2652] sm:$0x1]
    %v2655 = vlaneseq
    %v2656 = vshrl.u32 %v2655, 7
    %v2657 = vsub.s32 0, %v2656
    %v2658 = vrot.slane %v2653, %v2657
    %v2661 = vsel %vm333, %v2642, 0
    %2663 = vmatprep.subr.mxu0 0.0
    %2664 = vmatpush1.msra.mxu0 %v2644
    %2665 = vmatprep.subr.mxu0 0.0
    %2666 = vmatpush1.msra.mxu0 %v2645
    %2667 = vmatprep.subr.mxu0 0.0
    %2668 = vmatpush1.msra.mxu0 %v2646
    %2669 = vmatprep.subr.mxu0 0.0
    %2670 = vmatpush1.msra.mxu0 %v2647
    %2671 = vmatprep.subr.mxu0 0.0
    %2672 = vmatpush1.msra.mxu0 %v2648
    %2673 = vmatprep.subr.mxu0 0.0
    %2674 = vmatpush1.msra.mxu0 %v2649
    %2675 = vmatprep.subr.mxu0 0.0
    %2676 = vmatpush1.msra.mxu0 %v2650
    %2677 = vmatprep.subr.mxu0 0.0
    %2678 = vmatpush1.msra.mxu0 %v2651
    %2679 = vmatprep.subr.mxu0 0.0
    %2680 = vmatpush1.msra.mxu0 0.0
    %2681 = vmatprep.subr.mxu0 0.0
    %2682 = vmatpush1.msra.mxu0 0.0
    %2683 = vmatprep.subr.mxu0 0.0
    %2684 = vmatpush1.msra.mxu0 0.0
    %2685 = vmatprep.subr.mxu0 0.0
    %2686 = vmatpush1.msra.mxu0 0.0
    %2687 = vmatprep.subr.mxu0 0.0
    %2688 = vmatpush1.msra.mxu0 0.0
    %2689 = vmatprep.subr.mxu0 0.0
    %2690 = vmatpush1.msra.mxu0 0.0
    %2691 = vmatprep.subr.mxu0 0.0
    %2692 = vmatpush1.msra.mxu0 0.0
    %2693 = vmatprep.subr.mxu0 0.0
    %2694 = vmatpush1.msra.mxu0 0.0
    %2695 = vmatprep.subr.mxu0 0.0
    %2696 = vmatpush1.msra.mxu0 0.0
    %2697 = vmatprep.subr.mxu0 0.0
    %2698 = vmatpush1.msra.mxu0 0.0
    %2699 = vmatprep.subr.mxu0 0.0
    %2700 = vmatpush1.msra.mxu0 0.0
    %2701 = vmatprep.subr.mxu0 0.0
    %2702 = vmatpush1.msra.mxu0 0.0
    %2703 = vmatprep.subr.mxu0 0.0
    %2704 = vmatpush1.msra.mxu0 0.0
    %2705 = vmatprep.subr.mxu0 0.0
    %2706 = vmatpush1.msra.mxu0 0.0
    %2707 = vmatprep.subr.mxu0 0.0
    %2708 = vmatpush1.msra.mxu0 0.0
    %2709 = vmatprep.subr.mxu0 0.0
    %2710 = vmatpush1.msra.mxu0 0.0
    %2711 = vmatprep.subr.mxu0 0.0
    %2712 = vmatpush1.msra.mxu0 0.0
    %2713 = vmatprep.subr.mxu0 0.0
    %2714 = vmatpush1.msra.mxu0 0.0
    %2715 = vmatprep.subr.mxu0 0.0
    %2716 = vmatpush1.msra.mxu0 0.0
    %2717 = vmatprep.subr.mxu0 0.0
    %2718 = vmatpush1.msra.mxu0 0.0
    %2719 = vmatprep.subr.mxu0 0.0
    %2720 = vmatpush1.msra.mxu0 0.0
    %2721 = vmatprep.subr.mxu0 0.0
    %2722 = vmatpush1.msra.mxu0 0.0
    %2723 = vmatprep.subr.mxu0 0.0
    %2724 = vmatpush1.msra.mxu0 0.0
    %2725 = vmatprep.subr.mxu0 0.0
    %2726 = vmatpush1.msra.mxu0 0.0
    %2727 = vmatprep.mubr.f32.mxu0 0.0
    %2728 = vmatmul.mubr.f32.gmra.mrb[0].mxu0 %v2661
    %v2729 = vpop.f32.mrb[0].mxu0
    %v2730 = vadd.f32 %v2658, %v2729
    %v2731 = vpop.f32.mrb[0].mxu0
    %2732 = vdwg.mxu0
    %v2733 = vtanh.pop %v2730
    %v2734 = vmul.f32 %v2733, 2.0
    %s2735 = scalar_lea.vmem %s11, 192
    %v2736 = vld [vmem:[%s2735] sm:$0xff]
    %v2737 = vld [vmem:[%s2735 + $0x8] sm:$0xff]
    %v2738 = vld [vmem:[%s2735 + $0x10] sm:$0xff]
    %v2739 = vld [vmem:[%s2735 + $0x18] sm:$0xff]
    %v2740 = vld [vmem:[%s2735 + $0x20] sm:$0xff]
    %v2741 = vld [vmem:[%s2735 + $0x28] sm:$0xff]
    %v2742 = vld [vmem:[%s2735 + $0x30] sm:$0xff]
    %v2743 = vld [vmem:[%s2735 + $0x38] sm:$0xff]
    %s2744 = scalar_lea.vmem %s12, 3
    %v2745 = vld [vmem:[%s2744] sm:$0x1]
    %v2747 = vlaneseq
    %v2748 = vshrl.u32 %v2747, 7
    %v2749 = vsub.s32 0, %v2748
    %v2750 = vrot.slane %v2745, %v2749
    %2752 = vmatprep.subr.mxu0 0.0
    %2753 = vmatpush1.msra.mxu0 %v2736
    %2754 = vmatprep.subr.mxu0 0.0
    %2755 = vmatpush1.msra.mxu0 %v2737
    %2756 = vmatprep.subr.mxu0 0.0
    %2757 = vmatpush1.msra.mxu0 %v2738
    %2758 = vmatprep.subr.mxu0 0.0
    %2759 = vmatpush1.msra.mxu0 %v2739
    %2760 = vmatprep.subr.mxu0 0.0
    %2761 = vmatpush1.msra.mxu0 %v2740
    %2762 = vmatprep.subr.mxu0 0.0
    %2763 = vmatpush1.msra.mxu0 %v2741
    %2764 = vmatprep.subr.mxu0 0.0
    %2765 = vmatpush1.msra.mxu0 %v2742
    %2766 = vmatprep.subr.mxu0 0.0
    %2767 = vmatpush1.msra.mxu0 %v2743
    %2768 = vmatprep.subr.mxu0 0.0
    %2769 = vmatpush1.msra.mxu0 0.0
    %2770 = vmatprep.subr.mxu0 0.0
    %2771 = vmatpush1.msra.mxu0 0.0
    %2772 = vmatprep.subr.mxu0 0.0
    %2773 = vmatpush1.msra.mxu0 0.0
    %2774 = vmatprep.subr.mxu0 0.0
    %2775 = vmatpush1.msra.mxu0 0.0
    %2776 = vmatprep.subr.mxu0 0.0
    %2777 = vmatpush1.msra.mxu0 0.0
    %2778 = vmatprep.subr.mxu0 0.0
    %2779 = vmatpush1.msra.mxu0 0.0
    %2780 = vmatprep.subr.mxu0 0.0
    %2781 = vmatpush1.msra.mxu0 0.0
    %2782 = vmatprep.subr.mxu0 0.0
    %2783 = vmatpush1.msra.mxu0 0.0
    %2784 = vmatprep.subr.mxu0 0.0
    %2785 = vmatpush1.msra.mxu0 0.0
    %2786 = vmatprep.subr.mxu0 0.0
    %2787 = vmatpush1.msra.mxu0 0.0
    %2788 = vmatprep.subr.mxu0 0.0
    %2789 = vmatpush1.msra.mxu0 0.0
    %2790 = vmatprep.subr.mxu0 0.0
    %2791 = vmatpush1.msra.mxu0 0.0
    %2792 = vmatprep.subr.mxu0 0.0
    %2793 = vmatpush1.msra.mxu0 0.0
    %2794 = vmatprep.subr.mxu0 0.0
    %2795 = vmatpush1.msra.mxu0 0.0
    %2796 = vmatprep.subr.mxu0 0.0
    %2797 = vmatpush1.msra.mxu0 0.0
    %2798 = vmatprep.subr.mxu0 0.0
    %2799 = vmatpush1.msra.mxu0 0.0
    %2800 = vmatprep.subr.mxu0 0.0
    %2801 = vmatpush1.msra.mxu0 0.0
    %2802 = vmatprep.subr.mxu0 0.0
    %2803 = vmatpush1.msra.mxu0 0.0
    %2804 = vmatprep.subr.mxu0 0.0
    %2805 = vmatpush1.msra.mxu0 0.0
    %2806 = vmatprep.subr.mxu0 0.0
    %2807 = vmatpush1.msra.mxu0 0.0
    %2808 = vmatprep.subr.mxu0 0.0
    %2809 = vmatpush1.msra.mxu0 0.0
    %2810 = vmatprep.subr.mxu0 0.0
    %2811 = vmatpush1.msra.mxu0 0.0
    %2812 = vmatprep.subr.mxu0 0.0
    %2813 = vmatpush1.msra.mxu0 0.0
    %2814 = vmatprep.subr.mxu0 0.0
    %2815 = vmatpush1.msra.mxu0 0.0
    %2816 = vmatprep.mubr.f32.mxu0 0.0
    %2817 = vmatmul.mubr.f32.gmra.mrb[0].mxu0 %v2661
    %v2818 = vpop.f32.mrb[0].mxu0
    %v2819 = vadd.f32 %v2750, %v2818
    %v2820 = vpop.f32.mrb[0].mxu0
    %2821 = vdwg.mxu0
    %v2822 = vmul.f32 %v2734, 1.442695
    %v2823 = vpow.pop %v2822
    %v2824 = vmul.f32 %v2393, %v2823
    %v2825 = vadd.f32 %v2824, %v2819
    %v2826 = vsel %vm235, %v2734, 0.0
    %2827 = vadd.xlane.f32.xlu0 %v2826
    %v2828 = vpop.xlane.xlu0 %2827
    %v2829 = vadd.f32 %v2084, %v2828
    %s2830 = scalar_lea.vmem %s13, 24
    %v2831 = vld [vmem:[%s2830] sm:$0xff]
    %s2832 = scalar_lea.vmem %s15, 24
    %v2833 = vld [vmem:[%s2832] sm:$0xff]
    %v2835 = vsel %vm235, %v2825, 0
    %2837 = vmatprep.subr.mxu0 0.0
    %2838 = vmatpush1.msra.mxu0 %v2833
    %2839 = vmatprep.subr.mxu0 0.0
    %2840 = vmatpush1.msra.mxu0 0.0
    %2841 = vmatprep.subr.mxu0 0.0
    %2842 = vmatpush1.msra.mxu0 0.0
    %2843 = vmatprep.subr.mxu0 0.0
    %2844 = vmatpush1.msra.mxu0 0.0
    %2845 = vmatprep.subr.mxu0 0.0
    %2846 = vmatpush1.msra.mxu0 0.0
    %2847 = vmatprep.subr.mxu0 0.0
    %2848 = vmatpush1.msra.mxu0 0.0
    %2849 = vmatprep.subr.mxu0 0.0
    %2850 = vmatpush1.msra.mxu0 0.0
    %2851 = vmatprep.subr.mxu0 0.0
    %2852 = vmatpush1.msra.mxu0 0.0
    %2853 = vmatprep.subr.mxu0 0.0
    %2854 = vmatpush1.msra.mxu0 0.0
    %2855 = vmatprep.subr.mxu0 0.0
    %2856 = vmatpush1.msra.mxu0 0.0
    %2857 = vmatprep.subr.mxu0 0.0
    %2858 = vmatpush1.msra.mxu0 0.0
    %2859 = vmatprep.subr.mxu0 0.0
    %2860 = vmatpush1.msra.mxu0 0.0
    %2861 = vmatprep.subr.mxu0 0.0
    %2862 = vmatpush1.msra.mxu0 0.0
    %2863 = vmatprep.subr.mxu0 0.0
    %2864 = vmatpush1.msra.mxu0 0.0
    %2865 = vmatprep.subr.mxu0 0.0
    %2866 = vmatpush1.msra.mxu0 0.0
    %2867 = vmatprep.subr.mxu0 0.0
    %2868 = vmatpush1.msra.mxu0 0.0
    %2869 = vmatprep.subr.mxu0 0.0
    %2870 = vmatpush1.msra.mxu0 0.0
    %2871 = vmatprep.subr.mxu0 0.0
    %2872 = vmatpush1.msra.mxu0 0.0
    %2873 = vmatprep.subr.mxu0 0.0
    %2874 = vmatpush1.msra.mxu0 0.0
    %2875 = vmatprep.subr.mxu0 0.0
    %2876 = vmatpush1.msra.mxu0 0.0
    %2877 = vmatprep.subr.mxu0 0.0
    %2878 = vmatpush1.msra.mxu0 0.0
    %2879 = vmatprep.subr.mxu0 0.0
    %2880 = vmatpush1.msra.mxu0 0.0
    %2881 = vmatprep.subr.mxu0 0.0
    %2882 = vmatpush1.msra.mxu0 0.0
    %2883 = vmatprep.subr.mxu0 0.0
    %2884 = vmatpush1.msra.mxu0 0.0
    %2885 = vmatprep.subr.mxu0 0.0
    %2886 = vmatpush1.msra.mxu0 0.0
    %2887 = vmatprep.subr.mxu0 0.0
    %2888 = vmatpush1.msra.mxu0 0.0
    %2889 = vmatprep.subr.mxu0 0.0
    %2890 = vmatpush1.msra.mxu0 0.0
    %2891 = vmatprep.subr.mxu0 0.0
    %2892 = vmatpush1.msra.mxu0 0.0
    %2893 = vmatprep.subr.mxu0 0.0
    %2894 = vmatpush1.msra.mxu0 0.0
    %2895 = vmatprep.subr.mxu0 0.0
    %2896 = vmatpush1.msra.mxu0 0.0
    %2897 = vmatprep.subr.mxu0 0.0
    %2898 = vmatpush1.msra.mxu0 0.0
    %2899 = vmatprep.subr.mxu0 0.0
    %2900 = vmatpush1.msra.mxu0 0.0
    %2901 = vmatprep.mubr.f32.mxu0 0.0
    %2902 = vmatmul.mubr.f32.gmra.mrb[0].mxu0 %v2835
    %v2903 = vpop.f32.mrb[0].mxu0
    %v2904 = vadd.f32 0.0, %v2903
    %v2905 = vpop.f32.mrb[0].mxu0
    %2906 = vdwg.mxu0
    %2907 = vmatprep.subr.mxu0 0.0
    %2908 = vmatpush1.msra.mxu0 %v2831
    %2909 = vmatprep.subr.mxu0 0.0
    %2910 = vmatpush1.msra.mxu0 0.0
    %2911 = vmatprep.subr.mxu0 0.0
    %2912 = vmatpush1.msra.mxu0 0.0
    %2913 = vmatprep.subr.mxu0 0.0
    %2914 = vmatpush1.msra.mxu0 0.0
    %2915 = vmatprep.subr.mxu0 0.0
    %2916 = vmatpush1.msra.mxu0 0.0
    %2917 = vmatprep.subr.mxu0 0.0
    %2918 = vmatpush1.msra.mxu0 0.0
    %2919 = vmatprep.subr.mxu0 0.0
    %2920 = vmatpush1.msra.mxu0 0.0
    %2921 = vmatprep.subr.mxu0 0.0
    %2922 = vmatpush1.msra.mxu0 0.0
    %2923 = vmatprep.subr.mxu0 0.0
    %2924 = vmatpush1.msra.mxu0 0.0
    %2925 = vmatprep.subr.mxu0 0.0
    %2926 = vmatpush1.msra.mxu0 0.0
    %2927 = vmatprep.subr.mxu0 0.0
    %2928 = vmatpush1.msra.mxu0 0.0
    %2929 = vmatprep.subr.mxu0 0.0
    %2930 = vmatpush1.msra.mxu0 0.0
    %2931 = vmatprep.subr.mxu0 0.0
    %2932 = vmatpush1.msra.mxu0 0.0
    %2933 = vmatprep.subr.mxu0 0.0
    %2934 = vmatpush1.msra.mxu0 0.0
    %2935 = vmatprep.subr.mxu0 0.0
    %2936 = vmatpush1.msra.mxu0 0.0
    %2937 = vmatprep.subr.mxu0 0.0
    %2938 = vmatpush1.msra.mxu0 0.0
    %2939 = vmatprep.subr.mxu0 0.0
    %2940 = vmatpush1.msra.mxu0 0.0
    %2941 = vmatprep.subr.mxu0 0.0
    %2942 = vmatpush1.msra.mxu0 0.0
    %2943 = vmatprep.subr.mxu0 0.0
    %2944 = vmatpush1.msra.mxu0 0.0
    %2945 = vmatprep.subr.mxu0 0.0
    %2946 = vmatpush1.msra.mxu0 0.0
    %2947 = vmatprep.subr.mxu0 0.0
    %2948 = vmatpush1.msra.mxu0 0.0
    %2949 = vmatprep.subr.mxu0 0.0
    %2950 = vmatpush1.msra.mxu0 0.0
    %2951 = vmatprep.subr.mxu0 0.0
    %2952 = vmatpush1.msra.mxu0 0.0
    %2953 = vmatprep.subr.mxu0 0.0
    %2954 = vmatpush1.msra.mxu0 0.0
    %2955 = vmatprep.subr.mxu0 0.0
    %2956 = vmatpush1.msra.mxu0 0.0
    %2957 = vmatprep.subr.mxu0 0.0
    %2958 = vmatpush1.msra.mxu0 0.0
    %2959 = vmatprep.subr.mxu0 0.0
    %2960 = vmatpush1.msra.mxu0 0.0
    %2961 = vmatprep.subr.mxu0 0.0
    %2962 = vmatpush1.msra.mxu0 0.0
    %2963 = vmatprep.subr.mxu0 0.0
    %2964 = vmatpush1.msra.mxu0 0.0
    %2965 = vmatprep.subr.mxu0 0.0
    %2966 = vmatpush1.msra.mxu0 0.0
    %2967 = vmatprep.subr.mxu0 0.0
    %2968 = vmatpush1.msra.mxu0 0.0
    %2969 = vmatprep.subr.mxu0 0.0
    %2970 = vmatpush1.msra.mxu0 0.0
    %2971 = vmatprep.mubr.f32.mxu0 0.0
    %2972 = vmatmul.mubr.f32.gmra.mrb[0].mxu0 %v2470
    %v2973 = vpop.f32.mrb[0].mxu0
    %v2974 = vadd.f32 %v2904, %v2973
    %v2975 = vpop.f32.mrb[0].mxu0
    %2976 = vdwg.mxu0
    %s2977 = scalar_lea.vmem %s17, 3
    %v2978 = vld [vmem:[%s2977] sm:$0x1]
    %v2980 = vlaneseq
    %v2981 = vshrl.u32 %v2980, 7
    %v2982 = vsub.s32 0, %v2981
    %v2983 = vrot.slane %v2978, %v2982
    %v2985 = vadd.f32 %v2974, %v2983
    %s2986 = scalar_lea.vmem %s14, 24
    %v2987 = vld [vmem:[%s2986] sm:$0xff]
    %s2988 = scalar_lea.vmem %s16, 24
    %v2989 = vld [vmem:[%s2988] sm:$0xff]
    %2990 = vmatprep.subr.mxu0 0.0
    %2991 = vmatpush1.msra.mxu0 %v2989
    %2992 = vmatprep.subr.mxu0 0.0
    %2993 = vmatpush1.msra.mxu0 0.0
    %2994 = vmatprep.subr.mxu0 0.0
    %2995 = vmatpush1.msra.mxu0 0.0
    %2996 = vmatprep.subr.mxu0 0.0
    %2997 = vmatpush1.msra.mxu0 0.0
    %2998 = vmatprep.subr.mxu0 0.0
    %2999 = vmatpush1.msra.mxu0 0.0
    %3000 = vmatprep.subr.mxu0 0.0
    %3001 = vmatpush1.msra.mxu0 0.0
    %3002 = vmatprep.subr.mxu0 0.0
    %3003 = vmatpush1.msra.mxu0 0.0
    %3004 = vmatprep.subr.mxu0 0.0
    %3005 = vmatpush1.msra.mxu0 0.0
    %3006 = vmatprep.subr.mxu0 0.0
    %3007 = vmatpush1.msra.mxu0 0.0
    %3008 = vmatprep.subr.mxu0 0.0
    %3009 = vmatpush1.msra.mxu0 0.0
    %3010 = vmatprep.subr.mxu0 0.0
    %3011 = vmatpush1.msra.mxu0 0.0
    %3012 = vmatprep.subr.mxu0 0.0
    %3013 = vmatpush1.msra.mxu0 0.0
    %3014 = vmatprep.subr.mxu0 0.0
    %3015 = vmatpush1.msra.mxu0 0.0
    %3016 = vmatprep.subr.mxu0 0.0
    %3017 = vmatpush1.msra.mxu0 0.0
    %3018 = vmatprep.subr.mxu0 0.0
    %3019 = vmatpush1.msra.mxu0 0.0
    %3020 = vmatprep.subr.mxu0 0.0
    %3021 = vmatpush1.msra.mxu0 0.0
    %3022 = vmatprep.subr.mxu0 0.0
    %3023 = vmatpush1.msra.mxu0 0.0
    %3024 = vmatprep.subr.mxu0 0.0
    %3025 = vmatpush1.msra.mxu0 0.0
    %3026 = vmatprep.subr.mxu0 0.0
    %3027 = vmatpush1.msra.mxu0 0.0
    %3028 = vmatprep.subr.mxu0 0.0
    %3029 = vmatpush1.msra.mxu0 0.0
    %3030 = vmatprep.subr.mxu0 0.0
    %3031 = vmatpush1.msra.mxu0 0.0
    %3032 = vmatprep.subr.mxu0 0.0
    %3033 = vmatpush1.msra.mxu0 0.0
    %3034 = vmatprep.subr.mxu0 0.0
    %3035 = vmatpush1.msra.mxu0 0.0
    %3036 = vmatprep.subr.mxu0 0.0
    %3037 = vmatpush1.msra.mxu0 0.0
    %3038 = vmatprep.subr.mxu0 0.0
    %3039 = vmatpush1.msra.mxu0 0.0
    %3040 = vmatprep.subr.mxu0 0.0
    %3041 = vmatpush1.msra.mxu0 0.0
    %3042 = vmatprep.subr.mxu0 0.0
    %3043 = vmatpush1.msra.mxu0 0.0
    %3044 = vmatprep.subr.mxu0 0.0
    %3045 = vmatpush1.msra.mxu0 0.0
    %3046 = vmatprep.subr.mxu0 0.0
    %3047 = vmatpush1.msra.mxu0 0.0
    %3048 = vmatprep.subr.mxu0 0.0
    %3049 = vmatpush1.msra.mxu0 0.0
    %3050 = vmatprep.subr.mxu0 0.0
    %3051 = vmatpush1.msra.mxu0 0.0
    %3052 = vmatprep.subr.mxu0 0.0
    %3053 = vmatpush1.msra.mxu0 0.0
    %3054 = vmatprep.mubr.f32.mxu0 0.0
    %3055 = vmatmul.mubr.f32.gmra.mrb[0].mxu0 %v2835
    %v3056 = vpop.f32.mrb[0].mxu0
    %v3057 = vadd.f32 0.0, %v3056
    %v3058 = vpop.f32.mrb[0].mxu0
    %3059 = vdwg.mxu0
    %3060 = vmatprep.subr.mxu0 0.0
    %3061 = vmatpush1.msra.mxu0 %v2987
    %3062 = vmatprep.subr.mxu0 0.0
    %3063 = vmatpush1.msra.mxu0 0.0
    %3064 = vmatprep.subr.mxu0 0.0
    %3065 = vmatpush1.msra.mxu0 0.0
    %3066 = vmatprep.subr.mxu0 0.0
    %3067 = vmatpush1.msra.mxu0 0.0
    %3068 = vmatprep.subr.mxu0 0.0
    %3069 = vmatpush1.msra.mxu0 0.0
    %3070 = vmatprep.subr.mxu0 0.0
    %3071 = vmatpush1.msra.mxu0 0.0
    %3072 = vmatprep.subr.mxu0 0.0
    %3073 = vmatpush1.msra.mxu0 0.0
    %3074 = vmatprep.subr.mxu0 0.0
    %3075 = vmatpush1.msra.mxu0 0.0
    %3076 = vmatprep.subr.mxu0 0.0
    %3077 = vmatpush1.msra.mxu0 0.0
    %3078 = vmatprep.subr.mxu0 0.0
    %3079 = vmatpush1.msra.mxu0 0.0
    %3080 = vmatprep.subr.mxu0 0.0
    %3081 = vmatpush1.msra.mxu0 0.0
    %3082 = vmatprep.subr.mxu0 0.0
    %3083 = vmatpush1.msra.mxu0 0.0
    %3084 = vmatprep.subr.mxu0 0.0
    %3085 = vmatpush1.msra.mxu0 0.0
    %3086 = vmatprep.subr.mxu0 0.0
    %3087 = vmatpush1.msra.mxu0 0.0
    %3088 = vmatprep.subr.mxu0 0.0
    %3089 = vmatpush1.msra.mxu0 0.0
    %3090 = vmatprep.subr.mxu0 0.0
    %3091 = vmatpush1.msra.mxu0 0.0
    %3092 = vmatprep.subr.mxu0 0.0
    %3093 = vmatpush1.msra.mxu0 0.0
    %3094 = vmatprep.subr.mxu0 0.0
    %3095 = vmatpush1.msra.mxu0 0.0
    %3096 = vmatprep.subr.mxu0 0.0
    %3097 = vmatpush1.msra.mxu0 0.0
    %3098 = vmatprep.subr.mxu0 0.0
    %3099 = vmatpush1.msra.mxu0 0.0
    %3100 = vmatprep.subr.mxu0 0.0
    %3101 = vmatpush1.msra.mxu0 0.0
    %3102 = vmatprep.subr.mxu0 0.0
    %3103 = vmatpush1.msra.mxu0 0.0
    %3104 = vmatprep.subr.mxu0 0.0
    %3105 = vmatpush1.msra.mxu0 0.0
    %3106 = vmatprep.subr.mxu0 0.0
    %3107 = vmatpush1.msra.mxu0 0.0
    %3108 = vmatprep.subr.mxu0 0.0
    %3109 = vmatpush1.msra.mxu0 0.0
    %3110 = vmatprep.subr.mxu0 0.0
    %3111 = vmatpush1.msra.mxu0 0.0
    %3112 = vmatprep.subr.mxu0 0.0
    %3113 = vmatpush1.msra.mxu0 0.0
    %3114 = vmatprep.subr.mxu0 0.0
    %3115 = vmatpush1.msra.mxu0 0.0
    %3116 = vmatprep.subr.mxu0 0.0
    %3117 = vmatpush1.msra.mxu0 0.0
    %3118 = vmatprep.subr.mxu0 0.0
    %3119 = vmatpush1.msra.mxu0 0.0
    %3120 = vmatprep.subr.mxu0 0.0
    %3121 = vmatpush1.msra.mxu0 0.0
    %3122 = vmatprep.subr.mxu0 0.0
    %3123 = vmatpush1.msra.mxu0 0.0
    %3124 = vmatprep.mubr.f32.mxu0 0.0
    %3125 = vmatmul.mubr.f32.gmra.mrb[0].mxu0 %v2470
    %v3126 = vpop.f32.mrb[0].mxu0
    %v3127 = vadd.f32 %v3057, %v3126
    %v3128 = vpop.f32.mrb[0].mxu0
    %3129 = vdwg.mxu0
    %s3130 = scalar_lea.vmem %s18, 3
    %v3131 = vld [vmem:[%s3130] sm:$0x1]
    %v3133 = vlaneseq
    %v3134 = vshrl.u32 %v3133, 7
    %v3135 = vsub.s32 0, %v3134
    %v3136 = vrot.slane %v3131, %v3135
    %v3138 = vadd.f32 %v3127, %v3136
    %s3139 = scalar_lea.vmem %s4, 32
    %v3140 = vld [vmem:[%s3139] sm:$0xff]
    %s3141 = scalar_lea.vmem %s5, 64
    %v3142 = vld [vmem:[%s3141] sm:$0xff]
    %v3143 = vld [vmem:[%s3141 + $0x8] sm:$0xff]
    %3144 = vmatprep.subr.mxu0 0.0
    %3145 = vmatpush1.msra.mxu0 %v3142
    %3146 = vmatprep.subr.mxu0 0.0
    %3147 = vmatpush1.msra.mxu0 %v3143
    %3148 = vmatprep.subr.mxu0 0.0
    %3149 = vmatpush1.msra.mxu0 0.0
    %3150 = vmatprep.subr.mxu0 0.0
    %3151 = vmatpush1.msra.mxu0 0.0
    %3152 = vmatprep.subr.mxu0 0.0
    %3153 = vmatpush1.msra.mxu0 0.0
    %3154 = vmatprep.subr.mxu0 0.0
    %3155 = vmatpush1.msra.mxu0 0.0
    %3156 = vmatprep.subr.mxu0 0.0
    %3157 = vmatpush1.msra.mxu0 0.0
    %3158 = vmatprep.subr.mxu0 0.0
    %3159 = vmatpush1.msra.mxu0 0.0
    %3160 = vmatprep.subr.mxu0 0.0
    %3161 = vmatpush1.msra.mxu0 0.0
    %3162 = vmatprep.subr.mxu0 0.0
    %3163 = vmatpush1.msra.mxu0 0.0
    %3164 = vmatprep.subr.mxu0 0.0
    %3165 = vmatpush1.msra.mxu0 0.0
    %3166 = vmatprep.subr.mxu0 0.0
    %3167 = vmatpush1.msra.mxu0 0.0
    %3168 = vmatprep.subr.mxu0 0.0
    %3169 = vmatpush1.msra.mxu0 0.0
    %3170 = vmatprep.subr.mxu0 0.0
    %3171 = vmatpush1.msra.mxu0 0.0
    %3172 = vmatprep.subr.mxu0 0.0
    %3173 = vmatpush1.msra.mxu0 0.0
    %3174 = vmatprep.subr.mxu0 0.0
    %3175 = vmatpush1.msra.mxu0 0.0
    %3176 = vmatprep.subr.mxu0 0.0
    %3177 = vmatpush1.msra.mxu0 0.0
    %3178 = vmatprep.subr.mxu0 0.0
    %3179 = vmatpush1.msra.mxu0 0.0
    %3180 = vmatprep.subr.mxu0 0.0
    %3181 = vmatpush1.msra.mxu0 0.0
    %3182 = vmatprep.subr.mxu0 0.0
    %3183 = vmatpush1.msra.mxu0 0.0
    %3184 = vmatprep.subr.mxu0 0.0
    %3185 = vmatpush1.msra.mxu0 0.0
    %3186 = vmatprep.subr.mxu0 0.0
    %3187 = vmatpush1.msra.mxu0 0.0
    %3188 = vmatprep.subr.mxu0 0.0
    %3189 = vmatpush1.msra.mxu0 0.0
    %3190 = vmatprep.subr.mxu0 0.0
    %3191 = vmatpush1.msra.mxu0 0.0
    %3192 = vmatprep.subr.mxu0 0.0
    %3193 = vmatpush1.msra.mxu0 0.0
    %3194 = vmatprep.subr.mxu0 0.0
    %3195 = vmatpush1.msra.mxu0 0.0
    %3196 = vmatprep.subr.mxu0 0.0
    %3197 = vmatpush1.msra.mxu0 0.0
    %3198 = vmatprep.subr.mxu0 0.0
    %3199 = vmatpush1.msra.mxu0 0.0
    %3200 = vmatprep.subr.mxu0 0.0
    %3201 = vmatpush1.msra.mxu0 0.0
    %3202 = vmatprep.subr.mxu0 0.0
    %3203 = vmatpush1.msra.mxu0 0.0
    %3204 = vmatprep.subr.mxu0 0.0
    %3205 = vmatpush1.msra.mxu0 0.0
    %3206 = vmatprep.subr.mxu0 0.0
    %3207 = vmatpush1.msra.mxu0 0.0
    %3208 = vmatprep.mubr.f32.mxu0 0.0
    %3209 = vmatmul.mubr.f32.gmra.mrb[0].mxu0 %v163
    %v3210 = vpop.f32.mrb[0].mxu0
    %v3211 = vadd.f32 0.0, %v3210
    %v3212 = vpop.f32.mrb[0].mxu0
    %3213 = vdwg.mxu0
    %v3215 = vsel %vm235, %v2985, 0
    %3217 = vmatprep.subr.mxu0 0.0
    %3218 = vmatpush1.msra.mxu0 %v3140
    %3219 = vmatprep.subr.mxu0 0.0
    %3220 = vmatpush1.msra.mxu0 0.0
    %3221 = vmatprep.subr.mxu0 0.0
    %3222 = vmatpush1.msra.mxu0 0.0
    %3223 = vmatprep.subr.mxu0 0.0
    %3224 = vmatpush1.msra.mxu0 0.0
    %3225 = vmatprep.subr.mxu0 0.0
    %3226 = vmatpush1.msra.mxu0 0.0
    %3227 = vmatprep.subr.mxu0 0.0
    %3228 = vmatpush1.msra.mxu0 0.0
    %3229 = vmatprep.subr.mxu0 0.0
    %3230 = vmatpush1.msra.mxu0 0.0
    %3231 = vmatprep.subr.mxu0 0.0
    %3232 = vmatpush1.msra.mxu0 0.0
    %3233 = vmatprep.subr.mxu0 0.0
    %3234 = vmatpush1.msra.mxu0 0.0
    %3235 = vmatprep.subr.mxu0 0.0
    %3236 = vmatpush1.msra.mxu0 0.0
    %3237 = vmatprep.subr.mxu0 0.0
    %3238 = vmatpush1.msra.mxu0 0.0
    %3239 = vmatprep.subr.mxu0 0.0
    %3240 = vmatpush1.msra.mxu0 0.0
    %3241 = vmatprep.subr.mxu0 0.0
    %3242 = vmatpush1.msra.mxu0 0.0
    %3243 = vmatprep.subr.mxu0 0.0
    %3244 = vmatpush1.msra.mxu0 0.0
    %3245 = vmatprep.subr.mxu0 0.0
    %3246 = vmatpush1.msra.mxu0 0.0
    %3247 = vmatprep.subr.mxu0 0.0
    %3248 = vmatpush1.msra.mxu0 0.0
    %3249 = vmatprep.subr.mxu0 0.0
    %3250 = vmatpush1.msra.mxu0 0.0
    %3251 = vmatprep.subr.mxu0 0.0
    %3252 = vmatpush1.msra.mxu0 0.0
    %3253 = vmatprep.subr.mxu0 0.0
    %3254 = vmatpush1.msra.mxu0 0.0
    %3255 = vmatprep.subr.mxu0 0.0
    %3256 = vmatpush1.msra.mxu0 0.0
    %3257 = vmatprep.subr.mxu0 0.0
    %3258 = vmatpush1.msra.mxu0 0.0
    %3259 = vmatprep.subr.mxu0 0.0
    %3260 = vmatpush1.msra.mxu0 0.0
    %3261 = vmatprep.subr.mxu0 0.0
    %3262 = vmatpush1.msra.mxu0 0.0
    %3263 = vmatprep.subr.mxu0 0.0
    %3264 = vmatpush1.msra.mxu0 0.0
    %3265 = vmatprep.subr.mxu0 0.0
    %3266 = vmatpush1.msra.mxu0 0.0
    %3267 = vmatprep.subr.mxu0 0.0
    %3268 = vmatpush1.msra.mxu0 0.0
    %3269 = vmatprep.subr.mxu0 0.0
    %3270 = vmatpush1.msra.mxu0 0.0
    %3271 = vmatprep.subr.mxu0 0.0
    %3272 = vmatpush1.msra.mxu0 0.0
    %3273 = vmatprep.subr.mxu0 0.0
    %3274 = vmatpush1.msra.mxu0 0.0
    %3275 = vmatprep.subr.mxu0 0.0
    %3276 = vmatpush1.msra.mxu0 0.0
    %3277 = vmatprep.subr.mxu0 0.0
    %3278 = vmatpush1.msra.mxu0 0.0
    %3279 = vmatprep.subr.mxu0 0.0
    %3280 = vmatpush1.msra.mxu0 0.0
    %3281 = vmatprep.mubr.f32.mxu0 0.0
    %3282 = vmatmul.mubr.f32.gmra.mrb[0].mxu0 %v3215
    %v3283 = vpop.f32.mrb[0].mxu0
    %v3284 = vadd.f32 %v3211, %v3283
    %v3285 = vpop.f32.mrb[0].mxu0
    %3286 = vdwg.mxu0
    %s3287 = scalar_lea.vmem %s6, 4
    %v3288 = vld [vmem:[%s3287] sm:$0x1]
    %v3290 = vlaneseq
    %v3291 = vshrl.u32 %v3290, 7
    %v3292 = vsub.s32 0, %v3291
    %v3293 = vrot.slane %v3288, %v3292
    %v3295 = vadd.f32 %v3284, %v3293
    %v3296 = vmax.f32 %v3295, 0.0
    %s3297 = scalar_lea.vmem %s7, 256
    %v3298 = vld [vmem:[%s3297] sm:$0xff]
    %v3299 = vld [vmem:[%s3297 + $0x8] sm:$0xff]
    %v3300 = vld [vmem:[%s3297 + $0x10] sm:$0xff]
    %v3301 = vld [vmem:[%s3297 + $0x18] sm:$0xff]
    %v3302 = vld [vmem:[%s3297 + $0x20] sm:$0xff]
    %v3303 = vld [vmem:[%s3297 + $0x28] sm:$0xff]
    %v3304 = vld [vmem:[%s3297 + $0x30] sm:$0xff]
    %v3305 = vld [vmem:[%s3297 + $0x38] sm:$0xff]
    %s3306 = scalar_lea.vmem %s8, 4
    %v3307 = vld [vmem:[%s3306] sm:$0x1]
    %v3309 = vlaneseq
    %v3310 = vshrl.u32 %v3309, 7
    %v3311 = vsub.s32 0, %v3310
    %v3312 = vrot.slane %v3307, %v3311
    %v3315 = vsel %vm333, %v3296, 0
    %3317 = vmatprep.subr.mxu0 0.0
    %3318 = vmatpush1.msra.mxu0 %v3298
    %3319 = vmatprep.subr.mxu0 0.0
    %3320 = vmatpush1.msra.mxu0 %v3299
    %3321 = vmatprep.subr.mxu0 0.0
    %3322 = vmatpush1.msra.mxu0 %v3300
    %3323 = vmatprep.subr.mxu0 0.0
    %3324 = vmatpush1.msra.mxu0 %v3301
    %3325 = vmatprep.subr.mxu0 0.0
    %3326 = vmatpush1.msra.mxu0 %v3302
    %3327 = vmatprep.subr.mxu0 0.0
    %3328 = vmatpush1.msra.mxu0 %v3303
    %3329 = vmatprep.subr.mxu0 0.0
    %3330 = vmatpush1.msra.mxu0 %v3304
    %3331 = vmatprep.subr.mxu0 0.0
    %3332 = vmatpush1.msra.mxu0 %v3305
    %3333 = vmatprep.subr.mxu0 0.0
    %3334 = vmatpush1.msra.mxu0 0.0
    %3335 = vmatprep.subr.mxu0 0.0
    %3336 = vmatpush1.msra.mxu0 0.0
    %3337 = vmatprep.subr.mxu0 0.0
    %3338 = vmatpush1.msra.mxu0 0.0
    %3339 = vmatprep.subr.mxu0 0.0
    %3340 = vmatpush1.msra.mxu0 0.0
    %3341 = vmatprep.subr.mxu0 0.0
    %3342 = vmatpush1.msra.mxu0 0.0
    %3343 = vmatprep.subr.mxu0 0.0
    %3344 = vmatpush1.msra.mxu0 0.0
    %3345 = vmatprep.subr.mxu0 0.0
    %3346 = vmatpush1.msra.mxu0 0.0
    %3347 = vmatprep.subr.mxu0 0.0
    %3348 = vmatpush1.msra.mxu0 0.0
    %3349 = vmatprep.subr.mxu0 0.0
    %3350 = vmatpush1.msra.mxu0 0.0
    %3351 = vmatprep.subr.mxu0 0.0
    %3352 = vmatpush1.msra.mxu0 0.0
    %3353 = vmatprep.subr.mxu0 0.0
    %3354 = vmatpush1.msra.mxu0 0.0
    %3355 = vmatprep.subr.mxu0 0.0
    %3356 = vmatpush1.msra.mxu0 0.0
    %3357 = vmatprep.subr.mxu0 0.0
    %3358 = vmatpush1.msra.mxu0 0.0
    %3359 = vmatprep.subr.mxu0 0.0
    %3360 = vmatpush1.msra.mxu0 0.0
    %3361 = vmatprep.subr.mxu0 0.0
    %3362 = vmatpush1.msra.mxu0 0.0
    %3363 = vmatprep.subr.mxu0 0.0
    %3364 = vmatpush1.msra.mxu0 0.0
    %3365 = vmatprep.subr.mxu0 0.0
    %3366 = vmatpush1.msra.mxu0 0.0
    %3367 = vmatprep.subr.mxu0 0.0
    %3368 = vmatpush1.msra.mxu0 0.0
    %3369 = vmatprep.subr.mxu0 0.0
    %3370 = vmatpush1.msra.mxu0 0.0
    %3371 = vmatprep.subr.mxu0 0.0
    %3372 = vmatpush1.msra.mxu0 0.0
    %3373 = vmatprep.subr.mxu0 0.0
    %3374 = vmatpush1.msra.mxu0 0.0
    %3375 = vmatprep.subr.mxu0 0.0
    %3376 = vmatpush1.msra.mxu0 0.0
    %3377 = vmatprep.subr.mxu0 0.0
    %3378 = vmatpush1.msra.mxu0 0.0
    %3379 = vmatprep.subr.mxu0 0.0
    %3380 = vmatpush1.msra.mxu0 0.0
    %3381 = vmatprep.mubr.f32.mxu0 0.0
    %3382 = vmatmul.mubr.f32.gmra.mrb[0].mxu0 %v3315
    %v3383 = vpop.f32.mrb[0].mxu0
    %v3384 = vadd.f32 %v3312, %v3383
    %v3385 = vpop.f32.mrb[0].mxu0
    %3386 = vdwg.mxu0
    %v3387 = vmax.f32 %v3384, 0.0
    %s3388 = scalar_lea.vmem %s9, 256
    %v3389 = vld [vmem:[%s3388] sm:$0xff]
    %v3390 = vld [vmem:[%s3388 + $0x8] sm:$0xff]
    %v3391 = vld [vmem:[%s3388 + $0x10] sm:$0xff]
    %v3392 = vld [vmem:[%s3388 + $0x18] sm:$0xff]
    %v3393 = vld [vmem:[%s3388 + $0x20] sm:$0xff]
    %v3394 = vld [vmem:[%s3388 + $0x28] sm:$0xff]
    %v3395 = vld [vmem:[%s3388 + $0x30] sm:$0xff]
    %v3396 = vld [vmem:[%s3388 + $0x38] sm:$0xff]
    %s3397 = scalar_lea.vmem %s10, 4
    %v3398 = vld [vmem:[%s3397] sm:$0x1]
    %v3400 = vlaneseq
    %v3401 = vshrl.u32 %v3400, 7
    %v3402 = vsub.s32 0, %v3401
    %v3403 = vrot.slane %v3398, %v3402
    %v3406 = vsel %vm333, %v3387, 0
    %3408 = vmatprep.subr.mxu0 0.0
    %3409 = vmatpush1.msra.mxu0 %v3389
    %3410 = vmatprep.subr.mxu0 0.0
    %3411 = vmatpush1.msra.mxu0 %v3390
    %3412 = vmatprep.subr.mxu0 0.0
    %3413 = vmatpush1.msra.mxu0 %v3391
    %3414 = vmatprep.subr.mxu0 0.0
    %3415 = vmatpush1.msra.mxu0 %v3392
    %3416 = vmatprep.subr.mxu0 0.0
    %3417 = vmatpush1.msra.mxu0 %v3393
    %3418 = vmatprep.subr.mxu0 0.0
    %3419 = vmatpush1.msra.mxu0 %v3394
    %3420 = vmatprep.subr.mxu0 0.0
    %3421 = vmatpush1.msra.mxu0 %v3395
    %3422 = vmatprep.subr.mxu0 0.0
    %3423 = vmatpush1.msra.mxu0 %v3396
    %3424 = vmatprep.subr.mxu0 0.0
    %3425 = vmatpush1.msra.mxu0 0.0
    %3426 = vmatprep.subr.mxu0 0.0
    %3427 = vmatpush1.msra.mxu0 0.0
    %3428 = vmatprep.subr.mxu0 0.0
    %3429 = vmatpush1.msra.mxu0 0.0
    %3430 = vmatprep.subr.mxu0 0.0
    %3431 = vmatpush1.msra.mxu0 0.0
    %3432 = vmatprep.subr.mxu0 0.0
    %3433 = vmatpush1.msra.mxu0 0.0
    %3434 = vmatprep.subr.mxu0 0.0
    %3435 = vmatpush1.msra.mxu0 0.0
    %3436 = vmatprep.subr.mxu0 0.0
    %3437 = vmatpush1.msra.mxu0 0.0
    %3438 = vmatprep.subr.mxu0 0.0
    %3439 = vmatpush1.msra.mxu0 0.0
    %3440 = vmatprep.subr.mxu0 0.0
    %3441 = vmatpush1.msra.mxu0 0.0
    %3442 = vmatprep.subr.mxu0 0.0
    %3443 = vmatpush1.msra.mxu0 0.0
    %3444 = vmatprep.subr.mxu0 0.0
    %3445 = vmatpush1.msra.mxu0 0.0
    %3446 = vmatprep.subr.mxu0 0.0
    %3447 = vmatpush1.msra.mxu0 0.0
    %3448 = vmatprep.subr.mxu0 0.0
    %3449 = vmatpush1.msra.mxu0 0.0
    %3450 = vmatprep.subr.mxu0 0.0
    %3451 = vmatpush1.msra.mxu0 0.0
    %3452 = vmatprep.subr.mxu0 0.0
    %3453 = vmatpush1.msra.mxu0 0.0
    %3454 = vmatprep.subr.mxu0 0.0
    %3455 = vmatpush1.msra.mxu0 0.0
    %3456 = vmatprep.subr.mxu0 0.0
    %3457 = vmatpush1.msra.mxu0 0.0
    %3458 = vmatprep.subr.mxu0 0.0
    %3459 = vmatpush1.msra.mxu0 0.0
    %3460 = vmatprep.subr.mxu0 0.0
    %3461 = vmatpush1.msra.mxu0 0.0
    %3462 = vmatprep.subr.mxu0 0.0
    %3463 = vmatpush1.msra.mxu0 0.0
    %3464 = vmatprep.subr.mxu0 0.0
    %3465 = vmatpush1.msra.mxu0 0.0
    %3466 = vmatprep.subr.mxu0 0.0
    %3467 = vmatpush1.msra.mxu0 0.0
    %3468 = vmatprep.subr.mxu0 0.0
    %3469 = vmatpush1.msra.mxu0 0.0
    %3470 = vmatprep.subr.mxu0 0.0
    %3471 = vmatpush1.msra.mxu0 0.0
    %3472 = vmatprep.mubr.f32.mxu0 0.0
    %3473 = vmatmul.mubr.f32.gmra.mrb[0].mxu0 %v3406
    %v3474 = vpop.f32.mrb[0].mxu0
    %v3475 = vadd.f32 %v3403, %v3474
    %v3476 = vpop.f32.mrb[0].mxu0
    %3477 = vdwg.mxu0
    %v3478 = vtanh.pop %v3475
    %v3479 = vmul.f32 %v3478, 2.0
    %s3480 = scalar_lea.vmem %s11, 256
    %v3481 = vld [vmem:[%s3480] sm:$0xff]
    %v3482 = vld [vmem:[%s3480 + $0x8] sm:$0xff]
    %v3483 = vld [vmem:[%s3480 + $0x10] sm:$0xff]
    %v3484 = vld [vmem:[%s3480 + $0x18] sm:$0xff]
    %v3485 = vld [vmem:[%s3480 + $0x20] sm:$0xff]
    %v3486 = vld [vmem:[%s3480 + $0x28] sm:$0xff]
    %v3487 = vld [vmem:[%s3480 + $0x30] sm:$0xff]
    %v3488 = vld [vmem:[%s3480 + $0x38] sm:$0xff]
    %s3489 = scalar_lea.vmem %s12, 4
    %v3490 = vld [vmem:[%s3489] sm:$0x1]
    %v3492 = vlaneseq
    %v3493 = vshrl.u32 %v3492, 7
    %v3494 = vsub.s32 0, %v3493
    %v3495 = vrot.slane %v3490, %v3494
    %3497 = vmatprep.subr.mxu0 0.0
    %3498 = vmatpush1.msra.mxu0 %v3481
    %3499 = vmatprep.subr.mxu0 0.0
    %3500 = vmatpush1.msra.mxu0 %v3482
    %3501 = vmatprep.subr.mxu0 0.0
    %3502 = vmatpush1.msra.mxu0 %v3483
    %3503 = vmatprep.subr.mxu0 0.0
    %3504 = vmatpush1.msra.mxu0 %v3484
    %3505 = vmatprep.subr.mxu0 0.0
    %3506 = vmatpush1.msra.mxu0 %v3485
    %3507 = vmatprep.subr.mxu0 0.0
    %3508 = vmatpush1.msra.mxu0 %v3486
    %3509 = vmatprep.subr.mxu0 0.0
    %3510 = vmatpush1.msra.mxu0 %v3487
    %3511 = vmatprep.subr.mxu0 0.0
    %3512 = vmatpush1.msra.mxu0 %v3488
    %3513 = vmatprep.subr.mxu0 0.0
    %3514 = vmatpush1.msra.mxu0 0.0
    %3515 = vmatprep.subr.mxu0 0.0
    %3516 = vmatpush1.msra.mxu0 0.0
    %3517 = vmatprep.subr.mxu0 0.0
    %3518 = vmatpush1.msra.mxu0 0.0
    %3519 = vmatprep.subr.mxu0 0.0
    %3520 = vmatpush1.msra.mxu0 0.0
    %3521 = vmatprep.subr.mxu0 0.0
    %3522 = vmatpush1.msra.mxu0 0.0
    %3523 = vmatprep.subr.mxu0 0.0
    %3524 = vmatpush1.msra.mxu0 0.0
    %3525 = vmatprep.subr.mxu0 0.0
    %3526 = vmatpush1.msra.mxu0 0.0
    %3527 = vmatprep.subr.mxu0 0.0
    %3528 = vmatpush1.msra.mxu0 0.0
    %3529 = vmatprep.subr.mxu0 0.0
    %3530 = vmatpush1.msra.mxu0 0.0
    %3531 = vmatprep.subr.mxu0 0.0
    %3532 = vmatpush1.msra.mxu0 0.0
    %3533 = vmatprep.subr.mxu0 0.0
    %3534 = vmatpush1.msra.mxu0 0.0
    %3535 = vmatprep.subr.mxu0 0.0
    %3536 = vmatpush1.msra.mxu0 0.0
    %3537 = vmatprep.subr.mxu0 0.0
    %3538 = vmatpush1.msra.mxu0 0.0
    %3539 = vmatprep.subr.mxu0 0.0
    %3540 = vmatpush1.msra.mxu0 0.0
    %3541 = vmatprep.subr.mxu0 0.0
    %3542 = vmatpush1.msra.mxu0 0.0
    %3543 = vmatprep.subr.mxu0 0.0
    %3544 = vmatpush1.msra.mxu0 0.0
    %3545 = vmatprep.subr.mxu0 0.0
    %3546 = vmatpush1.msra.mxu0 0.0
    %3547 = vmatprep.subr.mxu0 0.0
    %3548 = vmatpush1.msra.mxu0 0.0
    %3549 = vmatprep.subr.mxu0 0.0
    %3550 = vmatpush1.msra.mxu0 0.0
    %3551 = vmatprep.subr.mxu0 0.0
    %3552 = vmatpush1.msra.mxu0 0.0
    %3553 = vmatprep.subr.mxu0 0.0
    %3554 = vmatpush1.msra.mxu0 0.0
    %3555 = vmatprep.subr.mxu0 0.0
    %3556 = vmatpush1.msra.mxu0 0.0
    %3557 = vmatprep.subr.mxu0 0.0
    %3558 = vmatpush1.msra.mxu0 0.0
    %3559 = vmatprep.subr.mxu0 0.0
    %3560 = vmatpush1.msra.mxu0 0.0
    %3561 = vmatprep.mubr.f32.mxu0 0.0
    %3562 = vmatmul.mubr.f32.gmra.mrb[0].mxu0 %v3406
    %v3563 = vpop.f32.mrb[0].mxu0
    %v3564 = vadd.f32 %v3495, %v3563
    %v3565 = vpop.f32.mrb[0].mxu0
    %3566 = vdwg.mxu0
    %v3567 = vmul.f32 %v3479, 1.442695
    %v3568 = vpow.pop %v3567
    %v3569 = vmul.f32 %v3138, %v3568
    %v3570 = vadd.f32 %v3569, %v3564
    %v3571 = vsel %vm235, %v3479, 0.0
    %3572 = vadd.xlane.f32.xlu0 %v3571
    %v3573 = vpop.xlane.xlu0 %3572
    %v3574 = vadd.f32 %v2829, %v3573
    %s3575 = scalar_lea.vmem %s13, 32
    %v3576 = vld [vmem:[%s3575] sm:$0xff]
    %s3577 = scalar_lea.vmem %s15, 32
    %v3578 = vld [vmem:[%s3577] sm:$0xff]
    %v3580 = vsel %vm235, %v3570, 0
    %3582 = vmatprep.subr.mxu0 0.0
    %3583 = vmatpush1.msra.mxu0 %v3578
    %3584 = vmatprep.subr.mxu0 0.0
    %3585 = vmatpush1.msra.mxu0 0.0
    %3586 = vmatprep.subr.mxu0 0.0
    %3587 = vmatpush1.msra.mxu0 0.0
    %3588 = vmatprep.subr.mxu0 0.0
    %3589 = vmatpush1.msra.mxu0 0.0
    %3590 = vmatprep.subr.mxu0 0.0
    %3591 = vmatpush1.msra.mxu0 0.0
    %3592 = vmatprep.subr.mxu0 0.0
    %3593 = vmatpush1.msra.mxu0 0.0
    %3594 = vmatprep.subr.mxu0 0.0
    %3595 = vmatpush1.msra.mxu0 0.0
    %3596 = vmatprep.subr.mxu0 0.0
    %3597 = vmatpush1.msra.mxu0 0.0
    %3598 = vmatprep.subr.mxu0 0.0
    %3599 = vmatpush1.msra.mxu0 0.0
    %3600 = vmatprep.subr.mxu0 0.0
    %3601 = vmatpush1.msra.mxu0 0.0
    %3602 = vmatprep.subr.mxu0 0.0
    %3603 = vmatpush1.msra.mxu0 0.0
    %3604 = vmatprep.subr.mxu0 0.0
    %3605 = vmatpush1.msra.mxu0 0.0
    %3606 = vmatprep.subr.mxu0 0.0
    %3607 = vmatpush1.msra.mxu0 0.0
    %3608 = vmatprep.subr.mxu0 0.0
    %3609 = vmatpush1.msra.mxu0 0.0
    %3610 = vmatprep.subr.mxu0 0.0
    %3611 = vmatpush1.msra.mxu0 0.0
    %3612 = vmatprep.subr.mxu0 0.0
    %3613 = vmatpush1.msra.mxu0 0.0
    %3614 = vmatprep.subr.mxu0 0.0
    %3615 = vmatpush1.msra.mxu0 0.0
    %3616 = vmatprep.subr.mxu0 0.0
    %3617 = vmatpush1.msra.mxu0 0.0
    %3618 = vmatprep.subr.mxu0 0.0
    %3619 = vmatpush1.msra.mxu0 0.0
    %3620 = vmatprep.subr.mxu0 0.0
    %3621 = vmatpush1.msra.mxu0 0.0
    %3622 = vmatprep.subr.mxu0 0.0
    %3623 = vmatpush1.msra.mxu0 0.0
    %3624 = vmatprep.subr.mxu0 0.0
    %3625 = vmatpush1.msra.mxu0 0.0
    %3626 = vmatprep.subr.mxu0 0.0
    %3627 = vmatpush1.msra.mxu0 0.0
    %3628 = vmatprep.subr.mxu0 0.0
    %3629 = vmatpush1.msra.mxu0 0.0
    %3630 = vmatprep.subr.mxu0 0.0
    %3631 = vmatpush1.msra.mxu0 0.0
    %3632 = vmatprep.subr.mxu0 0.0
    %3633 = vmatpush1.msra.mxu0 0.0
    %3634 = vmatprep.subr.mxu0 0.0
    %3635 = vmatpush1.msra.mxu0 0.0
    %3636 = vmatprep.subr.mxu0 0.0
    %3637 = vmatpush1.msra.mxu0 0.0
    %3638 = vmatprep.subr.mxu0 0.0
    %3639 = vmatpush1.msra.mxu0 0.0
    %3640 = vmatprep.subr.mxu0 0.0
    %3641 = vmatpush1.msra.mxu0 0.0
    %3642 = vmatprep.subr.mxu0 0.0
    %3643 = vmatpush1.msra.mxu0 0.0
    %3644 = vmatprep.subr.mxu0 0.0
    %3645 = vmatpush1.msra.mxu0 0.0
    %3646 = vmatprep.mubr.f32.mxu0 0.0
    %3647 = vmatmul.mubr.f32.gmra.mrb[0].mxu0 %v3580
    %v3648 = vpop.f32.mrb[0].mxu0
    %v3649 = vadd.f32 0.0, %v3648
    %v3650 = vpop.f32.mrb[0].mxu0
    %3651 = vdwg.mxu0
    %3652 = vmatprep.subr.mxu0 0.0
    %3653 = vmatpush1.msra.mxu0 %v3576
    %3654 = vmatprep.subr.mxu0 0.0
    %3655 = vmatpush1.msra.mxu0 0.0
    %3656 = vmatprep.subr.mxu0 0.0
    %3657 = vmatpush1.msra.mxu0 0.0
    %3658 = vmatprep.subr.mxu0 0.0
    %3659 = vmatpush1.msra.mxu0 0.0
    %3660 = vmatprep.subr.mxu0 0.0
    %3661 = vmatpush1.msra.mxu0 0.0
    %3662 = vmatprep.subr.mxu0 0.0
    %3663 = vmatpush1.msra.mxu0 0.0
    %3664 = vmatprep.subr.mxu0 0.0
    %3665 = vmatpush1.msra.mxu0 0.0
    %3666 = vmatprep.subr.mxu0 0.0
    %3667 = vmatpush1.msra.mxu0 0.0
    %3668 = vmatprep.subr.mxu0 0.0
    %3669 = vmatpush1.msra.mxu0 0.0
    %3670 = vmatprep.subr.mxu0 0.0
    %3671 = vmatpush1.msra.mxu0 0.0
    %3672 = vmatprep.subr.mxu0 0.0
    %3673 = vmatpush1.msra.mxu0 0.0
    %3674 = vmatprep.subr.mxu0 0.0
    %3675 = vmatpush1.msra.mxu0 0.0
    %3676 = vmatprep.subr.mxu0 0.0
    %3677 = vmatpush1.msra.mxu0 0.0
    %3678 = vmatprep.subr.mxu0 0.0
    %3679 = vmatpush1.msra.mxu0 0.0
    %3680 = vmatprep.subr.mxu0 0.0
    %3681 = vmatpush1.msra.mxu0 0.0
    %3682 = vmatprep.subr.mxu0 0.0
    %3683 = vmatpush1.msra.mxu0 0.0
    %3684 = vmatprep.subr.mxu0 0.0
    %3685 = vmatpush1.msra.mxu0 0.0
    %3686 = vmatprep.subr.mxu0 0.0
    %3687 = vmatpush1.msra.mxu0 0.0
    %3688 = vmatprep.subr.mxu0 0.0
    %3689 = vmatpush1.msra.mxu0 0.0
    %3690 = vmatprep.subr.mxu0 0.0
    %3691 = vmatpush1.msra.mxu0 0.0
    %3692 = vmatprep.subr.mxu0 0.0
    %3693 = vmatpush1.msra.mxu0 0.0
    %3694 = vmatprep.subr.mxu0 0.0
    %3695 = vmatpush1.msra.mxu0 0.0
    %3696 = vmatprep.subr.mxu0 0.0
    %3697 = vmatpush1.msra.mxu0 0.0
    %3698 = vmatprep.subr.mxu0 0.0
    %3699 = vmatpush1.msra.mxu0 0.0
    %3700 = vmatprep.subr.mxu0 0.0
    %3701 = vmatpush1.msra.mxu0 0.0
    %3702 = vmatprep.subr.mxu0 0.0
    %3703 = vmatpush1.msra.mxu0 0.0
    %3704 = vmatprep.subr.mxu0 0.0
    %3705 = vmatpush1.msra.mxu0 0.0
    %3706 = vmatprep.subr.mxu0 0.0
    %3707 = vmatpush1.msra.mxu0 0.0
    %3708 = vmatprep.subr.mxu0 0.0
    %3709 = vmatpush1.msra.mxu0 0.0
    %3710 = vmatprep.subr.mxu0 0.0
    %3711 = vmatpush1.msra.mxu0 0.0
    %3712 = vmatprep.subr.mxu0 0.0
    %3713 = vmatpush1.msra.mxu0 0.0
    %3714 = vmatprep.subr.mxu0 0.0
    %3715 = vmatpush1.msra.mxu0 0.0
    %3716 = vmatprep.mubr.f32.mxu0 0.0
    %3717 = vmatmul.mubr.f32.gmra.mrb[0].mxu0 %v3215
    %v3718 = vpop.f32.mrb[0].mxu0
    %v3719 = vadd.f32 %v3649, %v3718
    %v3720 = vpop.f32.mrb[0].mxu0
    %3721 = vdwg.mxu0
    %s3722 = scalar_lea.vmem %s17, 4
    %v3723 = vld [vmem:[%s3722] sm:$0x1]
    %v3725 = vlaneseq
    %v3726 = vshrl.u32 %v3725, 7
    %v3727 = vsub.s32 0, %v3726
    %v3728 = vrot.slane %v3723, %v3727
    %v3730 = vadd.f32 %v3719, %v3728
    %s3731 = scalar_lea.vmem %s14, 32
    %v3732 = vld [vmem:[%s3731] sm:$0xff]
    %s3733 = scalar_lea.vmem %s16, 32
    %v3734 = vld [vmem:[%s3733] sm:$0xff]
    %3735 = vmatprep.subr.mxu0 0.0
    %3736 = vmatpush1.msra.mxu0 %v3734
    %3737 = vmatprep.subr.mxu0 0.0
    %3738 = vmatpush1.msra.mxu0 0.0
    %3739 = vmatprep.subr.mxu0 0.0
    %3740 = vmatpush1.msra.mxu0 0.0
    %3741 = vmatprep.subr.mxu0 0.0
    %3742 = vmatpush1.msra.mxu0 0.0
    %3743 = vmatprep.subr.mxu0 0.0
    %3744 = vmatpush1.msra.mxu0 0.0
    %3745 = vmatprep.subr.mxu0 0.0
    %3746 = vmatpush1.msra.mxu0 0.0
    %3747 = vmatprep.subr.mxu0 0.0
    %3748 = vmatpush1.msra.mxu0 0.0
    %3749 = vmatprep.subr.mxu0 0.0
    %3750 = vmatpush1.msra.mxu0 0.0
    %3751 = vmatprep.subr.mxu0 0.0
    %3752 = vmatpush1.msra.mxu0 0.0
    %3753 = vmatprep.subr.mxu0 0.0
    %3754 = vmatpush1.msra.mxu0 0.0
    %3755 = vmatprep.subr.mxu0 0.0
    %3756 = vmatpush1.msra.mxu0 0.0
    %3757 = vmatprep.subr.mxu0 0.0
    %3758 = vmatpush1.msra.mxu0 0.0
    %3759 = vmatprep.subr.mxu0 0.0
    %3760 = vmatpush1.msra.mxu0 0.0
    %3761 = vmatprep.subr.mxu0 0.0
    %3762 = vmatpush1.msra.mxu0 0.0
    %3763 = vmatprep.subr.mxu0 0.0
    %3764 = vmatpush1.msra.mxu0 0.0
    %3765 = vmatprep.subr.mxu0 0.0
    %3766 = vmatpush1.msra.mxu0 0.0
    %3767 = vmatprep.subr.mxu0 0.0
    %3768 = vmatpush1.msra.mxu0 0.0
    %3769 = vmatprep.subr.mxu0 0.0
    %3770 = vmatpush1.msra.mxu0 0.0
    %3771 = vmatprep.subr.mxu0 0.0
    %3772 = vmatpush1.msra.mxu0 0.0
    %3773 = vmatprep.subr.mxu0 0.0
    %3774 = vmatpush1.msra.mxu0 0.0
    %3775 = vmatprep.subr.mxu0 0.0
    %3776 = vmatpush1.msra.mxu0 0.0
    %3777 = vmatprep.subr.mxu0 0.0
    %3778 = vmatpush1.msra.mxu0 0.0
    %3779 = vmatprep.subr.mxu0 0.0
    %3780 = vmatpush1.msra.mxu0 0.0
    %3781 = vmatprep.subr.mxu0 0.0
    %3782 = vmatpush1.msra.mxu0 0.0
    %3783 = vmatprep.subr.mxu0 0.0
    %3784 = vmatpush1.msra.mxu0 0.0
    %3785 = vmatprep.subr.mxu0 0.0
    %3786 = vmatpush1.msra.mxu0 0.0
    %3787 = vmatprep.subr.mxu0 0.0
    %3788 = vmatpush1.msra.mxu0 0.0
    %3789 = vmatprep.subr.mxu0 0.0
    %3790 = vmatpush1.msra.mxu0 0.0
    %3791 = vmatprep.subr.mxu0 0.0
    %3792 = vmatpush1.msra.mxu0 0.0
    %3793 = vmatprep.subr.mxu0 0.0
    %3794 = vmatpush1.msra.mxu0 0.0
    %3795 = vmatprep.subr.mxu0 0.0
    %3796 = vmatpush1.msra.mxu0 0.0
    %3797 = vmatprep.subr.mxu0 0.0
    %3798 = vmatpush1.msra.mxu0 0.0
    %3799 = vmatprep.mubr.f32.mxu0 0.0
    %3800 = vmatmul.mubr.f32.gmra.mrb[0].mxu0 %v3580
    %v3801 = vpop.f32.mrb[0].mxu0
    %v3802 = vadd.f32 0.0, %v3801
    %v3803 = vpop.f32.mrb[0].mxu0
    %3804 = vdwg.mxu0
    %3805 = vmatprep.subr.mxu0 0.0
    %3806 = vmatpush1.msra.mxu0 %v3732
    %3807 = vmatprep.subr.mxu0 0.0
    %3808 = vmatpush1.msra.mxu0 0.0
    %3809 = vmatprep.subr.mxu0 0.0
    %3810 = vmatpush1.msra.mxu0 0.0
    %3811 = vmatprep.subr.mxu0 0.0
    %3812 = vmatpush1.msra.mxu0 0.0
    %3813 = vmatprep.subr.mxu0 0.0
    %3814 = vmatpush1.msra.mxu0 0.0
    %3815 = vmatprep.subr.mxu0 0.0
    %3816 = vmatpush1.msra.mxu0 0.0
    %3817 = vmatprep.subr.mxu0 0.0
    %3818 = vmatpush1.msra.mxu0 0.0
    %3819 = vmatprep.subr.mxu0 0.0
    %3820 = vmatpush1.msra.mxu0 0.0
    %3821 = vmatprep.subr.mxu0 0.0
    %3822 = vmatpush1.msra.mxu0 0.0
    %3823 = vmatprep.subr.mxu0 0.0
    %3824 = vmatpush1.msra.mxu0 0.0
    %3825 = vmatprep.subr.mxu0 0.0
    %3826 = vmatpush1.msra.mxu0 0.0
    %3827 = vmatprep.subr.mxu0 0.0
    %3828 = vmatpush1.msra.mxu0 0.0
    %3829 = vmatprep.subr.mxu0 0.0
    %3830 = vmatpush1.msra.mxu0 0.0
    %3831 = vmatprep.subr.mxu0 0.0
    %3832 = vmatpush1.msra.mxu0 0.0
    %3833 = vmatprep.subr.mxu0 0.0
    %3834 = vmatpush1.msra.mxu0 0.0
    %3835 = vmatprep.subr.mxu0 0.0
    %3836 = vmatpush1.msra.mxu0 0.0
    %3837 = vmatprep.subr.mxu0 0.0
    %3838 = vmatpush1.msra.mxu0 0.0
    %3839 = vmatprep.subr.mxu0 0.0
    %3840 = vmatpush1.msra.mxu0 0.0
    %3841 = vmatprep.subr.mxu0 0.0
    %3842 = vmatpush1.msra.mxu0 0.0
    %3843 = vmatprep.subr.mxu0 0.0
    %3844 = vmatpush1.msra.mxu0 0.0
    %3845 = vmatprep.subr.mxu0 0.0
    %3846 = vmatpush1.msra.mxu0 0.0
    %3847 = vmatprep.subr.mxu0 0.0
    %3848 = vmatpush1.msra.mxu0 0.0
    %3849 = vmatprep.subr.mxu0 0.0
    %3850 = vmatpush1.msra.mxu0 0.0
    %3851 = vmatprep.subr.mxu0 0.0
    %3852 = vmatpush1.msra.mxu0 0.0
    %3853 = vmatprep.subr.mxu0 0.0
    %3854 = vmatpush1.msra.mxu0 0.0
    %3855 = vmatprep.subr.mxu0 0.0
    %3856 = vmatpush1.msra.mxu0 0.0
    %3857 = vmatprep.subr.mxu0 0.0
    %3858 = vmatpush1.msra.mxu0 0.0
    %3859 = vmatprep.subr.mxu0 0.0
    %3860 = vmatpush1.msra.mxu0 0.0
    %3861 = vmatprep.subr.mxu0 0.0
    %3862 = vmatpush1.msra.mxu0 0.0
    %3863 = vmatprep.subr.mxu0 0.0
    %3864 = vmatpush1.msra.mxu0 0.0
    %3865 = vmatprep.subr.mxu0 0.0
    %3866 = vmatpush1.msra.mxu0 0.0
    %3867 = vmatprep.subr.mxu0 0.0
    %3868 = vmatpush1.msra.mxu0 0.0
    %3869 = vmatprep.mubr.f32.mxu0 0.0
    %3870 = vmatmul.mubr.f32.gmra.mrb[0].mxu0 %v3215
    %v3871 = vpop.f32.mrb[0].mxu0
    %v3872 = vadd.f32 %v3802, %v3871
    %v3873 = vpop.f32.mrb[0].mxu0
    %3874 = vdwg.mxu0
    %s3875 = scalar_lea.vmem %s18, 4
    %v3876 = vld [vmem:[%s3875] sm:$0x1]
    %v3878 = vlaneseq
    %v3879 = vshrl.u32 %v3878, 7
    %v3880 = vsub.s32 0, %v3879
    %v3881 = vrot.slane %v3876, %v3880
    %v3883 = vadd.f32 %v3872, %v3881
    %s3884 = scalar_lea.vmem %s4, 40
    %v3885 = vld [vmem:[%s3884] sm:$0xff]
    %s3886 = scalar_lea.vmem %s5, 80
    %v3887 = vld [vmem:[%s3886] sm:$0xff]
    %v3888 = vld [vmem:[%s3886 + $0x8] sm:$0xff]
    %3889 = vmatprep.subr.mxu0 0.0
    %3890 = vmatpush1.msra.mxu0 %v3887
    %3891 = vmatprep.subr.mxu0 0.0
    %3892 = vmatpush1.msra.mxu0 %v3888
    %3893 = vmatprep.subr.mxu0 0.0
    %3894 = vmatpush1.msra.mxu0 0.0
    %3895 = vmatprep.subr.mxu0 0.0
    %3896 = vmatpush1.msra.mxu0 0.0
    %3897 = vmatprep.subr.mxu0 0.0
    %3898 = vmatpush1.msra.mxu0 0.0
    %3899 = vmatprep.subr.mxu0 0.0
    %3900 = vmatpush1.msra.mxu0 0.0
    %3901 = vmatprep.subr.mxu0 0.0
    %3902 = vmatpush1.msra.mxu0 0.0
    %3903 = vmatprep.subr.mxu0 0.0
    %3904 = vmatpush1.msra.mxu0 0.0
    %3905 = vmatprep.subr.mxu0 0.0
    %3906 = vmatpush1.msra.mxu0 0.0
    %3907 = vmatprep.subr.mxu0 0.0
    %3908 = vmatpush1.msra.mxu0 0.0
    %3909 = vmatprep.subr.mxu0 0.0
    %3910 = vmatpush1.msra.mxu0 0.0
    %3911 = vmatprep.subr.mxu0 0.0
    %3912 = vmatpush1.msra.mxu0 0.0
    %3913 = vmatprep.subr.mxu0 0.0
    %3914 = vmatpush1.msra.mxu0 0.0
    %3915 = vmatprep.subr.mxu0 0.0
    %3916 = vmatpush1.msra.mxu0 0.0
    %3917 = vmatprep.subr.mxu0 0.0
    %3918 = vmatpush1.msra.mxu0 0.0
    %3919 = vmatprep.subr.mxu0 0.0
    %3920 = vmatpush1.msra.mxu0 0.0
    %3921 = vmatprep.subr.mxu0 0.0
    %3922 = vmatpush1.msra.mxu0 0.0
    %3923 = vmatprep.subr.mxu0 0.0
    %3924 = vmatpush1.msra.mxu0 0.0
    %3925 = vmatprep.subr.mxu0 0.0
    %3926 = vmatpush1.msra.mxu0 0.0
    %3927 = vmatprep.subr.mxu0 0.0
    %3928 = vmatpush1.msra.mxu0 0.0
    %3929 = vmatprep.subr.mxu0 0.0
    %3930 = vmatpush1.msra.mxu0 0.0
    %3931 = vmatprep.subr.mxu0 0.0
    %3932 = vmatpush1.msra.mxu0 0.0
    %3933 = vmatprep.subr.mxu0 0.0
    %3934 = vmatpush1.msra.mxu0 0.0
    %3935 = vmatprep.subr.mxu0 0.0
    %3936 = vmatpush1.msra.mxu0 0.0
    %3937 = vmatprep.subr.mxu0 0.0
    %3938 = vmatpush1.msra.mxu0 0.0
    %3939 = vmatprep.subr.mxu0 0.0
    %3940 = vmatpush1.msra.mxu0 0.0
    %3941 = vmatprep.subr.mxu0 0.0
    %3942 = vmatpush1.msra.mxu0 0.0
    %3943 = vmatprep.subr.mxu0 0.0
    %3944 = vmatpush1.msra.mxu0 0.0
    %3945 = vmatprep.subr.mxu0 0.0
    %3946 = vmatpush1.msra.mxu0 0.0
    %3947 = vmatprep.subr.mxu0 0.0
    %3948 = vmatpush1.msra.mxu0 0.0
    %3949 = vmatprep.subr.mxu0 0.0
    %3950 = vmatpush1.msra.mxu0 0.0
    %3951 = vmatprep.subr.mxu0 0.0
    %3952 = vmatpush1.msra.mxu0 0.0
    %3953 = vmatprep.mubr.f32.mxu0 0.0
    %3954 = vmatmul.mubr.f32.gmra.mrb[0].mxu0 %v163
    %v3955 = vpop.f32.mrb[0].mxu0
    %v3956 = vadd.f32 0.0, %v3955
    %v3957 = vpop.f32.mrb[0].mxu0
    %3958 = vdwg.mxu0
    %v3960 = vsel %vm235, %v3730, 0
    %3962 = vmatprep.subr.mxu0 0.0
    %3963 = vmatpush1.msra.mxu0 %v3885
    %3964 = vmatprep.subr.mxu0 0.0
    %3965 = vmatpush1.msra.mxu0 0.0
    %3966 = vmatprep.subr.mxu0 0.0
    %3967 = vmatpush1.msra.mxu0 0.0
    %3968 = vmatprep.subr.mxu0 0.0
    %3969 = vmatpush1.msra.mxu0 0.0
    %3970 = vmatprep.subr.mxu0 0.0
    %3971 = vmatpush1.msra.mxu0 0.0
    %3972 = vmatprep.subr.mxu0 0.0
    %3973 = vmatpush1.msra.mxu0 0.0
    %3974 = vmatprep.subr.mxu0 0.0
    %3975 = vmatpush1.msra.mxu0 0.0
    %3976 = vmatprep.subr.mxu0 0.0
    %3977 = vmatpush1.msra.mxu0 0.0
    %3978 = vmatprep.subr.mxu0 0.0
    %3979 = vmatpush1.msra.mxu0 0.0
    %3980 = vmatprep.subr.mxu0 0.0
    %3981 = vmatpush1.msra.mxu0 0.0
    %3982 = vmatprep.subr.mxu0 0.0
    %3983 = vmatpush1.msra.mxu0 0.0
    %3984 = vmatprep.subr.mxu0 0.0
    %3985 = vmatpush1.msra.mxu0 0.0
    %3986 = vmatprep.subr.mxu0 0.0
    %3987 = vmatpush1.msra.mxu0 0.0
    %3988 = vmatprep.subr.mxu0 0.0
    %3989 = vmatpush1.msra.mxu0 0.0
    %3990 = vmatprep.subr.mxu0 0.0
    %3991 = vmatpush1.msra.mxu0 0.0
    %3992 = vmatprep.subr.mxu0 0.0
    %3993 = vmatpush1.msra.mxu0 0.0
    %3994 = vmatprep.subr.mxu0 0.0
    %3995 = vmatpush1.msra.mxu0 0.0
    %3996 = vmatprep.subr.mxu0 0.0
    %3997 = vmatpush1.msra.mxu0 0.0
    %3998 = vmatprep.subr.mxu0 0.0
    %3999 = vmatpush1.msra.mxu0 0.0
    %4000 = vmatprep.subr.mxu0 0.0
    %4001 = vmatpush1.msra.mxu0 0.0
    %4002 = vmatprep.subr.mxu0 0.0
    %4003 = vmatpush1.msra.mxu0 0.0
    %4004 = vmatprep.subr.mxu0 0.0
    %4005 = vmatpush1.msra.mxu0 0.0
    %4006 = vmatprep.subr.mxu0 0.0
    %4007 = vmatpush1.msra.mxu0 0.0
    %4008 = vmatprep.subr.mxu0 0.0
    %4009 = vmatpush1.msra.mxu0 0.0
    %4010 = vmatprep.subr.mxu0 0.0
    %4011 = vmatpush1.msra.mxu0 0.0
    %4012 = vmatprep.subr.mxu0 0.0
    %4013 = vmatpush1.msra.mxu0 0.0
    %4014 = vmatprep.subr.mxu0 0.0
    %4015 = vmatpush1.msra.mxu0 0.0
    %4016 = vmatprep.subr.mxu0 0.0
    %4017 = vmatpush1.msra.mxu0 0.0
    %4018 = vmatprep.subr.mxu0 0.0
    %4019 = vmatpush1.msra.mxu0 0.0
    %4020 = vmatprep.subr.mxu0 0.0
    %4021 = vmatpush1.msra.mxu0 0.0
    %4022 = vmatprep.subr.mxu0 0.0
    %4023 = vmatpush1.msra.mxu0 0.0
    %4024 = vmatprep.subr.mxu0 0.0
    %4025 = vmatpush1.msra.mxu0 0.0
    %4026 = vmatprep.mubr.f32.mxu0 0.0
    %4027 = vmatmul.mubr.f32.gmra.mrb[0].mxu0 %v3960
    %v4028 = vpop.f32.mrb[0].mxu0
    %v4029 = vadd.f32 %v3956, %v4028
    %v4030 = vpop.f32.mrb[0].mxu0
    %4031 = vdwg.mxu0
    %s4032 = scalar_lea.vmem %s6, 5
    %v4033 = vld [vmem:[%s4032] sm:$0x1]
    %v4035 = vlaneseq
    %v4036 = vshrl.u32 %v4035, 7
    %v4037 = vsub.s32 0, %v4036
    %v4038 = vrot.slane %v4033, %v4037
    %v4040 = vadd.f32 %v4029, %v4038
    %v4041 = vmax.f32 %v4040, 0.0
    %s4042 = scalar_lea.vmem %s7, 320
    %v4043 = vld [vmem:[%s4042] sm:$0xff]
    %v4044 = vld [vmem:[%s4042 + $0x8] sm:$0xff]
    %v4045 = vld [vmem:[%s4042 + $0x10] sm:$0xff]
    %v4046 = vld [vmem:[%s4042 + $0x18] sm:$0xff]
    %v4047 = vld [vmem:[%s4042 + $0x20] sm:$0xff]
    %v4048 = vld [vmem:[%s4042 + $0x28] sm:$0xff]
    %v4049 = vld [vmem:[%s4042 + $0x30] sm:$0xff]
    %v4050 = vld [vmem:[%s4042 + $0x38] sm:$0xff]
    %s4051 = scalar_lea.vmem %s8, 5
    %v4052 = vld [vmem:[%s4051] sm:$0x1]
    %v4054 = vlaneseq
    %v4055 = vshrl.u32 %v4054, 7
    %v4056 = vsub.s32 0, %v4055
    %v4057 = vrot.slane %v4052, %v4056
    %v4060 = vsel %vm333, %v4041, 0
    %4062 = vmatprep.subr.mxu0 0.0
    %4063 = vmatpush1.msra.mxu0 %v4043
    %4064 = vmatprep.subr.mxu0 0.0
    %4065 = vmatpush1.msra.mxu0 %v4044
    %4066 = vmatprep.subr.mxu0 0.0
    %4067 = vmatpush1.msra.mxu0 %v4045
    %4068 = vmatprep.subr.mxu0 0.0
    %4069 = vmatpush1.msra.mxu0 %v4046
    %4070 = vmatprep.subr.mxu0 0.0
    %4071 = vmatpush1.msra.mxu0 %v4047
    %4072 = vmatprep.subr.mxu0 0.0
    %4073 = vmatpush1.msra.mxu0 %v4048
    %4074 = vmatprep.subr.mxu0 0.0
    %4075 = vmatpush1.msra.mxu0 %v4049
    %4076 = vmatprep.subr.mxu0 0.0
    %4077 = vmatpush1.msra.mxu0 %v4050
    %4078 = vmatprep.subr.mxu0 0.0
    %4079 = vmatpush1.msra.mxu0 0.0
    %4080 = vmatprep.subr.mxu0 0.0
    %4081 = vmatpush1.msra.mxu0 0.0
    %4082 = vmatprep.subr.mxu0 0.0
    %4083 = vmatpush1.msra.mxu0 0.0
    %4084 = vmatprep.subr.mxu0 0.0
    %4085 = vmatpush1.msra.mxu0 0.0
    %4086 = vmatprep.subr.mxu0 0.0
    %4087 = vmatpush1.msra.mxu0 0.0
    %4088 = vmatprep.subr.mxu0 0.0
    %4089 = vmatpush1.msra.mxu0 0.0
    %4090 = vmatprep.subr.mxu0 0.0
    %4091 = vmatpush1.msra.mxu0 0.0
    %4092 = vmatprep.subr.mxu0 0.0
    %4093 = vmatpush1.msra.mxu0 0.0
    %4094 = vmatprep.subr.mxu0 0.0
    %4095 = vmatpush1.msra.mxu0 0.0
    %4096 = vmatprep.subr.mxu0 0.0
    %4097 = vmatpush1.msra.mxu0 0.0
    %4098 = vmatprep.subr.mxu0 0.0
    %4099 = vmatpush1.msra.mxu0 0.0
    %4100 = vmatprep.subr.mxu0 0.0
    %4101 = vmatpush1.msra.mxu0 0.0
    %4102 = vmatprep.subr.mxu0 0.0
    %4103 = vmatpush1.msra.mxu0 0.0
    %4104 = vmatprep.subr.mxu0 0.0
    %4105 = vmatpush1.msra.mxu0 0.0
    %4106 = vmatprep.subr.mxu0 0.0
    %4107 = vmatpush1.msra.mxu0 0.0
    %4108 = vmatprep.subr.mxu0 0.0
    %4109 = vmatpush1.msra.mxu0 0.0
    %4110 = vmatprep.subr.mxu0 0.0
    %4111 = vmatpush1.msra.mxu0 0.0
    %4112 = vmatprep.subr.mxu0 0.0
    %4113 = vmatpush1.msra.mxu0 0.0
    %4114 = vmatprep.subr.mxu0 0.0
    %4115 = vmatpush1.msra.mxu0 0.0
    %4116 = vmatprep.subr.mxu0 0.0
    %4117 = vmatpush1.msra.mxu0 0.0
    %4118 = vmatprep.subr.mxu0 0.0
    %4119 = vmatpush1.msra.mxu0 0.0
    %4120 = vmatprep.subr.mxu0 0.0
    %4121 = vmatpush1.msra.mxu0 0.0
    %4122 = vmatprep.subr.mxu0 0.0
    %4123 = vmatpush1.msra.mxu0 0.0
    %4124 = vmatprep.subr.mxu0 0.0
    %4125 = vmatpush1.msra.mxu0 0.0
    %4126 = vmatprep.mubr.f32.mxu0 0.0
    %4127 = vmatmul.mubr.f32.gmra.mrb[0].mxu0 %v4060
    %v4128 = vpop.f32.mrb[0].mxu0
    %v4129 = vadd.f32 %v4057, %v4128
    %v4130 = vpop.f32.mrb[0].mxu0
    %4131 = vdwg.mxu0
    %v4132 = vmax.f32 %v4129, 0.0
    %s4133 = scalar_lea.vmem %s9, 320
    %v4134 = vld [vmem:[%s4133] sm:$0xff]
    %v4135 = vld [vmem:[%s4133 + $0x8] sm:$0xff]
    %v4136 = vld [vmem:[%s4133 + $0x10] sm:$0xff]
    %v4137 = vld [vmem:[%s4133 + $0x18] sm:$0xff]
    %v4138 = vld [vmem:[%s4133 + $0x20] sm:$0xff]
    %v4139 = vld [vmem:[%s4133 + $0x28] sm:$0xff]
    %v4140 = vld [vmem:[%s4133 + $0x30] sm:$0xff]
    %v4141 = vld [vmem:[%s4133 + $0x38] sm:$0xff]
    %s4142 = scalar_lea.vmem %s10, 5
    %v4143 = vld [vmem:[%s4142] sm:$0x1]
    %v4145 = vlaneseq
    %v4146 = vshrl.u32 %v4145, 7
    %v4147 = vsub.s32 0, %v4146
    %v4148 = vrot.slane %v4143, %v4147
    %v4151 = vsel %vm333, %v4132, 0
    %4153 = vmatprep.subr.mxu0 0.0
    %4154 = vmatpush1.msra.mxu0 %v4134
    %4155 = vmatprep.subr.mxu0 0.0
    %4156 = vmatpush1.msra.mxu0 %v4135
    %4157 = vmatprep.subr.mxu0 0.0
    %4158 = vmatpush1.msra.mxu0 %v4136
    %4159 = vmatprep.subr.mxu0 0.0
    %4160 = vmatpush1.msra.mxu0 %v4137
    %4161 = vmatprep.subr.mxu0 0.0
    %4162 = vmatpush1.msra.mxu0 %v4138
    %4163 = vmatprep.subr.mxu0 0.0
    %4164 = vmatpush1.msra.mxu0 %v4139
    %4165 = vmatprep.subr.mxu0 0.0
    %4166 = vmatpush1.msra.mxu0 %v4140
    %4167 = vmatprep.subr.mxu0 0.0
    %4168 = vmatpush1.msra.mxu0 %v4141
    %4169 = vmatprep.subr.mxu0 0.0
    %4170 = vmatpush1.msra.mxu0 0.0
    %4171 = vmatprep.subr.mxu0 0.0
    %4172 = vmatpush1.msra.mxu0 0.0
    %4173 = vmatprep.subr.mxu0 0.0
    %4174 = vmatpush1.msra.mxu0 0.0
    %4175 = vmatprep.subr.mxu0 0.0
    %4176 = vmatpush1.msra.mxu0 0.0
    %4177 = vmatprep.subr.mxu0 0.0
    %4178 = vmatpush1.msra.mxu0 0.0
    %4179 = vmatprep.subr.mxu0 0.0
    %4180 = vmatpush1.msra.mxu0 0.0
    %4181 = vmatprep.subr.mxu0 0.0
    %4182 = vmatpush1.msra.mxu0 0.0
    %4183 = vmatprep.subr.mxu0 0.0
    %4184 = vmatpush1.msra.mxu0 0.0
    %4185 = vmatprep.subr.mxu0 0.0
    %4186 = vmatpush1.msra.mxu0 0.0
    %4187 = vmatprep.subr.mxu0 0.0
    %4188 = vmatpush1.msra.mxu0 0.0
    %4189 = vmatprep.subr.mxu0 0.0
    %4190 = vmatpush1.msra.mxu0 0.0
    %4191 = vmatprep.subr.mxu0 0.0
    %4192 = vmatpush1.msra.mxu0 0.0
    %4193 = vmatprep.subr.mxu0 0.0
    %4194 = vmatpush1.msra.mxu0 0.0
    %4195 = vmatprep.subr.mxu0 0.0
    %4196 = vmatpush1.msra.mxu0 0.0
    %4197 = vmatprep.subr.mxu0 0.0
    %4198 = vmatpush1.msra.mxu0 0.0
    %4199 = vmatprep.subr.mxu0 0.0
    %4200 = vmatpush1.msra.mxu0 0.0
    %4201 = vmatprep.subr.mxu0 0.0
    %4202 = vmatpush1.msra.mxu0 0.0
    %4203 = vmatprep.subr.mxu0 0.0
    %4204 = vmatpush1.msra.mxu0 0.0
    %4205 = vmatprep.subr.mxu0 0.0
    %4206 = vmatpush1.msra.mxu0 0.0
    %4207 = vmatprep.subr.mxu0 0.0
    %4208 = vmatpush1.msra.mxu0 0.0
    %4209 = vmatprep.subr.mxu0 0.0
    %4210 = vmatpush1.msra.mxu0 0.0
    %4211 = vmatprep.subr.mxu0 0.0
    %4212 = vmatpush1.msra.mxu0 0.0
    %4213 = vmatprep.subr.mxu0 0.0
    %4214 = vmatpush1.msra.mxu0 0.0
    %4215 = vmatprep.subr.mxu0 0.0
    %4216 = vmatpush1.msra.mxu0 0.0
    %4217 = vmatprep.mubr.f32.mxu0 0.0
    %4218 = vmatmul.mubr.f32.gmra.mrb[0].mxu0 %v4151
    %v4219 = vpop.f32.mrb[0].mxu0
    %v4220 = vadd.f32 %v4148, %v4219
    %v4221 = vpop.f32.mrb[0].mxu0
    %4222 = vdwg.mxu0
    %v4223 = vtanh.pop %v4220
    %v4224 = vmul.f32 %v4223, 2.0
    %s4225 = scalar_lea.vmem %s11, 320
    %v4226 = vld [vmem:[%s4225] sm:$0xff]
    %v4227 = vld [vmem:[%s4225 + $0x8] sm:$0xff]
    %v4228 = vld [vmem:[%s4225 + $0x10] sm:$0xff]
    %v4229 = vld [vmem:[%s4225 + $0x18] sm:$0xff]
    %v4230 = vld [vmem:[%s4225 + $0x20] sm:$0xff]
    %v4231 = vld [vmem:[%s4225 + $0x28] sm:$0xff]
    %v4232 = vld [vmem:[%s4225 + $0x30] sm:$0xff]
    %v4233 = vld [vmem:[%s4225 + $0x38] sm:$0xff]
    %s4234 = scalar_lea.vmem %s12, 5
    %v4235 = vld [vmem:[%s4234] sm:$0x1]
    %v4237 = vlaneseq
    %v4238 = vshrl.u32 %v4237, 7
    %v4239 = vsub.s32 0, %v4238
    %v4240 = vrot.slane %v4235, %v4239
    %4242 = vmatprep.subr.mxu0 0.0
    %4243 = vmatpush1.msra.mxu0 %v4226
    %4244 = vmatprep.subr.mxu0 0.0
    %4245 = vmatpush1.msra.mxu0 %v4227
    %4246 = vmatprep.subr.mxu0 0.0
    %4247 = vmatpush1.msra.mxu0 %v4228
    %4248 = vmatprep.subr.mxu0 0.0
    %4249 = vmatpush1.msra.mxu0 %v4229
    %4250 = vmatprep.subr.mxu0 0.0
    %4251 = vmatpush1.msra.mxu0 %v4230
    %4252 = vmatprep.subr.mxu0 0.0
    %4253 = vmatpush1.msra.mxu0 %v4231
    %4254 = vmatprep.subr.mxu0 0.0
    %4255 = vmatpush1.msra.mxu0 %v4232
    %4256 = vmatprep.subr.mxu0 0.0
    %4257 = vmatpush1.msra.mxu0 %v4233
    %4258 = vmatprep.subr.mxu0 0.0
    %4259 = vmatpush1.msra.mxu0 0.0
    %4260 = vmatprep.subr.mxu0 0.0
    %4261 = vmatpush1.msra.mxu0 0.0
    %4262 = vmatprep.subr.mxu0 0.0
    %4263 = vmatpush1.msra.mxu0 0.0
    %4264 = vmatprep.subr.mxu0 0.0
    %4265 = vmatpush1.msra.mxu0 0.0
    %4266 = vmatprep.subr.mxu0 0.0
    %4267 = vmatpush1.msra.mxu0 0.0
    %4268 = vmatprep.subr.mxu0 0.0
    %4269 = vmatpush1.msra.mxu0 0.0
    %4270 = vmatprep.subr.mxu0 0.0
    %4271 = vmatpush1.msra.mxu0 0.0
    %4272 = vmatprep.subr.mxu0 0.0
    %4273 = vmatpush1.msra.mxu0 0.0
    %4274 = vmatprep.subr.mxu0 0.0
    %4275 = vmatpush1.msra.mxu0 0.0
    %4276 = vmatprep.subr.mxu0 0.0
    %4277 = vmatpush1.msra.mxu0 0.0
    %4278 = vmatprep.subr.mxu0 0.0
    %4279 = vmatpush1.msra.mxu0 0.0
    %4280 = vmatprep.subr.mxu0 0.0
    %4281 = vmatpush1.msra.mxu0 0.0
    %4282 = vmatprep.subr.mxu0 0.0
    %4283 = vmatpush1.msra.mxu0 0.0
    %4284 = vmatprep.subr.mxu0 0.0
    %4285 = vmatpush1.msra.mxu0 0.0
    %4286 = vmatprep.subr.mxu0 0.0
    %4287 = vmatpush1.msra.mxu0 0.0
    %4288 = vmatprep.subr.mxu0 0.0
    %4289 = vmatpush1.msra.mxu0 0.0
    %4290 = vmatprep.subr.mxu0 0.0
    %4291 = vmatpush1.msra.mxu0 0.0
    %4292 = vmatprep.subr.mxu0 0.0
    %4293 = vmatpush1.msra.mxu0 0.0
    %4294 = vmatprep.subr.mxu0 0.0
    %4295 = vmatpush1.msra.mxu0 0.0
    %4296 = vmatprep.subr.mxu0 0.0
    %4297 = vmatpush1.msra.mxu0 0.0
    %4298 = vmatprep.subr.mxu0 0.0
    %4299 = vmatpush1.msra.mxu0 0.0
    %4300 = vmatprep.subr.mxu0 0.0
    %4301 = vmatpush1.msra.mxu0 0.0
    %4302 = vmatprep.subr.mxu0 0.0
    %4303 = vmatpush1.msra.mxu0 0.0
    %4304 = vmatprep.subr.mxu0 0.0
    %4305 = vmatpush1.msra.mxu0 0.0
    %4306 = vmatprep.mubr.f32.mxu0 0.0
    %4307 = vmatmul.mubr.f32.gmra.mrb[0].mxu0 %v4151
    %v4308 = vpop.f32.mrb[0].mxu0
    %v4309 = vadd.f32 %v4240, %v4308
    %v4310 = vpop.f32.mrb[0].mxu0
    %4311 = vdwg.mxu0
    %v4312 = vmul.f32 %v4224, 1.442695
    %v4313 = vpow.pop %v4312
    %v4314 = vmul.f32 %v3883, %v4313
    %v4315 = vadd.f32 %v4314, %v4309
    %v4316 = vsel %vm235, %v4224, 0.0
    %4317 = vadd.xlane.f32.xlu0 %v4316
    %v4318 = vpop.xlane.xlu0 %4317
    %v4319 = vadd.f32 %v3574, %v4318
    %s4320 = scalar_lea.vmem %s13, 40
    %v4321 = vld [vmem:[%s4320] sm:$0xff]
    %s4322 = scalar_lea.vmem %s15, 40
    %v4323 = vld [vmem:[%s4322] sm:$0xff]
    %v4325 = vsel %vm235, %v4315, 0
    %4327 = vmatprep.subr.mxu0 0.0
    %4328 = vmatpush1.msra.mxu0 %v4323
    %4329 = vmatprep.subr.mxu0 0.0
    %4330 = vmatpush1.msra.mxu0 0.0
    %4331 = vmatprep.subr.mxu0 0.0
    %4332 = vmatpush1.msra.mxu0 0.0
    %4333 = vmatprep.subr.mxu0 0.0
    %4334 = vmatpush1.msra.mxu0 0.0
    %4335 = vmatprep.subr.mxu0 0.0
    %4336 = vmatpush1.msra.mxu0 0.0
    %4337 = vmatprep.subr.mxu0 0.0
    %4338 = vmatpush1.msra.mxu0 0.0
    %4339 = vmatprep.subr.mxu0 0.0
    %4340 = vmatpush1.msra.mxu0 0.0
    %4341 = vmatprep.subr.mxu0 0.0
    %4342 = vmatpush1.msra.mxu0 0.0
    %4343 = vmatprep.subr.mxu0 0.0
    %4344 = vmatpush1.msra.mxu0 0.0
    %4345 = vmatprep.subr.mxu0 0.0
    %4346 = vmatpush1.msra.mxu0 0.0
    %4347 = vmatprep.subr.mxu0 0.0
    %4348 = vmatpush1.msra.mxu0 0.0
    %4349 = vmatprep.subr.mxu0 0.0
    %4350 = vmatpush1.msra.mxu0 0.0
    %4351 = vmatprep.subr.mxu0 0.0
    %4352 = vmatpush1.msra.mxu0 0.0
    %4353 = vmatprep.subr.mxu0 0.0
    %4354 = vmatpush1.msra.mxu0 0.0
    %4355 = vmatprep.subr.mxu0 0.0
    %4356 = vmatpush1.msra.mxu0 0.0
    %4357 = vmatprep.subr.mxu0 0.0
    %4358 = vmatpush1.msra.mxu0 0.0
    %4359 = vmatprep.subr.mxu0 0.0
    %4360 = vmatpush1.msra.mxu0 0.0
    %4361 = vmatprep.subr.mxu0 0.0
    %4362 = vmatpush1.msra.mxu0 0.0
    %4363 = vmatprep.subr.mxu0 0.0
    %4364 = vmatpush1.msra.mxu0 0.0
    %4365 = vmatprep.subr.mxu0 0.0
    %4366 = vmatpush1.msra.mxu0 0.0
    %4367 = vmatprep.subr.mxu0 0.0
    %4368 = vmatpush1.msra.mxu0 0.0
    %4369 = vmatprep.subr.mxu0 0.0
    %4370 = vmatpush1.msra.mxu0 0.0
    %4371 = vmatprep.subr.mxu0 0.0
    %4372 = vmatpush1.msra.mxu0 0.0
    %4373 = vmatprep.subr.mxu0 0.0
    %4374 = vmatpush1.msra.mxu0 0.0
    %4375 = vmatprep.subr.mxu0 0.0
    %4376 = vmatpush1.msra.mxu0 0.0
    %4377 = vmatprep.subr.mxu0 0.0
    %4378 = vmatpush1.msra.mxu0 0.0
    %4379 = vmatprep.subr.mxu0 0.0
    %4380 = vmatpush1.msra.mxu0 0.0
    %4381 = vmatprep.subr.mxu0 0.0
    %4382 = vmatpush1.msra.mxu0 0.0
    %4383 = vmatprep.subr.mxu0 0.0
    %4384 = vmatpush1.msra.mxu0 0.0
    %4385 = vmatprep.subr.mxu0 0.0
    %4386 = vmatpush1.msra.mxu0 0.0
    %4387 = vmatprep.subr.mxu0 0.0
    %4388 = vmatpush1.msra.mxu0 0.0
    %4389 = vmatprep.subr.mxu0 0.0
    %4390 = vmatpush1.msra.mxu0 0.0
    %4391 = vmatprep.mubr.f32.mxu0 0.0
    %4392 = vmatmul.mubr.f32.gmra.mrb[0].mxu0 %v4325
    %v4393 = vpop.f32.mrb[0].mxu0
    %v4394 = vadd.f32 0.0, %v4393
    %v4395 = vpop.f32.mrb[0].mxu0
    %4396 = vdwg.mxu0
    %4397 = vmatprep.subr.mxu0 0.0
    %4398 = vmatpush1.msra.mxu0 %v4321
    %4399 = vmatprep.subr.mxu0 0.0
    %4400 = vmatpush1.msra.mxu0 0.0
    %4401 = vmatprep.subr.mxu0 0.0
    %4402 = vmatpush1.msra.mxu0 0.0
    %4403 = vmatprep.subr.mxu0 0.0
    %4404 = vmatpush1.msra.mxu0 0.0
    %4405 = vmatprep.subr.mxu0 0.0
    %4406 = vmatpush1.msra.mxu0 0.0
    %4407 = vmatprep.subr.mxu0 0.0
    %4408 = vmatpush1.msra.mxu0 0.0
    %4409 = vmatprep.subr.mxu0 0.0
    %4410 = vmatpush1.msra.mxu0 0.0
    %4411 = vmatprep.subr.mxu0 0.0
    %4412 = vmatpush1.msra.mxu0 0.0
    %4413 = vmatprep.subr.mxu0 0.0
    %4414 = vmatpush1.msra.mxu0 0.0
    %4415 = vmatprep.subr.mxu0 0.0
    %4416 = vmatpush1.msra.mxu0 0.0
    %4417 = vmatprep.subr.mxu0 0.0
    %4418 = vmatpush1.msra.mxu0 0.0
    %4419 = vmatprep.subr.mxu0 0.0
    %4420 = vmatpush1.msra.mxu0 0.0
    %4421 = vmatprep.subr.mxu0 0.0
    %4422 = vmatpush1.msra.mxu0 0.0
    %4423 = vmatprep.subr.mxu0 0.0
    %4424 = vmatpush1.msra.mxu0 0.0
    %4425 = vmatprep.subr.mxu0 0.0
    %4426 = vmatpush1.msra.mxu0 0.0
    %4427 = vmatprep.subr.mxu0 0.0
    %4428 = vmatpush1.msra.mxu0 0.0
    %4429 = vmatprep.subr.mxu0 0.0
    %4430 = vmatpush1.msra.mxu0 0.0
    %4431 = vmatprep.subr.mxu0 0.0
    %4432 = vmatpush1.msra.mxu0 0.0
    %4433 = vmatprep.subr.mxu0 0.0
    %4434 = vmatpush1.msra.mxu0 0.0
    %4435 = vmatprep.subr.mxu0 0.0
    %4436 = vmatpush1.msra.mxu0 0.0
    %4437 = vmatprep.subr.mxu0 0.0
    %4438 = vmatpush1.msra.mxu0 0.0
    %4439 = vmatprep.subr.mxu0 0.0
    %4440 = vmatpush1.msra.mxu0 0.0
    %4441 = vmatprep.subr.mxu0 0.0
    %4442 = vmatpush1.msra.mxu0 0.0
    %4443 = vmatprep.subr.mxu0 0.0
    %4444 = vmatpush1.msra.mxu0 0.0
    %4445 = vmatprep.subr.mxu0 0.0
    %4446 = vmatpush1.msra.mxu0 0.0
    %4447 = vmatprep.subr.mxu0 0.0
    %4448 = vmatpush1.msra.mxu0 0.0
    %4449 = vmatprep.subr.mxu0 0.0
    %4450 = vmatpush1.msra.mxu0 0.0
    %4451 = vmatprep.subr.mxu0 0.0
    %4452 = vmatpush1.msra.mxu0 0.0
    %4453 = vmatprep.subr.mxu0 0.0
    %4454 = vmatpush1.msra.mxu0 0.0
    %4455 = vmatprep.subr.mxu0 0.0
    %4456 = vmatpush1.msra.mxu0 0.0
    %4457 = vmatprep.subr.mxu0 0.0
    %4458 = vmatpush1.msra.mxu0 0.0
    %4459 = vmatprep.subr.mxu0 0.0
    %4460 = vmatpush1.msra.mxu0 0.0
    %4461 = vmatprep.mubr.f32.mxu0 0.0
    %4462 = vmatmul.mubr.f32.gmra.mrb[0].mxu0 %v3960
    %v4463 = vpop.f32.mrb[0].mxu0
    %v4464 = vadd.f32 %v4394, %v4463
    %v4465 = vpop.f32.mrb[0].mxu0
    %4466 = vdwg.mxu0
    %s4467 = scalar_lea.vmem %s17, 5
    %v4468 = vld [vmem:[%s4467] sm:$0x1]
    %v4470 = vlaneseq
    %v4471 = vshrl.u32 %v4470, 7
    %v4472 = vsub.s32 0, %v4471
    %v4473 = vrot.slane %v4468, %v4472
    %v4475 = vadd.f32 %v4464, %v4473
    %s4476 = scalar_lea.vmem %s14, 40
    %v4477 = vld [vmem:[%s4476] sm:$0xff]
    %s4478 = scalar_lea.vmem %s16, 40
    %v4479 = vld [vmem:[%s4478] sm:$0xff]
    %4480 = vmatprep.subr.mxu0 0.0
    %4481 = vmatpush1.msra.mxu0 %v4479
    %4482 = vmatprep.subr.mxu0 0.0
    %4483 = vmatpush1.msra.mxu0 0.0
    %4484 = vmatprep.subr.mxu0 0.0
    %4485 = vmatpush1.msra.mxu0 0.0
    %4486 = vmatprep.subr.mxu0 0.0
    %4487 = vmatpush1.msra.mxu0 0.0
    %4488 = vmatprep.subr.mxu0 0.0
    %4489 = vmatpush1.msra.mxu0 0.0
    %4490 = vmatprep.subr.mxu0 0.0
    %4491 = vmatpush1.msra.mxu0 0.0
    %4492 = vmatprep.subr.mxu0 0.0
    %4493 = vmatpush1.msra.mxu0 0.0
    %4494 = vmatprep.subr.mxu0 0.0
    %4495 = vmatpush1.msra.mxu0 0.0
    %4496 = vmatprep.subr.mxu0 0.0
    %4497 = vmatpush1.msra.mxu0 0.0
    %4498 = vmatprep.subr.mxu0 0.0
    %4499 = vmatpush1.msra.mxu0 0.0
    %4500 = vmatprep.subr.mxu0 0.0
    %4501 = vmatpush1.msra.mxu0 0.0
    %4502 = vmatprep.subr.mxu0 0.0
    %4503 = vmatpush1.msra.mxu0 0.0
    %4504 = vmatprep.subr.mxu0 0.0
    %4505 = vmatpush1.msra.mxu0 0.0
    %4506 = vmatprep.subr.mxu0 0.0
    %4507 = vmatpush1.msra.mxu0 0.0
    %4508 = vmatprep.subr.mxu0 0.0
    %4509 = vmatpush1.msra.mxu0 0.0
    %4510 = vmatprep.subr.mxu0 0.0
    %4511 = vmatpush1.msra.mxu0 0.0
    %4512 = vmatprep.subr.mxu0 0.0
    %4513 = vmatpush1.msra.mxu0 0.0
    %4514 = vmatprep.subr.mxu0 0.0
    %4515 = vmatpush1.msra.mxu0 0.0
    %4516 = vmatprep.subr.mxu0 0.0
    %4517 = vmatpush1.msra.mxu0 0.0
    %4518 = vmatprep.subr.mxu0 0.0
    %4519 = vmatpush1.msra.mxu0 0.0
    %4520 = vmatprep.subr.mxu0 0.0
    %4521 = vmatpush1.msra.mxu0 0.0
    %4522 = vmatprep.subr.mxu0 0.0
    %4523 = vmatpush1.msra.mxu0 0.0
    %4524 = vmatprep.subr.mxu0 0.0
    %4525 = vmatpush1.msra.mxu0 0.0
    %4526 = vmatprep.subr.mxu0 0.0
    %4527 = vmatpush1.msra.mxu0 0.0
    %4528 = vmatprep.subr.mxu0 0.0
    %4529 = vmatpush1.msra.mxu0 0.0
    %4530 = vmatprep.subr.mxu0 0.0
    %4531 = vmatpush1.msra.mxu0 0.0
    %4532 = vmatprep.subr.mxu0 0.0
    %4533 = vmatpush1.msra.mxu0 0.0
    %4534 = vmatprep.subr.mxu0 0.0
    %4535 = vmatpush1.msra.mxu0 0.0
    %4536 = vmatprep.subr.mxu0 0.0
    %4537 = vmatpush1.msra.mxu0 0.0
    %4538 = vmatprep.subr.mxu0 0.0
    %4539 = vmatpush1.msra.mxu0 0.0
    %4540 = vmatprep.subr.mxu0 0.0
    %4541 = vmatpush1.msra.mxu0 0.0
    %4542 = vmatprep.subr.mxu0 0.0
    %4543 = vmatpush1.msra.mxu0 0.0
    %4544 = vmatprep.mubr.f32.mxu0 0.0
    %4545 = vmatmul.mubr.f32.gmra.mrb[0].mxu0 %v4325
    %v4546 = vpop.f32.mrb[0].mxu0
    %v4547 = vadd.f32 0.0, %v4546
    %v4548 = vpop.f32.mrb[0].mxu0
    %4549 = vdwg.mxu0
    %4550 = vmatprep.subr.mxu0 0.0
    %4551 = vmatpush1.msra.mxu0 %v4477
    %4552 = vmatprep.subr.mxu0 0.0
    %4553 = vmatpush1.msra.mxu0 0.0
    %4554 = vmatprep.subr.mxu0 0.0
    %4555 = vmatpush1.msra.mxu0 0.0
    %4556 = vmatprep.subr.mxu0 0.0
    %4557 = vmatpush1.msra.mxu0 0.0
    %4558 = vmatprep.subr.mxu0 0.0
    %4559 = vmatpush1.msra.mxu0 0.0
    %4560 = vmatprep.subr.mxu0 0.0
    %4561 = vmatpush1.msra.mxu0 0.0
    %4562 = vmatprep.subr.mxu0 0.0
    %4563 = vmatpush1.msra.mxu0 0.0
    %4564 = vmatprep.subr.mxu0 0.0
    %4565 = vmatpush1.msra.mxu0 0.0
    %4566 = vmatprep.subr.mxu0 0.0
    %4567 = vmatpush1.msra.mxu0 0.0
    %4568 = vmatprep.subr.mxu0 0.0
    %4569 = vmatpush1.msra.mxu0 0.0
    %4570 = vmatprep.subr.mxu0 0.0
    %4571 = vmatpush1.msra.mxu0 0.0
    %4572 = vmatprep.subr.mxu0 0.0
    %4573 = vmatpush1.msra.mxu0 0.0
    %4574 = vmatprep.subr.mxu0 0.0
    %4575 = vmatpush1.msra.mxu0 0.0
    %4576 = vmatprep.subr.mxu0 0.0
    %4577 = vmatpush1.msra.mxu0 0.0
    %4578 = vmatprep.subr.mxu0 0.0
    %4579 = vmatpush1.msra.mxu0 0.0
    %4580 = vmatprep.subr.mxu0 0.0
    %4581 = vmatpush1.msra.mxu0 0.0
    %4582 = vmatprep.subr.mxu0 0.0
    %4583 = vmatpush1.msra.mxu0 0.0
    %4584 = vmatprep.subr.mxu0 0.0
    %4585 = vmatpush1.msra.mxu0 0.0
    %4586 = vmatprep.subr.mxu0 0.0
    %4587 = vmatpush1.msra.mxu0 0.0
    %4588 = vmatprep.subr.mxu0 0.0
    %4589 = vmatpush1.msra.mxu0 0.0
    %4590 = vmatprep.subr.mxu0 0.0
    %4591 = vmatpush1.msra.mxu0 0.0
    %4592 = vmatprep.subr.mxu0 0.0
    %4593 = vmatpush1.msra.mxu0 0.0
    %4594 = vmatprep.subr.mxu0 0.0
    %4595 = vmatpush1.msra.mxu0 0.0
    %4596 = vmatprep.subr.mxu0 0.0
    %4597 = vmatpush1.msra.mxu0 0.0
    %4598 = vmatprep.subr.mxu0 0.0
    %4599 = vmatpush1.msra.mxu0 0.0
    %4600 = vmatprep.subr.mxu0 0.0
    %4601 = vmatpush1.msra.mxu0 0.0
    %4602 = vmatprep.subr.mxu0 0.0
    %4603 = vmatpush1.msra.mxu0 0.0
    %4604 = vmatprep.subr.mxu0 0.0
    %4605 = vmatpush1.msra.mxu0 0.0
    %4606 = vmatprep.subr.mxu0 0.0
    %4607 = vmatpush1.msra.mxu0 0.0
    %4608 = vmatprep.subr.mxu0 0.0
    %4609 = vmatpush1.msra.mxu0 0.0
    %4610 = vmatprep.subr.mxu0 0.0
    %4611 = vmatpush1.msra.mxu0 0.0
    %4612 = vmatprep.subr.mxu0 0.0
    %4613 = vmatpush1.msra.mxu0 0.0
    %4614 = vmatprep.mubr.f32.mxu0 0.0
    %4615 = vmatmul.mubr.f32.gmra.mrb[0].mxu0 %v3960
    %v4616 = vpop.f32.mrb[0].mxu0
    %v4617 = vadd.f32 %v4547, %v4616
    %v4618 = vpop.f32.mrb[0].mxu0
    %4619 = vdwg.mxu0
    %s4620 = scalar_lea.vmem %s18, 5
    %v4621 = vld [vmem:[%s4620] sm:$0x1]
    %v4623 = vlaneseq
    %v4624 = vshrl.u32 %v4623, 7
    %v4625 = vsub.s32 0, %v4624
    %v4626 = vrot.slane %v4621, %v4625
    %v4628 = vadd.f32 %v4617, %v4626
    %4630 = vrot.lane.b32.xlu0 %v4628, 8
    %v4631 = vpop.permute.xlu0 %4630
    %v4633 = vsel %vm235, %v4475, %v4631
    %4634 = vst.msk [vmem:[#allocation3] sm:$0xff] %vm161, %v4633
    %v4635 = vld [vmem:[#allocation2] sm:$0x1]
    %v4637 = vlaneseq
    %v4638 = vshrl.u32 %v4637, 7
    %v4639 = vsub.s32 0, %v4638
    %v4640 = vrot.slane %v4635, %v4639
    %v4642 = vadd.f32 %v4319, %v4640
    %vm4643 = vcmask 7168
    %4644 = vst.msk [vmem:[%s21] sm:$0xff] %vm4643, %v4642
    // Predicated region
    $region82: #{tpu_custom_call.1} parent=1 // pred_check
      _
    $region83: #{tpu_custom_call.1} parent=1 // pred_check_branch
      %4646 = sbr.rel (0) target = $region85
    $region84: #{tpu_custom_call.1} parent=1 // pred_region
      %s4648 = ssub.s32 128, 128
      %4649 = vsyncadd [#allocation4], %s4648
      %s4651 = sshll.u32 [#allocation3], 4
      %s4652 = int_to_ptr.vmem [resolvable:$true] %s4651
      %4654 = dma.vmem_to_hbm [thread:$0]  %s4652, 128, %s20, [#allocation4]
    $region85: #{tpu_custom_call.1} parent=1 // pred_fallthru
      _
    // Predicated region
    $region86: #{tpu_custom_call.1} parent=1 // pred_check
      _
    $region87: #{tpu_custom_call.1} parent=1 // pred_check_branch
      %4656 = sbr.rel (0) target = $region89
    $region88: #{tpu_custom_call.1} parent=1 // pred_region
      _
    $region89: #{tpu_custom_call.1} parent=1 // pred_fallthru
      _
    // Predicated region
    $region90: #{tpu_custom_call.1} parent=1 // pred_check
      _
    $region91: #{tpu_custom_call.1} parent=1 // pred_check_branch
      %4658 = sbr.rel (0) target = $region93
    $region92: #{tpu_custom_call.1} parent=1 // pred_region
      %4659 = dma.done [#allocation4], 128
    $region93: #{tpu_custom_call.1} parent=1 // pred_fallthru
      _
    // Predicated region
    $region94: #{tpu_custom_call.1} parent=1 // pred_check
      _
    $region95: #{tpu_custom_call.1} parent=1 // pred_check_branch
      %4661 = sbr.rel (0) target = $region97
    $region96: #{tpu_custom_call.1} parent=1 // pred_region
      _
    $region97: #{tpu_custom_call.1} parent=1 // pred_fallthru
      _
    %4662 = vsyncpa [#allocation4], 1

</llo_original>
